<compile_context>
chip_gen: v7x
topology: tpu7x:2x2x1
jax: 0.10.0
libtpu: 0.0.40
codegen_flags: <defaults>
</compile_context>

<pallas_src>
import functools

import jax
import jax.numpy as jnp
from jax import lax
from jax.experimental import pallas as pl
from jax.experimental.pallas import tpu as pltpu

BN_EPS = 1e-5          # nn.BatchNorm2d default (momentum only affects running stats)
LANE = 128


def _round_up(x, m):
    return (x + m - 1) // m * m


def _make_fused_kernel(ks, wp, wo, ty, cin, rows_out, inv_count):
    """Fused conv + batch-stats (phase 0) and BN-fold + ReLU apply (phase 1)."""
    taps = [(dy, dx) for dy in range(ks) for dx in range(ks)]

    def kernel(x_ref, w_ref, gamma_ref, beta_ref, out_ref,
               conv_ref, patch_ref, sum_ref, sumsq_ref, scale_ref, shift_ref):
        # x_ref    : (LB, Cin)              one flattened, zero-padded image
        # w_ref    : (ks*ks*Cin, Cp)        tap-major flattened weights, 128-lane padded
        # gamma_ref, beta_ref : (1, Cp)
        # out_ref  : (ty*wo, Cp)            final BN+ReLU tile (valid columns only)
        # conv_ref : (N, ty*wo, Cp)         VMEM-resident conv output for the whole batch
        # patch_ref: (rows_out, ks*ks*Cin)  in-VMEM im2col patch for the current image
        # sum/sumsq/scale/shift: (1, Cp)    per-channel statistics / folded affine
        p = pl.program_id(0)
        b = pl.program_id(1)

        @pl.when(p == 0)
        def _conv_and_stats():
            @pl.when(b == 0)
            def _init():
                sum_ref[...] = jnp.zeros_like(sum_ref)
                sumsq_ref[...] = jnp.zeros_like(sumsq_ref)

            # im2col entirely in VMEM: ks*ks shifted copies of the resident input block.
            for t, (dy, dx) in enumerate(taps):
                patch_ref[:, t * cin:(t + 1) * cin] = x_ref[pl.ds(dy * wp + dx, rows_out), :]

            # One K = ks*ks*Cin matmul on the MXU, f32 accumulate.
            acc = jnp.dot(patch_ref[...], w_ref[...],
                          preferred_element_type=jnp.float32)      # (rows_out, Cp)

            # Per-channel sum / sumsq over the VALID output columns (in-kernel iota mask;
            # the compare/select are free VPU filler under the matmul).
            col = lax.broadcasted_iota(jnp.int32, (rows_out, 1), 0) % wp
            valid = (col < wo).astype(jnp.float32)
            av = acc * valid
            sum_ref[...] += jnp.sum(av, axis=0, keepdims=True)
            sumsq_ref[...] += jnp.sum(av * acc, axis=0, keepdims=True)

            # Compact away the padded-width junk columns while the tile is resident:
            # output row y lives at flat rows [y*wp, y*wp + wo) of the padded-width grid.
            for y in range(ty):
                conv_ref[b, pl.ds(y * wo, wo), :] = acc[y * wp:y * wp + wo, :]

        @pl.when(p == 1)
        def _bn_relu():
            # Fold batch statistics into scale/shift once, at the phase boundary.
            @pl.when(b == 0)
            def _fold():
                mean = sum_ref[...] * inv_count
                var = jnp.maximum(sumsq_ref[...] * inv_count - mean * mean, 0.0)
                s = gamma_ref[...] * lax.rsqrt(var + BN_EPS)
                scale_ref[...] = s
                shift_ref[...] = beta_ref[...] - mean * s

            y = conv_ref[b]                                         # (ty*wo, Cp)
            out_ref[...] = jnp.maximum(
                y * scale_ref[...] + shift_ref[...], 0.0).astype(out_ref.dtype)

    return kernel


@functools.partial(jax.jit, static_argnames=("ks", "stride", "padding"))
def conv_bn_relu(x_nchw, w_oihw, gamma, beta, ks=3, stride=1, padding=1):
    assert stride == 1, "ConvBNReLU default stride=1 is what we implement"
    N, Cin, H, W = x_nchw.shape
    Cout = w_oihw.shape[0]
    Hp, Wp = H + 2 * padding, W + 2 * padding
    Ho, Wo = Hp - ks + 1, Wp - ks + 1
    Cp = _round_up(max(Cout, LANE), LANE)          # lane-dense output channels

    # One full image per grid block (no halo duplication, big DMAs, tiny grid).
    TY = Ho
    NBLK = N
    rows_out = TY * Wp                              # conv rows on the padded-width grid
    rows_valid = TY * Wo                            # valid conv rows (junk columns removed)
    K = ks * ks * Cin
    LB = _round_up(Hp * Wp + ks - 1, 8)             # flat input rows per image (+ tap slack)
    assert rows_valid % 8 == 0, "Ho*Wo must be sublane-aligned for the flat output block"

    # VMEM-resident intermediate gate: v7x has 64 MiB physical / 32 MiB scoped default.
    conv_scratch_bytes = NBLK * rows_valid * Cp * 4
    assert conv_scratch_bytes <= 24 * 1024 * 1024, (
        "fused VMEM-resident path only; activation too large")
    # TODO(synk): add a two-pass HBM (or bf16-intermediate) fallback for activations that
    # do not fit the VMEM budget.

    # ---- glue: NCHW -> NHWC, zero pad, flatten per image (no im2col, no halo stack) ----
    x = jnp.transpose(x_nchw, (0, 2, 3, 1)).astype(jnp.float32)           # (N,H,W,Cin)
    xp = jnp.pad(x, ((0, 0), (padding, padding), (padding, padding), (0, 0)))
    x2d = xp.reshape(N, Hp * Wp, Cin)
    x2d = jnp.pad(x2d, ((0, 0), (0, LB - Hp * Wp), (0, 0))).reshape(N * LB, Cin)

    # weights (Cout,Cin,kh,kw) -> (ks*ks*Cin, Cp), tap-major rows, channel-padded lanes
    wflat = jnp.transpose(w_oihw.astype(jnp.float32), (2, 3, 1, 0)).reshape(K, Cout)
    wflat = jnp.pad(wflat, ((0, 0), (0, Cp - Cout)))
    gamma_p = jnp.pad(gamma.astype(jnp.float32), (0, Cp - Cout)).reshape(1, Cp)
    beta_p = jnp.pad(beta.astype(jnp.float32), (0, Cp - Cout)).reshape(1, Cp)

    inv_count = 1.0 / float(N * Ho * Wo)

    kernel = _make_fused_kernel(ks=ks, wp=Wp, wo=Wo, ty=TY, cin=Cin,
                                rows_out=rows_out, inv_count=inv_count)

    # Advisory cost: real useful work (Cout / Wo), realistic HBM bytes (padded output only).
    cost = pl.CostEstimate(
        flops=2 * N * Ho * Wo * K * Cout + 4 * N * Ho * Wo * Cout,
        transcendentals=Cout,
        bytes_accessed=4 * (x2d.size + wflat.size + 2 * Cp + N * rows_valid * Cp))

    out2d = pl.pallas_call(
        kernel,
        out_shape=jax.ShapeDtypeStruct((N * rows_valid, Cp), jnp.float32),
        grid=(2, NBLK),                               # (phase, image)
        in_specs=[
            # input only needed in phase 0; park on block 0 during phase 1 (no re-fetch)
            pl.BlockSpec((LB, Cin), lambda p, b: (b * (1 - p), 0)),
            pl.BlockSpec((K, Cp), lambda p, b: (0, 0)),
            pl.BlockSpec((1, Cp), lambda p, b: (0, 0)),
            pl.BlockSpec((1, Cp), lambda p, b: (0, 0)),
        ],
        # output block index stays parked at 0 through phase 0 (never written back),
        # then walks the blocks during phase 1 -> only real data ever reaches HBM.
        out_specs=pl.BlockSpec((rows_valid, Cp), lambda p, b: (b * p, 0)),
        scratch_shapes=[
            pltpu.VMEM((NBLK, rows_valid, Cp), jnp.float32),   # whole-batch conv output
            pltpu.VMEM((rows_out, K), jnp.float32),            # im2col patch (one image)
            pltpu.VMEM((1, Cp), jnp.float32),                  # sum
            pltpu.VMEM((1, Cp), jnp.float32),                  # sumsq
            pltpu.VMEM((1, Cp), jnp.float32),                  # folded scale
            pltpu.VMEM((1, Cp), jnp.float32),                  # folded shift
        ],
        compiler_params=pltpu.CompilerParams(
            dimension_semantics=("arbitrary", "arbitrary"),    # scratch carries across steps
            vmem_limit_bytes=32 * 1024 * 1024),
        cost_estimate=cost,
    )(x2d, wflat, gamma_p, beta_p)

    # back to PyTorch NCHW, dropping lane padding (junk columns never reached HBM)
    out = out2d.reshape(N, Ho, Wo, Cp)[..., :Cout]
    return jnp.transpose(out, (0, 3, 1, 2))


def _reference(x_nchw, w_oihw, gamma, beta, padding=1):
    # pure-JAX reference: conv -> train-mode BN (biased var) -> ReLU
    conv = lax.conv_general_dilated(
        x_nchw.astype(jnp.float32), w_oihw.astype(jnp.float32),
        window_strides=(1, 1), padding=((padding, padding), (padding, padding)),
        dimension_numbers=("NCHW", "OIHW", "NCHW"))
    mean = conv.mean(axis=(0, 2, 3), keepdims=True)
    var = ((conv - mean) ** 2).mean(axis=(0, 2, 3), keepdims=True)
    y = (conv - mean) * lax.rsqrt(var + BN_EPS)
    y = y * gamma.reshape(1, -1, 1, 1) + beta.reshape(1, -1, 1, 1)
    return jnp.maximum(y, 0.0)


if __name__ == "__main__":
    key = jax.random.PRNGKey(0)
    kx, kw, kg, kb = jax.random.split(key, 4)

    # small shapes consistent with the module: in_chan=4, out_chan=8, ks=3, stride=1, padding=1
    N, Cin, H, W = 2, 4, 16, 16
    Cout = 8

    x = jax.random.normal(kx, (N, Cin, H, W), dtype=jnp.float32)
    w = 0.1 * jax.random.normal(kw, (Cout, Cin, 3, 3), dtype=jnp.float32)   # conv weight, bias=False
    gamma = jax.random.uniform(kg, (Cout,), minval=0.5, maxval=1.5, dtype=jnp.float32)  # BN weight
    beta = 0.1 * jax.random.normal(kb, (Cout,), dtype=jnp.float32)          # BN bias

    out = conv_bn_relu(x, w, gamma, beta)
    out = jax.block_until_ready(out)

    ref = _reference(x, w, gamma, beta)
    assert out.shape == (N, Cout, H, W)
    assert jnp.allclose(out, ref, atol=1e-3, rtol=1e-3), "mismatch vs reference"

    print("KERNEL_OK")
</pallas_src>

<mosaic_0001>
module attributes {stable_mosaic.version = 11 : i64} {
  func.func @kernel(%arg0: i32, %arg1: i32, %arg2: memref<328x4xf32, #tpu.memory_space<vmem>>, %arg3: memref<36x128xf32, #tpu.memory_space<vmem>>, %arg4: memref<1x128xf32, #tpu.memory_space<vmem>>, %arg5: memref<1x128xf32, #tpu.memory_space<vmem>>, %arg6: memref<256x128xf32, #tpu.memory_space<vmem>>, %arg7: memref<2x256x128xf32, #tpu.memory_space<vmem>>, %arg8: memref<288x36xf32, #tpu.memory_space<vmem>>, %arg9: memref<1x128xf32, #tpu.memory_space<vmem>>, %arg10: memref<1x128xf32, #tpu.memory_space<vmem>>, %arg11: memref<1x128xf32, #tpu.memory_space<vmem>>, %arg12: memref<1x128xf32, #tpu.memory_space<vmem>>) attributes {dimension_semantics = [#tpu.dimension_semantics<arbitrary>, #tpu.dimension_semantics<arbitrary>], iteration_bounds = array<i64: 2, 2>, scalar_prefetch = 0 : i64, scratch_operands = 6 : i64, tpu.core_type = #tpu.core_type<tc>, window_params = [{transform_indices = @transform_0, window_bounds = array<i64: 328, 4>}, {pipeline_mode = #tpu.pipeline_mode<synchronous>, transform_indices = @transform_1, window_bounds = array<i64: 36, 128>}, {pipeline_mode = #tpu.pipeline_mode<synchronous>, transform_indices = @transform_2, window_bounds = array<i64: 1, 128>}, {pipeline_mode = #tpu.pipeline_mode<synchronous>, transform_indices = @transform_3, window_bounds = array<i64: 1, 128>}, {transform_indices = @transform_4, window_bounds = array<i64: 256, 128>}]} {
    %c0_i32 = arith.constant 0 : i32
    %0 = arith.cmpi eq, %arg0, %c0_i32 : i32
    %1 = arith.extui %0 : i1 to i32
    %c0_i32_0 = arith.constant 0 : i32
    %2 = arith.cmpi ne, %1, %c0_i32_0 : i32
    scf.if %2 {
      %c0_i32_2 = arith.constant 0 : i32
      %6 = arith.cmpi eq, %arg1, %c0_i32_2 : i32
      %7 = arith.extui %6 : i1 to i32
      %c0_i32_3 = arith.constant 0 : i32
      %8 = arith.cmpi ne, %7, %c0_i32_3 : i32
      scf.if %8 {
        %cst_62 = arith.constant 0.000000e+00 : f32
        %144 = vector.broadcast %cst_62 : f32 to vector<1x128xf32>
        %c0_63 = arith.constant 0 : index
        %c0_64 = arith.constant 0 : index
        %145 = vector.load %arg9[%c0_63, %c0_64] : memref<1x128xf32, #tpu.memory_space<vmem>>, vector<1x128xf32>
        tpu.vector_store %arg9[%c0_63, %c0_64], %144 {strides = array<i32>} : memref<1x128xf32, #tpu.memory_space<vmem>>, vector<1x128xf32>,
        %cst_65 = arith.constant 0.000000e+00 : f32
        %146 = vector.broadcast %cst_65 : f32 to vector<1x128xf32>
        %c0_66 = arith.constant 0 : index
        %c0_67 = arith.constant 0 : index
        %147 = vector.load %arg10[%c0_66, %c0_67] : memref<1x128xf32, #tpu.memory_space<vmem>>, vector<1x128xf32>
        tpu.vector_store %arg10[%c0_66, %c0_67], %146 {strides = array<i32>} : memref<1x128xf32, #tpu.memory_space<vmem>>, vector<1x128xf32>,
      } else {
      }
      %c0 = arith.constant 0 : index
      %c0_4 = arith.constant 0 : index
      %9 = vector.load %arg2[%c0, %c0_4] : memref<328x4xf32, #tpu.memory_space<vmem>>, vector<288x4xf32>
      %c0_5 = arith.constant 0 : index
      %c0_6 = arith.constant 0 : index
      %10 = vector.load %arg8[%c0_5, %c0_6] : memref<288x36xf32, #tpu.memory_space<vmem>>, vector<288x4xf32>
      tpu.vector_store %arg8[%c0_5, %c0_6], %9 {strides = array<i32>} : memref<288x36xf32, #tpu.memory_space<vmem>>, vector<288x4xf32>,
      %c1 = arith.constant 1 : index
      %c0_7 = arith.constant 0 : index
      %11 = vector.load %arg2[%c1, %c0_7] : memref<328x4xf32, #tpu.memory_space<vmem>>, vector<288x4xf32>
      %c0_8 = arith.constant 0 : index
      %c4 = arith.constant 4 : index
      %12 = vector.load %arg8[%c0_8, %c4] : memref<288x36xf32, #tpu.memory_space<vmem>>, vector<288x4xf32>
      tpu.vector_store %arg8[%c0_8, %c4], %11 {strides = array<i32>} : memref<288x36xf32, #tpu.memory_space<vmem>>, vector<288x4xf32>,
      %c2 = arith.constant 2 : index
      %c0_9 = arith.constant 0 : index
      %13 = vector.load %arg2[%c2, %c0_9] : memref<328x4xf32, #tpu.memory_space<vmem>>, vector<288x4xf32>
      %c0_10 = arith.constant 0 : index
      %c8 = arith.constant 8 : index
      %14 = vector.load %arg8[%c0_10, %c8] : memref<288x36xf32, #tpu.memory_space<vmem>>, vector<288x4xf32>
      tpu.vector_store %arg8[%c0_10, %c8], %13 {strides = array<i32>} : memref<288x36xf32, #tpu.memory_space<vmem>>, vector<288x4xf32>,
      %c18 = arith.constant 18 : index
      %c0_11 = arith.constant 0 : index
      %15 = vector.load %arg2[%c18, %c0_11] : memref<328x4xf32, #tpu.memory_space<vmem>>, vector<288x4xf32>
      %c0_12 = arith.constant 0 : index
      %c12 = arith.constant 12 : index
      %16 = vector.load %arg8[%c0_12, %c12] : memref<288x36xf32, #tpu.memory_space<vmem>>, vector<288x4xf32>
      tpu.vector_store %arg8[%c0_12, %c12], %15 {strides = array<i32>} : memref<288x36xf32, #tpu.memory_space<vmem>>, vector<288x4xf32>,
      %c19 = arith.constant 19 : index
      %c0_13 = arith.constant 0 : index
      %17 = vector.load %arg2[%c19, %c0_13] : memref<328x4xf32, #tpu.memory_space<vmem>>, vector<288x4xf32>
      %c0_14 = arith.constant 0 : index
      %c16 = arith.constant 16 : index
      %18 = vector.load %arg8[%c0_14, %c16] : memref<288x36xf32, #tpu.memory_space<vmem>>, vector<288x4xf32>
      tpu.vector_store %arg8[%c0_14, %c16], %17 {strides = array<i32>} : memref<288x36xf32, #tpu.memory_space<vmem>>, vector<288x4xf32>,
      %c20 = arith.constant 20 : index
      %c0_15 = arith.constant 0 : index
      %19 = vector.load %arg2[%c20, %c0_15] : memref<328x4xf32, #tpu.memory_space<vmem>>, vector<288x4xf32>
      %c0_16 = arith.constant 0 : index
      %c20_17 = arith.constant 20 : index
      %20 = vector.load %arg8[%c0_16, %c20_17] : memref<288x36xf32, #tpu.memory_space<vmem>>, vector<288x4xf32>
      tpu.vector_store %arg8[%c0_16, %c20_17], %19 {strides = array<i32>} : memref<288x36xf32, #tpu.memory_space<vmem>>, vector<288x4xf32>,
      %c36 = arith.constant 36 : index
      %c0_18 = arith.constant 0 : index
      %21 = vector.load %arg2[%c36, %c0_18] : memref<328x4xf32, #tpu.memory_space<vmem>>, vector<288x4xf32>
      %c0_19 = arith.constant 0 : index
      %c24 = arith.constant 24 : index
      %22 = vector.load %arg8[%c0_19, %c24] : memref<288x36xf32, #tpu.memory_space<vmem>>, vector<288x4xf32>
      tpu.vector_store %arg8[%c0_19, %c24], %21 {strides = array<i32>} : memref<288x36xf32, #tpu.memory_space<vmem>>, vector<288x4xf32>,
      %c37 = arith.constant 37 : index
      %c0_20 = arith.constant 0 : index
      %23 = vector.load %arg2[%c37, %c0_20] : memref<328x4xf32, #tpu.memory_space<vmem>>, vector<288x4xf32>
      %c0_21 = arith.constant 0 : index
      %c28 = arith.constant 28 : index
      %24 = vector.load %arg8[%c0_21, %c28] : memref<288x36xf32, #tpu.memory_space<vmem>>, vector<288x4xf32>
      tpu.vector_store %arg8[%c0_21, %c28], %23 {strides = array<i32>} : memref<288x36xf32, #tpu.memory_space<vmem>>, vector<288x4xf32>,
      %c38 = arith.constant 38 : index
      %c0_22 = arith.constant 0 : index
      %25 = vector.load %arg2[%c38, %c0_22] : memref<328x4xf32, #tpu.memory_space<vmem>>, vector<288x4xf32>
      %c0_23 = arith.constant 0 : index
      %c32 = arith.constant 32 : index
      %26 = vector.load %arg8[%c0_23, %c32] : memref<288x36xf32, #tpu.memory_space<vmem>>, vector<288x4xf32>
      tpu.vector_store %arg8[%c0_23, %c32], %25 {strides = array<i32>} : memref<288x36xf32, #tpu.memory_space<vmem>>, vector<288x4xf32>,
      %c0_24 = arith.constant 0 : index
      %c0_25 = arith.constant 0 : index
      %27 = vector.load %arg8[%c0_24, %c0_25] : memref<288x36xf32, #tpu.memory_space<vmem>>, vector<288x36xf32>
      %c0_26 = arith.constant 0 : index
      %c0_27 = arith.constant 0 : index
      %28 = vector.load %arg3[%c0_26, %c0_27] : memref<36x128xf32, #tpu.memory_space<vmem>>, vector<36x128xf32>
      %cst = arith.constant dense<0.000000e+00> : vector<288x128xf32>
      %29 = tpu.matmul %27, %28, %cst {dimension_numbers = #tpu.dot_dimension_numbers<[1], [0], [0], [1], [0, 0, 1, 1], [], []>} : vector<288x36xf32>, vector<36x128xf32>, vector<288x128xf32> -> vector<288x128xf32>
      %30 = tpu.iota {dimensions = array<i32: 0>} : vector<288x1xi32>
      %c18_i32 = arith.constant 18 : i32
      %c0_i32_28 = arith.constant 0 : i32
      %31 = arith.cmpi eq, %c18_i32, %c0_i32_28 : i32
      %c1_i32_29 = arith.constant 1 : i32
      %32 = arith.select %31, %c1_i32_29, %c18_i32 : i32
      %33 = vector.broadcast %32 : i32 to vector<288x1xi32>
      %34 = arith.remsi %30, %33 : vector<288x1xi32>
      %c0_i32_30 = arith.constant 0 : i32
      %35 = vector.broadcast %c0_i32_30 : i32 to vector<288x1xi32>
      %36 = arith.cmpi ne, %34, %35 : vector<288x1xi32>
      %c0_i32_31 = arith.constant 0 : i32
      %37 = vector.broadcast %c0_i32_31 : i32 to vector<288x1xi32>
      %38 = arith.cmpi slt, %34, %37 : vector<288x1xi32>
      %c0_i32_32 = arith.constant 0 : i32
      %39 = arith.cmpi slt, %32, %c0_i32_32 : i32
      %40 = vector.broadcast %39 : i1 to vector<288x1xi1>
      %41 = vector.broadcast %40 : vector<288x1xi1> to vector<288x1xi1>
      %42 = arith.xori %38, %41 : vector<288x1xi1>
      %43 = arith.andi %42, %36 : vector<288x1xi1>
      %44 = vector.broadcast %32 : i32 to vector<288x1xi32>
      %45 = arith.addi %34, %44 : vector<288x1xi32>
      %46 = arith.select %43, %45, %34 : vector<288x1xi1>, vector<288x1xi32>
      %c16_i32 = arith.constant 16 : i32
      %47 = vector.broadcast %c16_i32 : i32 to vector<288x1xi32>
      %48 = arith.cmpi slt, %46, %47 : vector<288x1xi32>
      %49 = arith.extui %48 : vector<288x1xi1> to vector<288x1xi32>
      %50 = arith.sitofp %49 : vector<288x1xi32> to vector<288x1xf32>
      %51 = vector.broadcast %50 : vector<288x1xf32> to vector<288x128xf32>
      %52 = arith.mulf %29, %51 : vector<288x128xf32>
      %c0_33 = arith.constant 0 : index
      %c0_34 = arith.constant 0 : index
      %53 = vector.load %arg9[%c0_33, %c0_34] : memref<1x128xf32, #tpu.memory_space<vmem>>, vector<1x128xf32>
      %cst_35 = arith.constant dense<0.000000e+00> : vector<128xf32>
      %54 = vector.multi_reduction <add>, %52, %cst_35 [0] : vector<288x128xf32> to vector<128xf32>
      %55 = vector.shape_cast %54 : vector<128xf32> to vector<1x128xf32>
      %56 = arith.addf %53, %55 : vector<1x128xf32>
      %c0_36 = arith.constant 0 : index
      %c0_37 = arith.constant 0 : index
      %57 = vector.load %arg9[%c0_36, %c0_37] : memref<1x128xf32, #tpu.memory_space<vmem>>, vector<1x128xf32>
      tpu.vector_store %arg9[%c0_36, %c0_37], %56 {strides = array<i32>} : memref<1x128xf32, #tpu.memory_space<vmem>>, vector<1x128xf32>,
      %c0_38 = arith.constant 0 : index
      %c0_39 = arith.constant 0 : index
      %58 = vector.load %arg10[%c0_38, %c0_39] : memref<1x128xf32, #tpu.memory_space<vmem>>, vector<1x128xf32>
      %59 = arith.mulf %52, %29 : vector<288x128xf32>
      %cst_40 = arith.constant dense<0.000000e+00> : vector<128xf32>
      %60 = vector.multi_reduction <add>, %59, %cst_40 [0] : vector<288x128xf32> to vector<128xf32>
      %61 = vector.shape_cast %60 : vector<128xf32> to vector<1x128xf32>
      %62 = arith.addf %58, %61 : vector<1x128xf32>
      %c0_41 = arith.constant 0 : index
      %c0_42 = arith.constant 0 : index
      %63 = vector.load %arg10[%c0_41, %c0_42] : memref<1x128xf32, #tpu.memory_space<vmem>>, vector<1x128xf32>
      tpu.vector_store %arg10[%c0_41, %c0_42], %62 {strides = array<i32>} : memref<1x128xf32, #tpu.memory_space<vmem>>, vector<1x128xf32>,
      %64 = vector.extract_strided_slice %29 {offsets = [0, 0], sizes = [16, 128], strides = [1, 1]} : vector<288x128xf32> to vector<16x128xf32>
      %65 = arith.index_cast %arg1 : i32 to index
      %c0_43 = arith.constant 0 : index
      %c0_44 = arith.constant 0 : index
      %66 = vector.load %arg7[%65, %c0_43, %c0_44] : memref<2x256x128xf32, #tpu.memory_space<vmem>>, vector<1x16x128xf32>
      %67 = vector.shape_cast %66 : vector<1x16x128xf32> to vector<16x128xf32>
      %68 = vector.shape_cast %64 : vector<16x128xf32> to vector<1x16x128xf32>
      tpu.vector_store %arg7[%65, %c0_43, %c0_44], %68 {strides = array<i32>} : memref<2x256x128xf32, #tpu.memory_space<vmem>>, vector<1x16x128xf32>,
      %69 = vector.extract_strided_slice %29 {offsets = [18, 0], sizes = [16, 128], strides = [1, 1]} : vector<288x128xf32> to vector<16x128xf32>
      %70 = arith.index_cast %arg1 : i32 to index
      %c16_45 = arith.constant 16 : index
      %c0_46 = arith.constant 0 : index
      %71 = vector.load %arg7[%70, %c16_45, %c0_46] : memref<2x256x128xf32, #tpu.memory_space<vmem>>, vector<1x16x128xf32>
      %72 = vector.shape_cast %71 : vector<1x16x128xf32> to vector<16x128xf32>
      %73 = vector.shape_cast %69 : vector<16x128xf32> to vector<1x16x128xf32>
      tpu.vector_store %arg7[%70, %c16_45, %c0_46], %73 {strides = array<i32>} : memref<2x256x128xf32, #tpu.memory_space<vmem>>, vector<1x16x128xf32>,
      %74 = vector.extract_strided_slice %29 {offsets = [36, 0], sizes = [16, 128], strides = [1, 1]} : vector<288x128xf32> to vector<16x128xf32>
      %75 = arith.index_cast %arg1 : i32 to index
      %c32_47 = arith.constant 32 : index
      %c0_48 = arith.constant 0 : index
      %76 = vector.load %arg7[%75, %c32_47, %c0_48] : memref<2x256x128xf32, #tpu.memory_space<vmem>>, vector<1x16x128xf32>
      %77 = vector.shape_cast %76 : vector<1x16x128xf32> to vector<16x128xf32>
      %78 = vector.shape_cast %74 : vector<16x128xf32> to vector<1x16x128xf32>
      tpu.vector_store %arg7[%75, %c32_47, %c0_48], %78 {strides = array<i32>} : memref<2x256x128xf32, #tpu.memory_space<vmem>>, vector<1x16x128xf32>,
      %79 = vector.extract_strided_slice %29 {offsets = [54, 0], sizes = [16, 128], strides = [1, 1]} : vector<288x128xf32> to vector<16x128xf32>
      %80 = arith.index_cast %arg1 : i32 to index
      %c48 = arith.constant 48 : index
      %c0_49 = arith.constant 0 : index
      %81 = vector.load %arg7[%80, %c48, %c0_49] : memref<2x256x128xf32, #tpu.memory_space<vmem>>, vector<1x16x128xf32>
      %82 = vector.shape_cast %81 : vector<1x16x128xf32> to vector<16x128xf32>
      %83 = vector.shape_cast %79 : vector<16x128xf32> to vector<1x16x128xf32>
      tpu.vector_store %arg7[%80, %c48, %c0_49], %83 {strides = array<i32>} : memref<2x256x128xf32, #tpu.memory_space<vmem>>, vector<1x16x128xf32>,
      %84 = vector.extract_strided_slice %29 {offsets = [72, 0], sizes = [16, 128], strides = [1, 1]} : vector<288x128xf32> to vector<16x128xf32>
      %85 = arith.index_cast %arg1 : i32 to index
      %c64 = arith.constant 64 : index
      %c0_50 = arith.constant 0 : index
      %86 = vector.load %arg7[%85, %c64, %c0_50] : memref<2x256x128xf32, #tpu.memory_space<vmem>>, vector<1x16x128xf32>
      %87 = vector.shape_cast %86 : vector<1x16x128xf32> to vector<16x128xf32>
      %88 = vector.shape_cast %84 : vector<16x128xf32> to vector<1x16x128xf32>
      tpu.vector_store %arg7[%85, %c64, %c0_50], %88 {strides = array<i32>} : memref<2x256x128xf32, #tpu.memory_space<vmem>>, vector<1x16x128xf32>,
      %89 = vector.extract_strided_slice %29 {offsets = [90, 0], sizes = [16, 128], strides = [1, 1]} : vector<288x128xf32> to vector<16x128xf32>
      %90 = arith.index_cast %arg1 : i32 to index
      %c80 = arith.constant 80 : index
      %c0_51 = arith.constant 0 : index
      %91 = vector.load %arg7[%90, %c80, %c0_51] : memref<2x256x128xf32, #tpu.memory_space<vmem>>, vector<1x16x128xf32>
      %92 = vector.shape_cast %91 : vector<1x16x128xf32> to vector<16x128xf32>
      %93 = vector.shape_cast %89 : vector<16x128xf32> to vector<1x16x128xf32>
      tpu.vector_store %arg7[%90, %c80, %c0_51], %93 {strides = array<i32>} : memref<2x256x128xf32, #tpu.memory_space<vmem>>, vector<1x16x128xf32>,
      %94 = vector.extract_strided_slice %29 {offsets = [108, 0], sizes = [16, 128], strides = [1, 1]} : vector<288x128xf32> to vector<16x128xf32>
      %95 = arith.index_cast %arg1 : i32 to index
      %c96 = arith.constant 96 : index
      %c0_52 = arith.constant 0 : index
      %96 = vector.load %arg7[%95, %c96, %c0_52] : memref<2x256x128xf32, #tpu.memory_space<vmem>>, vector<1x16x128xf32>
      %97 = vector.shape_cast %96 : vector<1x16x128xf32> to vector<16x128xf32>
      %98 = vector.shape_cast %94 : vector<16x128xf32> to vector<1x16x128xf32>
      tpu.vector_store %arg7[%95, %c96, %c0_52], %98 {strides = array<i32>} : memref<2x256x128xf32, #tpu.memory_space<vmem>>, vector<1x16x128xf32>,
      %99 = vector.extract_strided_slice %29 {offsets = [126, 0], sizes = [16, 128], strides = [1, 1]} : vector<288x128xf32> to vector<16x128xf32>
      %100 = arith.index_cast %arg1 : i32 to index
      %c112 = arith.constant 112 : index
      %c0_53 = arith.constant 0 : index
      %101 = vector.load %arg7[%100, %c112, %c0_53] : memref<2x256x128xf32, #tpu.memory_space<vmem>>, vector<1x16x128xf32>
      %102 = vector.shape_cast %101 : vector<1x16x128xf32> to vector<16x128xf32>
      %103 = vector.shape_cast %99 : vector<16x128xf32> to vector<1x16x128xf32>
      tpu.vector_store %arg7[%100, %c112, %c0_53], %103 {strides = array<i32>} : memref<2x256x128xf32, #tpu.memory_space<vmem>>, vector<1x16x128xf32>,
      %104 = vector.extract_strided_slice %29 {offsets = [144, 0], sizes = [16, 128], strides = [1, 1]} : vector<288x128xf32> to vector<16x128xf32>
      %105 = arith.index_cast %arg1 : i32 to index
      %c128 = arith.constant 128 : index
      %c0_54 = arith.constant 0 : index
      %106 = vector.load %arg7[%105, %c128, %c0_54] : memref<2x256x128xf32, #tpu.memory_space<vmem>>, vector<1x16x128xf32>
      %107 = vector.shape_cast %106 : vector<1x16x128xf32> to vector<16x128xf32>
      %108 = vector.shape_cast %104 : vector<16x128xf32> to vector<1x16x128xf32>
      tpu.vector_store %arg7[%105, %c128, %c0_54], %108 {strides = array<i32>} : memref<2x256x128xf32, #tpu.memory_space<vmem>>, vector<1x16x128xf32>,
      %109 = vector.extract_strided_slice %29 {offsets = [162, 0], sizes = [16, 128], strides = [1, 1]} : vector<288x128xf32> to vector<16x128xf32>
      %110 = arith.index_cast %arg1 : i32 to index
      %c144 = arith.constant 144 : index
      %c0_55 = arith.constant 0 : index
      %111 = vector.load %arg7[%110, %c144, %c0_55] : memref<2x256x128xf32, #tpu.memory_space<vmem>>, vector<1x16x128xf32>
      %112 = vector.shape_cast %111 : vector<1x16x128xf32> to vector<16x128xf32>
      %113 = vector.shape_cast %109 : vector<16x128xf32> to vector<1x16x128xf32>
      tpu.vector_store %arg7[%110, %c144, %c0_55], %113 {strides = array<i32>} : memref<2x256x128xf32, #tpu.memory_space<vmem>>, vector<1x16x128xf32>,
      %114 = vector.extract_strided_slice %29 {offsets = [180, 0], sizes = [16, 128], strides = [1, 1]} : vector<288x128xf32> to vector<16x128xf32>
      %115 = arith.index_cast %arg1 : i32 to index
      %c160 = arith.constant 160 : index
      %c0_56 = arith.constant 0 : index
      %116 = vector.load %arg7[%115, %c160, %c0_56] : memref<2x256x128xf32, #tpu.memory_space<vmem>>, vector<1x16x128xf32>
      %117 = vector.shape_cast %116 : vector<1x16x128xf32> to vector<16x128xf32>
      %118 = vector.shape_cast %114 : vector<16x128xf32> to vector<1x16x128xf32>
      tpu.vector_store %arg7[%115, %c160, %c0_56], %118 {strides = array<i32>} : memref<2x256x128xf32, #tpu.memory_space<vmem>>, vector<1x16x128xf32>,
      %119 = vector.extract_strided_slice %29 {offsets = [198, 0], sizes = [16, 128], strides = [1, 1]} : vector<288x128xf32> to vector<16x128xf32>
      %120 = arith.index_cast %arg1 : i32 to index
      %c176 = arith.constant 176 : index
      %c0_57 = arith.constant 0 : index
      %121 = vector.load %arg7[%120, %c176, %c0_57] : memref<2x256x128xf32, #tpu.memory_space<vmem>>, vector<1x16x128xf32>
      %122 = vector.shape_cast %121 : vector<1x16x128xf32> to vector<16x128xf32>
      %123 = vector.shape_cast %119 : vector<16x128xf32> to vector<1x16x128xf32>
      tpu.vector_store %arg7[%120, %c176, %c0_57], %123 {strides = array<i32>} : memref<2x256x128xf32, #tpu.memory_space<vmem>>, vector<1x16x128xf32>,
      %124 = vector.extract_strided_slice %29 {offsets = [216, 0], sizes = [16, 128], strides = [1, 1]} : vector<288x128xf32> to vector<16x128xf32>
      %125 = arith.index_cast %arg1 : i32 to index
      %c192 = arith.constant 192 : index
      %c0_58 = arith.constant 0 : index
      %126 = vector.load %arg7[%125, %c192, %c0_58] : memref<2x256x128xf32, #tpu.memory_space<vmem>>, vector<1x16x128xf32>
      %127 = vector.shape_cast %126 : vector<1x16x128xf32> to vector<16x128xf32>
      %128 = vector.shape_cast %124 : vector<16x128xf32> to vector<1x16x128xf32>
      tpu.vector_store %arg7[%125, %c192, %c0_58], %128 {strides = array<i32>} : memref<2x256x128xf32, #tpu.memory_space<vmem>>, vector<1x16x128xf32>,
      %129 = vector.extract_strided_slice %29 {offsets = [234, 0], sizes = [16, 128], strides = [1, 1]} : vector<288x128xf32> to vector<16x128xf32>
      %130 = arith.index_cast %arg1 : i32 to index
      %c208 = arith.constant 208 : index
      %c0_59 = arith.constant 0 : index
      %131 = vector.load %arg7[%130, %c208, %c0_59] : memref<2x256x128xf32, #tpu.memory_space<vmem>>, vector<1x16x128xf32>
      %132 = vector.shape_cast %131 : vector<1x16x128xf32> to vector<16x128xf32>
      %133 = vector.shape_cast %129 : vector<16x128xf32> to vector<1x16x128xf32>
      tpu.vector_store %arg7[%130, %c208, %c0_59], %133 {strides = array<i32>} : memref<2x256x128xf32, #tpu.memory_space<vmem>>, vector<1x16x128xf32>,
      %134 = vector.extract_strided_slice %29 {offsets = [252, 0], sizes = [16, 128], strides = [1, 1]} : vector<288x128xf32> to vector<16x128xf32>
      %135 = arith.index_cast %arg1 : i32 to index
      %c224 = arith.constant 224 : index
      %c0_60 = arith.constant 0 : index
      %136 = vector.load %arg7[%135, %c224, %c0_60] : memref<2x256x128xf32, #tpu.memory_space<vmem>>, vector<1x16x128xf32>
      %137 = vector.shape_cast %136 : vector<1x16x128xf32> to vector<16x128xf32>
      %138 = vector.shape_cast %134 : vector<16x128xf32> to vector<1x16x128xf32>
      tpu.vector_store %arg7[%135, %c224, %c0_60], %138 {strides = array<i32>} : memref<2x256x128xf32, #tpu.memory_space<vmem>>, vector<1x16x128xf32>,
      %139 = vector.extract_strided_slice %29 {offsets = [270, 0], sizes = [16, 128], strides = [1, 1]} : vector<288x128xf32> to vector<16x128xf32>
      %140 = arith.index_cast %arg1 : i32 to index
      %c240 = arith.constant 240 : index
      %c0_61 = arith.constant 0 : index
      %141 = vector.load %arg7[%140, %c240, %c0_61] : memref<2x256x128xf32, #tpu.memory_space<vmem>>, vector<1x16x128xf32>
      %142 = vector.shape_cast %141 : vector<1x16x128xf32> to vector<16x128xf32>
      %143 = vector.shape_cast %139 : vector<16x128xf32> to vector<1x16x128xf32>
      tpu.vector_store %arg7[%140, %c240, %c0_61], %143 {strides = array<i32>} : memref<2x256x128xf32, #tpu.memory_space<vmem>>, vector<1x16x128xf32>,
    } else {
    }
    %c1_i32 = arith.constant 1 : i32
    %3 = arith.cmpi eq, %arg0, %c1_i32 : i32
    %4 = arith.extui %3 : i1 to i32
    %c0_i32_1 = arith.constant 0 : i32
    %5 = arith.cmpi ne, %4, %c0_i32_1 : i32
    scf.if %5 {
      %c0_i32_2 = arith.constant 0 : i32
      %6 = arith.cmpi eq, %arg1, %c0_i32_2 : i32
      %7 = arith.extui %6 : i1 to i32
      %c0_i32_3 = arith.constant 0 : i32
      %8 = arith.cmpi ne, %7, %c0_i32_3 : i32
      scf.if %8 {
        %c0_11 = arith.constant 0 : index
        %c0_12 = arith.constant 0 : index
        %21 = vector.load %arg9[%c0_11, %c0_12] : memref<1x128xf32, #tpu.memory_space<vmem>>, vector<1x128xf32>
        %cst_13 = arith.constant 0.001953125 : f32
        %22 = vector.broadcast %cst_13 : f32 to vector<1x128xf32>
        %23 = arith.mulf %21, %22 : vector<1x128xf32>
        %c0_14 = arith.constant 0 : index
        %c0_15 = arith.constant 0 : index
        %24 = vector.load %arg10[%c0_14, %c0_15] : memref<1x128xf32, #tpu.memory_space<vmem>>, vector<1x128xf32>
        %cst_16 = arith.constant 0.001953125 : f32
        %25 = vector.broadcast %cst_16 : f32 to vector<1x128xf32>
        %26 = arith.mulf %24, %25 : vector<1x128xf32>
        %27 = arith.mulf %23, %23 : vector<1x128xf32>
        %28 = arith.subf %26, %27 : vector<1x128xf32>
        %cst_17 = arith.constant 0.000000e+00 : f32
        %29 = vector.broadcast %cst_17 : f32 to vector<1x128xf32>
        %30 = arith.maximumf %28, %29 : vector<1x128xf32>
        %c0_18 = arith.constant 0 : index
        %c0_19 = arith.constant 0 : index
        %31 = vector.load %arg4[%c0_18, %c0_19] : memref<1x128xf32, #tpu.memory_space<vmem>>, vector<1x128xf32>
        %cst_20 = arith.constant 9.99999974E-6 : f32
        %32 = vector.broadcast %cst_20 : f32 to vector<1x128xf32>
        %33 = arith.addf %30, %32 : vector<1x128xf32>
        %34 = math.rsqrt %33 : vector<1x128xf32>
        %35 = arith.mulf %31, %34 : vector<1x128xf32>
        %c0_21 = arith.constant 0 : index
        %c0_22 = arith.constant 0 : index
        %36 = vector.load %arg11[%c0_21, %c0_22] : memref<1x128xf32, #tpu.memory_space<vmem>>, vector<1x128xf32>
        tpu.vector_store %arg11[%c0_21, %c0_22], %35 {strides = array<i32>} : memref<1x128xf32, #tpu.memory_space<vmem>>, vector<1x128xf32>,
        %c0_23 = arith.constant 0 : index
        %c0_24 = arith.constant 0 : index
        %37 = vector.load %arg5[%c0_23, %c0_24] : memref<1x128xf32, #tpu.memory_space<vmem>>, vector<1x128xf32>
        %38 = arith.mulf %23, %35 : vector<1x128xf32>
        %39 = arith.subf %37, %38 : vector<1x128xf32>
        %c0_25 = arith.constant 0 : index
        %c0_26 = arith.constant 0 : index
        %40 = vector.load %arg12[%c0_25, %c0_26] : memref<1x128xf32, #tpu.memory_space<vmem>>, vector<1x128xf32>
        tpu.vector_store %arg12[%c0_25, %c0_26], %39 {strides = array<i32>} : memref<1x128xf32, #tpu.memory_space<vmem>>, vector<1x128xf32>,
      } else {
      }
      %9 = arith.index_cast %arg1 : i32 to index
      %c0 = arith.constant 0 : index
      %c0_4 = arith.constant 0 : index
      %10 = vector.load %arg7[%9, %c0, %c0_4] : memref<2x256x128xf32, #tpu.memory_space<vmem>>, vector<1x256x128xf32>
      %11 = vector.shape_cast %10 : vector<1x256x128xf32> to vector<256x128xf32>
      %c0_5 = arith.constant 0 : index
      %c0_6 = arith.constant 0 : index
      %12 = vector.load %arg11[%c0_5, %c0_6] : memref<1x128xf32, #tpu.memory_space<vmem>>, vector<1x128xf32>
      %13 = vector.broadcast %12 : vector<1x128xf32> to vector<256x128xf32>
      %14 = arith.mulf %11, %13 : vector<256x128xf32>
      %c0_7 = arith.constant 0 : index
      %c0_8 = arith.constant 0 : index
      %15 = vector.load %arg12[%c0_7, %c0_8] : memref<1x128xf32, #tpu.memory_space<vmem>>, vector<1x128xf32>
      %16 = vector.broadcast %15 : vector<1x128xf32> to vector<256x128xf32>
      %17 = arith.addf %14, %16 : vector<256x128xf32>
      %cst = arith.constant 0.000000e+00 : f32
      %18 = vector.broadcast %cst : f32 to vector<256x128xf32>
      %19 = arith.maximumf %17, %18 : vector<256x128xf32>
      %c0_9 = arith.constant 0 : index
      %c0_10 = arith.constant 0 : index
      %20 = vector.load %arg6[%c0_9, %c0_10] : memref<256x128xf32, #tpu.memory_space<vmem>>, vector<256x128xf32>
      tpu.vector_store %arg6[%c0_9, %c0_10], %19 {strides = array<i32>} : memref<256x128xf32, #tpu.memory_space<vmem>>, vector<256x128xf32>,
    } else {
    }
    return
  }
  func.func @transform_0(%arg0: i32, %arg1: i32) -> (i32, i32) {
    %c1_i32 = arith.constant 1 : i32
    %0 = arith.subi %c1_i32, %arg0 : i32
    %1 = arith.muli %arg1, %0 : i32
    %c0_i32 = arith.constant 0 : i32
    %c0_i32_0 = arith.constant 0 : i32
    return %1, %c0_i32 : i32, i32
  }
  func.func @transform_1(%arg0: i32, %arg1: i32) -> (i32, i32) {
    %c0_i32 = arith.constant 0 : i32
    %c0_i32_0 = arith.constant 0 : i32
    %c0_i32_1 = arith.constant 0 : i32
    return %c0_i32, %c0_i32_0 : i32, i32
  }
  func.func @transform_2(%arg0: i32, %arg1: i32) -> (i32, i32) {
    %c0_i32 = arith.constant 0 : i32
    %c0_i32_0 = arith.constant 0 : i32
    %c0_i32_1 = arith.constant 0 : i32
    return %c0_i32, %c0_i32_0 : i32, i32
  }
  func.func @transform_3(%arg0: i32, %arg1: i32) -> (i32, i32) {
    %c0_i32 = arith.constant 0 : i32
    %c0_i32_0 = arith.constant 0 : i32
    %c0_i32_1 = arith.constant 0 : i32
    return %c0_i32, %c0_i32_0 : i32, i32
  }
  func.func @transform_4(%arg0: i32, %arg1: i32) -> (i32, i32) {
    %0 = arith.muli %arg1, %arg0 : i32
    %c0_i32 = arith.constant 0 : i32
    %c0_i32_0 = arith.constant 0 : i32
    return %0, %c0_i32 : i32, i32
  }
}

</mosaic_0001>

<llo_original>
// kernel: conv_bn_relu.1
$region0: #{conv_bn_relu.1}
  #allocation0 [shape = 'u32[]', space=smem, size = 0x4, offset = 0x4, fixed_abs, tag = 'smem constant byte address 0x4 - core index']
  #allocation1 [shape = 'u32[144,128]{1,0:T(1,128)}', space=vmem, size = 0x12000, scoped, tag = 'internal scratch']
  #allocation2 [shape = 'f32[2,256,128]{2,1,0:T(8,128)}', space=vmem, size = 0x40000, scoped, tag = 'scratch operand']
  #allocation3 [shape = 'f32[288,36]{1,0:T(8,128)}', space=vmem, size = 0x24000, scoped, tag = 'scratch operand']
  #allocation4 [shape = 'f32[1,128]{1,0:T(1,128)}', space=vmem, size = 0x200, scoped, tag = 'scratch operand']
  #allocation5 [shape = 'f32[1,128]{1,0:T(1,128)}', space=vmem, size = 0x200, scoped, tag = 'scratch operand']
  #allocation6 [shape = 'f32[1,128]{1,0:T(1,128)}', space=vmem, size = 0x200, scoped, tag = 'scratch operand']
  #allocation7 [shape = 'f32[1,128]{1,0:T(1,128)}', space=vmem, size = 0x200, scoped, tag = 'scratch operand']
  %s0 = inlined_call_operand.vmem [shape: f32[656,4], index: 0, kind: input, shape index: {}]
  %s1 = inlined_call_operand.vmem [shape: f32[36,128], index: 1, kind: input, shape index: {}]
  %s2 = inlined_call_operand.vmem [shape: f32[1,128], index: 2, kind: input, shape index: {}]
  %s3 = inlined_call_operand.vmem [shape: f32[1,128], index: 3, kind: input, shape index: {}]
  %s4 = inlined_call_operand.vmem [shape: f32[512,128], index: 4, kind: output, shape index: {}]
  %s5 = sld [smem:[#allocation0]]
  $region65: #{conv_bn_relu.1} parent=0
    _
  %s7 = ssub.s32 1, %s5
  %s8 = scalar_select 0, %s7, %s5
  loop: start=0, step=1, limit=6
  $region2: #{conv_bn_relu.1} parent=0 // loop_pre_header
    _
  $region3: #{conv_bn_relu.1} parent=0 // loop_header
    %s10 = sphi 0, %s14
    %p11 = scmp.ge.s32.totalorder %s10, 6
    %s17 = sphi 0, %s29
    %s18 = sphi 0, %s25
    %s19 = sphi 0, %s17
    %s20 = sphi 0, %s18
    %s21 = sphi 0, %s19
    %s22 = sphi 0, %s20
    %s36 = sphi 0, %s38
    %s39 = sphi 0, %s36
    %s40 = sphi 0, %s39
    %s56 = sphi 0, %s40
    %s60 = sphi 0, %s60
    %s62 = sphi 0, %s60
    %s63 = sphi 0, %s62
    %s77 = sphi 0, %s63
    %s81 = sphi 0, %s81
    %s83 = sphi 0, %s81
    %s84 = sphi 0, %s83
    %s98 = sphi 0, %s84
    %s102 = sphi 0, %s102
    %s104 = sphi 0, %s102
    %s105 = sphi 0, %s104
    %s119 = sphi 0, %s105
    %s127 = sphi 0, %s129
    %s130 = sphi 0, %s127
    %s131 = sphi 0, %s130
    %s147 = sphi 0, %s131
  $region4: #{conv_bn_relu.1} parent=0 // loop_header_branch
    %13 = sbr.rel (%p11) target = $region8
  $region5: #{conv_bn_relu.1} parent=0 // loop_body
    %s15 = ssub.s32 %s10, 1
    %s16 = ssub.s32 %s10, 2
    %s23 = sadd.s32 1, %s18
    %p24 = scmp.ge.s32.totalorder %s23, 2
    %s25 = scalar_select %p24, 0, %s23
    %s26 = sadd.s32 1, %s17
    %s27 = scalar_select %p24, %s26, %s17
    %p28 = scmp.ge.s32.totalorder %s27, 2
    %s29 = scalar_select %p28, 0, %s27
    %s30 = ssub.s32 1, %s17
    %s31 = smul.u32 %s18, %s30
    %s32 = ssub.s32 1, %s29
    %s33 = smul.u32 %s25, %s32
    %s34 = ssub.s32 %s31, %s33
    %p35 = scmp.eq.s32.totalorder %s34, 0
    %s37 = sadd.s32 %s36, 1
    %s38 = scalar_select %p35, %s36, %s37
    %p41 = pneg %p35
    %p42 = scmp.eq.s32.totalorder %s10, 3
    %p43 = por %p41, %p42
    %p44 = scmp.ne.s32.totalorder %s36, %s39
    %p45 = scmp.eq.s32.totalorder %s10, 0
    %p46 = por %p44, %p45
    %p47 = scmp.ne.s32.totalorder %s36, %s39
    %p48 = scmp.eq.s32.totalorder %s15, 3
    %p49 = por %p47, %p48
    %p50 = scmp.ne.s32.totalorder %s39, %s40
    %p51 = scmp.eq.s32.totalorder %s15, 0
    %p52 = por %p50, %p51
    %p53 = scmp.ne.s32.totalorder %s39, %s40
    %p54 = scmp.eq.s32.totalorder %s16, 3
    %p55 = por %p53, %p54
    %p57 = scmp.ne.s32.totalorder %s40, %s56
    %p58 = scmp.eq.s32.totalorder %s16, 0
    %p59 = por %p57, %p58
    %s61 = sadd.s32 %s60, 1
    %p64 = scmp.eq.s32.totalorder %s10, 3
    %p65 = scmp.ne.s32.totalorder %s60, %s62
    %p66 = scmp.eq.s32.totalorder %s10, 0
    %p67 = por %p65, %p66
    %p68 = scmp.ne.s32.totalorder %s60, %s62
    %p69 = scmp.eq.s32.totalorder %s15, 3
    %p70 = por %p68, %p69
    %p71 = scmp.ne.s32.totalorder %s62, %s63
    %p72 = scmp.eq.s32.totalorder %s15, 0
    %p73 = por %p71, %p72
    %p74 = scmp.ne.s32.totalorder %s62, %s63
    %p75 = scmp.eq.s32.totalorder %s16, 3
    %p76 = por %p74, %p75
    %p78 = scmp.ne.s32.totalorder %s63, %s77
    %p79 = scmp.eq.s32.totalorder %s16, 0
    %p80 = por %p78, %p79
    %s82 = sadd.s32 %s81, 1
    %p85 = scmp.eq.s32.totalorder %s10, 3
    %p86 = scmp.ne.s32.totalorder %s81, %s83
    %p87 = scmp.eq.s32.totalorder %s10, 0
    %p88 = por %p86, %p87
    %p89 = scmp.ne.s32.totalorder %s81, %s83
    %p90 = scmp.eq.s32.totalorder %s15, 3
    %p91 = por %p89, %p90
    %p92 = scmp.ne.s32.totalorder %s83, %s84
    %p93 = scmp.eq.s32.totalorder %s15, 0
    %p94 = por %p92, %p93
    %p95 = scmp.ne.s32.totalorder %s83, %s84
    %p96 = scmp.eq.s32.totalorder %s16, 3
    %p97 = por %p95, %p96
    %p99 = scmp.ne.s32.totalorder %s84, %s98
    %p100 = scmp.eq.s32.totalorder %s16, 0
    %p101 = por %p99, %p100
    %s103 = sadd.s32 %s102, 1
    %p106 = scmp.eq.s32.totalorder %s10, 3
    %p107 = scmp.ne.s32.totalorder %s102, %s104
    %p108 = scmp.eq.s32.totalorder %s10, 0
    %p109 = por %p107, %p108
    %p110 = scmp.ne.s32.totalorder %s102, %s104
    %p111 = scmp.eq.s32.totalorder %s15, 3
    %p112 = por %p110, %p111
    %p113 = scmp.ne.s32.totalorder %s104, %s105
    %p114 = scmp.eq.s32.totalorder %s15, 0
    %p115 = por %p113, %p114
    %p116 = scmp.ne.s32.totalorder %s104, %s105
    %p117 = scmp.eq.s32.totalorder %s16, 3
    %p118 = por %p116, %p117
    %p120 = scmp.ne.s32.totalorder %s105, %s119
    %p121 = scmp.eq.s32.totalorder %s16, 0
    %p122 = por %p120, %p121
    %s123 = smul.u32 %s18, %s17
    %s124 = smul.u32 %s25, %s29
    %s125 = ssub.s32 %s123, %s124
    %p126 = scmp.eq.s32.totalorder %s125, 0
    %s128 = sadd.s32 %s127, 1
    %s129 = scalar_select %p126, %s127, %s128
    %p132 = pneg %p126
    %p133 = scmp.eq.s32.totalorder %s10, 3
    %p134 = por %p132, %p133
    %p135 = scmp.ne.s32.totalorder %s127, %s130
    %p136 = scmp.eq.s32.totalorder %s10, 0
    %p137 = por %p135, %p136
    %p138 = scmp.ne.s32.totalorder %s127, %s130
    %p139 = scmp.eq.s32.totalorder %s15, 3
    %p140 = por %p138, %p139
    %p141 = scmp.ne.s32.totalorder %s130, %s131
    %p142 = scmp.eq.s32.totalorder %s15, 0
    %p143 = por %p141, %p142
    %p144 = scmp.ne.s32.totalorder %s130, %s131
    %p145 = scmp.eq.s32.totalorder %s16, 3
    %p146 = por %p144, %p145
    %p148 = scmp.ne.s32.totalorder %s131, %s147
    %p149 = scmp.eq.s32.totalorder %s16, 0
    %p150 = por %p148, %p149
    %p151 = scmp.le.s32.totalorder 1, %s10
    %p152 = scmp.lt.s32.totalorder %s10, 5
    %p153 = pnand %p151, %p152
    %p154 = pneg %p153
    // Predicated region
    $region9: #{conv_bn_relu.1} parent=5 // pred_check
      _
    $region10: #{conv_bn_relu.1} parent=5 // pred_check_branch
      %156 = sbr.rel (%p153) target = $region12
    $region11: #{conv_bn_relu.1} parent=5 // pred_region
      %s157 = ssub.s32 %s10, 1
      // Predicated region
      $region13: #{conv_bn_relu.1} parent=11 // pred_check
        %p158 = pneg %p73
      $region14: #{conv_bn_relu.1} parent=11 // pred_check_branch
        %160 = sbr.rel (%p158) target = $region16
      $region15: #{conv_bn_relu.1} parent=11 // pred_region
        _
      $region16: #{conv_bn_relu.1} parent=11 // pred_fallthru
        _
      // Predicated region
      $region17: #{conv_bn_relu.1} parent=11 // pred_check
        %p161 = pneg %p94
      $region18: #{conv_bn_relu.1} parent=11 // pred_check_branch
        %163 = sbr.rel (%p161) target = $region20
      $region19: #{conv_bn_relu.1} parent=11 // pred_region
        _
      $region20: #{conv_bn_relu.1} parent=11 // pred_fallthru
        _
      // Predicated region
      $region21: #{conv_bn_relu.1} parent=11 // pred_check
        %p164 = pneg %p115
      $region22: #{conv_bn_relu.1} parent=11 // pred_check_branch
        %166 = sbr.rel (%p164) target = $region24
      $region23: #{conv_bn_relu.1} parent=11 // pred_region
        _
      $region24: #{conv_bn_relu.1} parent=11 // pred_fallthru
        _
    $region12: #{conv_bn_relu.1} parent=5 // pred_fallthru
      _
    %p167 = scmp.lt.s32.totalorder %s10, 4
    // Predicated region
    $region25: #{conv_bn_relu.1} parent=5 // pred_check
      %p168 = pneg %p167
    $region26: #{conv_bn_relu.1} parent=5 // pred_check_branch
      %170 = sbr.rel (%p168) target = $region28
    $region27: #{conv_bn_relu.1} parent=5 // pred_region
      // Predicated region
      $region29: #{conv_bn_relu.1} parent=27 // pred_check
        %p171 = pneg %p46
      $region30: #{conv_bn_relu.1} parent=27 // pred_check_branch
        %173 = sbr.rel (%p171) target = $region32
      $region31: #{conv_bn_relu.1} parent=27 // pred_region
        %s174 = ssub.s32 1, %s17
        %s175 = smul.u32 %s18, %s174
        %s176 = smul.u32 41, %s175
        %p177 = scmp.lt.s32.totalorder %s176, 81
        %s178 = scalar_select %p177, %s176, 81
        %s179 = smul.addr %s178, 8
        %s180 = scalar_lea.vmem %s0, %s179
        %s181 = ssub.s32 1, %s17
        %s182 = smul.u32 %s18, %s181
        %s183 = smul.u32 41, %s182
      $region32: #{conv_bn_relu.1} parent=27 // pred_fallthru
        _
    $region28: #{conv_bn_relu.1} parent=5 // pred_fallthru
      _
    %p184 = scmp.le.s32.totalorder 1, %s10
    %p185 = scmp.lt.s32.totalorder %s10, 5
    %p186 = pnand %p184, %p185
    %p187 = pneg %p186
    // Predicated region
    $region33: #{conv_bn_relu.1} parent=5 // pred_check
      _
    $region34: #{conv_bn_relu.1} parent=5 // pred_check_branch
      %189 = sbr.rel (%p186) target = $region36
    $region35: #{conv_bn_relu.1} parent=5 // pred_region
      %s190 = ssub.s32 %s10, 1
      %s191 = ssub.s32 1, %s19
      %s192 = smul.u32 %s20, %s191
      %s193 = smul.u32 41, %s192
      %p194 = scmp.lt.s32.totalorder %s193, 81
      %s195 = scalar_select %p194, %s193, 81
      %s196 = smul.addr %s195, 8
      %s197 = scalar_lea.vmem %s0, %s196
      %p198 = pneg %p52
      %p199 = pneg %p49
      %p200 = pneg %p73
      %p201 = pneg %p70
      %p202 = pneg %p94
      %p203 = pneg %p91
      %p204 = pneg %p115
      %p205 = pneg %p112
      %p206 = pneg %p143
      %p207 = pneg %p140
      %s208 = smul.u32 %s20, %s19
      %s209 = smul.u32 32, %s208
      %p210 = scmp.lt.s32.totalorder %s209, 63
      %s211 = scalar_select %p210, %s209, 63
      %s212 = smul.addr %s211, 8
      %s213 = scalar_lea.vmem %s4, %s212
      %s214 = ssub.s32 1, %s19
      %s215 = smul.u32 %s20, %s214
      %s216 = smul.u32 41, %s215
      %p217 = scmp.lt.s32.totalorder %s216, 81
      %s218 = scalar_select %p217, %s216, 81
      %s219 = smul.addr %s218, 8
      %s220 = scalar_lea.vmem %s0, %s219
      %s221 = ssub.s32 1, %s19
      %s222 = smul.u32 %s20, %s221
      %s223 = smul.u32 41, %s222
      %s224 = smul.u32 %s20, %s19
      %s225 = smul.u32 32, %s224
      %p226 = scmp.lt.s32.totalorder %s225, 63
      %s227 = scalar_select %p226, %s225, 63
      %s228 = smul.addr %s227, 8
      %s229 = scalar_lea.vmem %s4, %s228
      %s230 = smul.u32 %s20, %s19
      %s231 = smul.u32 32, %s230
      %p232 = scmp.eq.s32.totalorder %s19, 0
      // Predicated region
      $region37: #{conv_bn_relu.1} parent=35 // pred_check
        %p233 = pneg %p232
      $region38: #{conv_bn_relu.1} parent=35 // pred_check_branch
        %235 = sbr.rel (%p233) target = $region40
      $region39: #{conv_bn_relu.1} parent=35 // pred_region
        %p236 = scmp.eq.s32.totalorder %s20, 0
        // Predicated region
        $region41: #{conv_bn_relu.1} parent=39 // pred_check
          %p237 = pneg %p236
        $region42: #{conv_bn_relu.1} parent=39 // pred_check_branch
          %239 = sbr.rel (%p237) target = $region44
        $region43: #{conv_bn_relu.1} parent=39 // pred_region
          %240 = vst [vmem:[#allocation4] sm:$0x1] 0.0
          %241 = vst [vmem:[#allocation5] sm:$0x1] 0.0
        $region44: #{conv_bn_relu.1} parent=39 // pred_fallthru
          _
        %v242 = vld [vmem:[%s220] sm:$0xff]
        %v243 = vld [vmem:[%s220 + $0x8] sm:$0xff]
        %v244 = vld [vmem:[%s220 + $0x10] sm:$0xff]
        %v245 = vld [vmem:[%s220 + $0x18] sm:$0xff]
        %v246 = vld [vmem:[%s220 + $0x20] sm:$0xff]
        %v247 = vld [vmem:[%s220 + $0x28] sm:$0xff]
        %v248 = vld [vmem:[%s220 + $0x30] sm:$0xff]
        %v249 = vld [vmem:[%s220 + $0x38] sm:$0xff]
        %v250 = vld [vmem:[%s220 + $0x40] sm:$0xff]
        %v251 = vld [vmem:[%s220 + $0x48] sm:$0xff]
        %v252 = vld [vmem:[%s220 + $0x50] sm:$0xff]
        %v253 = vld [vmem:[%s220 + $0x58] sm:$0xff]
        %v254 = vld [vmem:[%s220 + $0x60] sm:$0xff]
        %v255 = vld [vmem:[%s220 + $0x68] sm:$0xff]
        %v256 = vld [vmem:[%s220 + $0x70] sm:$0xff]
        %v257 = vld [vmem:[%s220 + $0x78] sm:$0xff]
        %v258 = vld [vmem:[%s220 + $0x80] sm:$0xff]
        %v259 = vld [vmem:[%s220 + $0x88] sm:$0xff]
        %v260 = vld [vmem:[%s220 + $0x90] sm:$0xff]
        %v261 = vld [vmem:[%s220 + $0x98] sm:$0xff]
        %v262 = vld [vmem:[%s220 + $0xa0] sm:$0xff]
        %v263 = vld [vmem:[%s220 + $0xa8] sm:$0xff]
        %v264 = vld [vmem:[%s220 + $0xb0] sm:$0xff]
        %v265 = vld [vmem:[%s220 + $0xb8] sm:$0xff]
        %v266 = vld [vmem:[%s220 + $0xc0] sm:$0xff]
        %v267 = vld [vmem:[%s220 + $0xc8] sm:$0xff]
        %v268 = vld [vmem:[%s220 + $0xd0] sm:$0xff]
        %v269 = vld [vmem:[%s220 + $0xd8] sm:$0xff]
        %v270 = vld [vmem:[%s220 + $0xe0] sm:$0xff]
        %v271 = vld [vmem:[%s220 + $0xe8] sm:$0xff]
        %v272 = vld [vmem:[%s220 + $0xf0] sm:$0xff]
        %v273 = vld [vmem:[%s220 + $0xf8] sm:$0xff]
        %v274 = vld [vmem:[%s220 + $0x100] sm:$0xff]
        %v275 = vld [vmem:[%s220 + $0x108] sm:$0xff]
        %v276 = vld [vmem:[%s220 + $0x110] sm:$0xff]
        %v277 = vld [vmem:[%s220 + $0x118] sm:$0xff]
        %vm278 = vcmask 31744
        %279 = vst.msk [vmem:[#allocation3] sm:$0xff] %vm278, %v242
        %280 = vst.msk [vmem:[#allocation3 + $0x8] sm:$0xff] %vm278, %v243
        %281 = vst.msk [vmem:[#allocation3 + $0x10] sm:$0xff] %vm278, %v244
        %282 = vst.msk [vmem:[#allocation3 + $0x18] sm:$0xff] %vm278, %v245
        %283 = vst.msk [vmem:[#allocation3 + $0x20] sm:$0xff] %vm278, %v246
        %284 = vst.msk [vmem:[#allocation3 + $0x28] sm:$0xff] %vm278, %v247
        %285 = vst.msk [vmem:[#allocation3 + $0x30] sm:$0xff] %vm278, %v248
        %286 = vst.msk [vmem:[#allocation3 + $0x38] sm:$0xff] %vm278, %v249
        %287 = vst.msk [vmem:[#allocation3 + $0x40] sm:$0xff] %vm278, %v250
        %288 = vst.msk [vmem:[#allocation3 + $0x48] sm:$0xff] %vm278, %v251
        %289 = vst.msk [vmem:[#allocation3 + $0x50] sm:$0xff] %vm278, %v252
        %290 = vst.msk [vmem:[#allocation3 + $0x58] sm:$0xff] %vm278, %v253
        %291 = vst.msk [vmem:[#allocation3 + $0x60] sm:$0xff] %vm278, %v254
        %292 = vst.msk [vmem:[#allocation3 + $0x68] sm:$0xff] %vm278, %v255
        %293 = vst.msk [vmem:[#allocation3 + $0x70] sm:$0xff] %vm278, %v256
        %294 = vst.msk [vmem:[#allocation3 + $0x78] sm:$0xff] %vm278, %v257
        %295 = vst.msk [vmem:[#allocation3 + $0x80] sm:$0xff] %vm278, %v258
        %296 = vst.msk [vmem:[#allocation3 + $0x88] sm:$0xff] %vm278, %v259
        %297 = vst.msk [vmem:[#allocation3 + $0x90] sm:$0xff] %vm278, %v260
        %298 = vst.msk [vmem:[#allocation3 + $0x98] sm:$0xff] %vm278, %v261
        %299 = vst.msk [vmem:[#allocation3 + $0xa0] sm:$0xff] %vm278, %v262
        %300 = vst.msk [vmem:[#allocation3 + $0xa8] sm:$0xff] %vm278, %v263
        %301 = vst.msk [vmem:[#allocation3 + $0xb0] sm:$0xff] %vm278, %v264
        %302 = vst.msk [vmem:[#allocation3 + $0xb8] sm:$0xff] %vm278, %v265
        %303 = vst.msk [vmem:[#allocation3 + $0xc0] sm:$0xff] %vm278, %v266
        %304 = vst.msk [vmem:[#allocation3 + $0xc8] sm:$0xff] %vm278, %v267
        %305 = vst.msk [vmem:[#allocation3 + $0xd0] sm:$0xff] %vm278, %v268
        %306 = vst.msk [vmem:[#allocation3 + $0xd8] sm:$0xff] %vm278, %v269
        %307 = vst.msk [vmem:[#allocation3 + $0xe0] sm:$0xff] %vm278, %v270
        %308 = vst.msk [vmem:[#allocation3 + $0xe8] sm:$0xff] %vm278, %v271
        %309 = vst.msk [vmem:[#allocation3 + $0xf0] sm:$0xff] %vm278, %v272
        %310 = vst.msk [vmem:[#allocation3 + $0xf8] sm:$0xff] %vm278, %v273
        %311 = vst.msk [vmem:[#allocation3 + $0x100] sm:$0xff] %vm278, %v274
        %312 = vst.msk [vmem:[#allocation3 + $0x108] sm:$0xff] %vm278, %v275
        %313 = vst.msk [vmem:[#allocation3 + $0x110] sm:$0xff] %vm278, %v276
        %314 = vst.msk [vmem:[#allocation3 + $0x118] sm:$0xff] %vm278, %v277
        %v315 = vld [vmem:[%s220 + $0x1] sm:$0xff]
        %v316 = vld [vmem:[%s220 + $0x9] sm:$0xff]
        %v317 = vld [vmem:[%s220 + $0x11] sm:$0xff]
        %v318 = vld [vmem:[%s220 + $0x19] sm:$0xff]
        %v319 = vld [vmem:[%s220 + $0x21] sm:$0xff]
        %v320 = vld [vmem:[%s220 + $0x29] sm:$0xff]
        %v321 = vld [vmem:[%s220 + $0x31] sm:$0xff]
        %v322 = vld [vmem:[%s220 + $0x39] sm:$0xff]
        %v323 = vld [vmem:[%s220 + $0x41] sm:$0xff]
        %v324 = vld [vmem:[%s220 + $0x49] sm:$0xff]
        %v325 = vld [vmem:[%s220 + $0x51] sm:$0xff]
        %v326 = vld [vmem:[%s220 + $0x59] sm:$0xff]
        %v327 = vld [vmem:[%s220 + $0x61] sm:$0xff]
        %v328 = vld [vmem:[%s220 + $0x69] sm:$0xff]
        %v329 = vld [vmem:[%s220 + $0x71] sm:$0xff]
        %v330 = vld [vmem:[%s220 + $0x79] sm:$0xff]
        %v331 = vld [vmem:[%s220 + $0x81] sm:$0xff]
        %v332 = vld [vmem:[%s220 + $0x89] sm:$0xff]
        %v333 = vld [vmem:[%s220 + $0x91] sm:$0xff]
        %v334 = vld [vmem:[%s220 + $0x99] sm:$0xff]
        %v335 = vld [vmem:[%s220 + $0xa1] sm:$0xff]
        %v336 = vld [vmem:[%s220 + $0xa9] sm:$0xff]
        %v337 = vld [vmem:[%s220 + $0xb1] sm:$0xff]
        %v338 = vld [vmem:[%s220 + $0xb9] sm:$0xff]
        %v339 = vld [vmem:[%s220 + $0xc1] sm:$0xff]
        %v340 = vld [vmem:[%s220 + $0xc9] sm:$0xff]
        %v341 = vld [vmem:[%s220 + $0xd1] sm:$0xff]
        %v342 = vld [vmem:[%s220 + $0xd9] sm:$0xff]
        %v343 = vld [vmem:[%s220 + $0xe1] sm:$0xff]
        %v344 = vld [vmem:[%s220 + $0xe9] sm:$0xff]
        %v345 = vld [vmem:[%s220 + $0xf1] sm:$0xff]
        %v346 = vld [vmem:[%s220 + $0xf9] sm:$0xff]
        %v347 = vld [vmem:[%s220 + $0x101] sm:$0xff]
        %v348 = vld [vmem:[%s220 + $0x109] sm:$0xff]
        %v349 = vld [vmem:[%s220 + $0x111] sm:$0xff]
        %v350 = vld [vmem:[%s220 + $0x119] sm:$0xff]
        %387 = vrot.lane.b32.xlu0 %v315, 4
        %v388 = vpop.permute.xlu0 %387
        %389 = vrot.lane.b32.xlu0 %v316, 4
        %v390 = vpop.permute.xlu0 %389
        %391 = vrot.lane.b32.xlu0 %v317, 4
        %v392 = vpop.permute.xlu0 %391
        %393 = vrot.lane.b32.xlu0 %v318, 4
        %v394 = vpop.permute.xlu0 %393
        %395 = vrot.lane.b32.xlu0 %v319, 4
        %v396 = vpop.permute.xlu0 %395
        %397 = vrot.lane.b32.xlu0 %v320, 4
        %v398 = vpop.permute.xlu0 %397
        %399 = vrot.lane.b32.xlu0 %v321, 4
        %v400 = vpop.permute.xlu0 %399
        %401 = vrot.lane.b32.xlu0 %v322, 4
        %v402 = vpop.permute.xlu0 %401
        %403 = vrot.lane.b32.xlu0 %v323, 4
        %v404 = vpop.permute.xlu0 %403
        %405 = vrot.lane.b32.xlu0 %v324, 4
        %v406 = vpop.permute.xlu0 %405
        %407 = vrot.lane.b32.xlu0 %v325, 4
        %v408 = vpop.permute.xlu0 %407
        %409 = vrot.lane.b32.xlu0 %v326, 4
        %v410 = vpop.permute.xlu0 %409
        %411 = vrot.lane.b32.xlu0 %v327, 4
        %v412 = vpop.permute.xlu0 %411
        %413 = vrot.lane.b32.xlu0 %v328, 4
        %v414 = vpop.permute.xlu0 %413
        %415 = vrot.lane.b32.xlu0 %v329, 4
        %v416 = vpop.permute.xlu0 %415
        %417 = vrot.lane.b32.xlu0 %v330, 4
        %v418 = vpop.permute.xlu0 %417
        %419 = vrot.lane.b32.xlu0 %v331, 4
        %v420 = vpop.permute.xlu0 %419
        %421 = vrot.lane.b32.xlu0 %v332, 4
        %v422 = vpop.permute.xlu0 %421
        %423 = vrot.lane.b32.xlu0 %v333, 4
        %v424 = vpop.permute.xlu0 %423
        %425 = vrot.lane.b32.xlu0 %v334, 4
        %v426 = vpop.permute.xlu0 %425
        %427 = vrot.lane.b32.xlu0 %v335, 4
        %v428 = vpop.permute.xlu0 %427
        %429 = vrot.lane.b32.xlu0 %v336, 4
        %v430 = vpop.permute.xlu0 %429
        %431 = vrot.lane.b32.xlu0 %v337, 4
        %v432 = vpop.permute.xlu0 %431
        %433 = vrot.lane.b32.xlu0 %v338, 4
        %v434 = vpop.permute.xlu0 %433
        %435 = vrot.lane.b32.xlu0 %v339, 4
        %v436 = vpop.permute.xlu0 %435
        %437 = vrot.lane.b32.xlu0 %v340, 4
        %v438 = vpop.permute.xlu0 %437
        %439 = vrot.lane.b32.xlu0 %v341, 4
        %v440 = vpop.permute.xlu0 %439
        %441 = vrot.lane.b32.xlu0 %v342, 4
        %v442 = vpop.permute.xlu0 %441
        %443 = vrot.lane.b32.xlu0 %v343, 4
        %v444 = vpop.permute.xlu0 %443
        %445 = vrot.lane.b32.xlu0 %v344, 4
        %v446 = vpop.permute.xlu0 %445
        %447 = vrot.lane.b32.xlu0 %v345, 4
        %v448 = vpop.permute.xlu0 %447
        %449 = vrot.lane.b32.xlu0 %v346, 4
        %v450 = vpop.permute.xlu0 %449
        %451 = vrot.lane.b32.xlu0 %v347, 4
        %v452 = vpop.permute.xlu0 %451
        %453 = vrot.lane.b32.xlu0 %v348, 4
        %v454 = vpop.permute.xlu0 %453
        %455 = vrot.lane.b32.xlu0 %v349, 4
        %v456 = vpop.permute.xlu0 %455
        %457 = vrot.lane.b32.xlu0 %v350, 4
        %v458 = vpop.permute.xlu0 %457
        %vm495 = vcmask 64544
        %496 = vst.msk [vmem:[#allocation3] sm:$0xff] %vm495, %v388
        %497 = vst.msk [vmem:[#allocation3 + $0x8] sm:$0xff] %vm495, %v390
        %498 = vst.msk [vmem:[#allocation3 + $0x10] sm:$0xff] %vm495, %v392
        %499 = vst.msk [vmem:[#allocation3 + $0x18] sm:$0xff] %vm495, %v394
        %500 = vst.msk [vmem:[#allocation3 + $0x20] sm:$0xff] %vm495, %v396
        %501 = vst.msk [vmem:[#allocation3 + $0x28] sm:$0xff] %vm495, %v398
        %502 = vst.msk [vmem:[#allocation3 + $0x30] sm:$0xff] %vm495, %v400
        %503 = vst.msk [vmem:[#allocation3 + $0x38] sm:$0xff] %vm495, %v402
        %504 = vst.msk [vmem:[#allocation3 + $0x40] sm:$0xff] %vm495, %v404
        %505 = vst.msk [vmem:[#allocation3 + $0x48] sm:$0xff] %vm495, %v406
        %506 = vst.msk [vmem:[#allocation3 + $0x50] sm:$0xff] %vm495, %v408
        %507 = vst.msk [vmem:[#allocation3 + $0x58] sm:$0xff] %vm495, %v410
        %508 = vst.msk [vmem:[#allocation3 + $0x60] sm:$0xff] %vm495, %v412
        %509 = vst.msk [vmem:[#allocation3 + $0x68] sm:$0xff] %vm495, %v414
        %510 = vst.msk [vmem:[#allocation3 + $0x70] sm:$0xff] %vm495, %v416
        %511 = vst.msk [vmem:[#allocation3 + $0x78] sm:$0xff] %vm495, %v418
        %512 = vst.msk [vmem:[#allocation3 + $0x80] sm:$0xff] %vm495, %v420
        %513 = vst.msk [vmem:[#allocation3 + $0x88] sm:$0xff] %vm495, %v422
        %514 = vst.msk [vmem:[#allocation3 + $0x90] sm:$0xff] %vm495, %v424
        %515 = vst.msk [vmem:[#allocation3 + $0x98] sm:$0xff] %vm495, %v426
        %516 = vst.msk [vmem:[#allocation3 + $0xa0] sm:$0xff] %vm495, %v428
        %517 = vst.msk [vmem:[#allocation3 + $0xa8] sm:$0xff] %vm495, %v430
        %518 = vst.msk [vmem:[#allocation3 + $0xb0] sm:$0xff] %vm495, %v432
        %519 = vst.msk [vmem:[#allocation3 + $0xb8] sm:$0xff] %vm495, %v434
        %520 = vst.msk [vmem:[#allocation3 + $0xc0] sm:$0xff] %vm495, %v436
        %521 = vst.msk [vmem:[#allocation3 + $0xc8] sm:$0xff] %vm495, %v438
        %522 = vst.msk [vmem:[#allocation3 + $0xd0] sm:$0xff] %vm495, %v440
        %523 = vst.msk [vmem:[#allocation3 + $0xd8] sm:$0xff] %vm495, %v442
        %524 = vst.msk [vmem:[#allocation3 + $0xe0] sm:$0xff] %vm495, %v444
        %525 = vst.msk [vmem:[#allocation3 + $0xe8] sm:$0xff] %vm495, %v446
        %526 = vst.msk [vmem:[#allocation3 + $0xf0] sm:$0xff] %vm495, %v448
        %527 = vst.msk [vmem:[#allocation3 + $0xf8] sm:$0xff] %vm495, %v450
        %528 = vst.msk [vmem:[#allocation3 + $0x100] sm:$0xff] %vm495, %v452
        %529 = vst.msk [vmem:[#allocation3 + $0x108] sm:$0xff] %vm495, %v454
        %530 = vst.msk [vmem:[#allocation3 + $0x110] sm:$0xff] %vm495, %v456
        %531 = vst.msk [vmem:[#allocation3 + $0x118] sm:$0xff] %vm495, %v458
        %v532 = vld [vmem:[%s220 + $0x2] sm:$0xff]
        %v533 = vld [vmem:[%s220 + $0xa] sm:$0xff]
        %v534 = vld [vmem:[%s220 + $0x12] sm:$0xff]
        %v535 = vld [vmem:[%s220 + $0x1a] sm:$0xff]
        %v536 = vld [vmem:[%s220 + $0x22] sm:$0xff]
        %v537 = vld [vmem:[%s220 + $0x2a] sm:$0xff]
        %v538 = vld [vmem:[%s220 + $0x32] sm:$0xff]
        %v539 = vld [vmem:[%s220 + $0x3a] sm:$0xff]
        %v540 = vld [vmem:[%s220 + $0x42] sm:$0xff]
        %v541 = vld [vmem:[%s220 + $0x4a] sm:$0xff]
        %v542 = vld [vmem:[%s220 + $0x52] sm:$0xff]
        %v543 = vld [vmem:[%s220 + $0x5a] sm:$0xff]
        %v544 = vld [vmem:[%s220 + $0x62] sm:$0xff]
        %v545 = vld [vmem:[%s220 + $0x6a] sm:$0xff]
        %v546 = vld [vmem:[%s220 + $0x72] sm:$0xff]
        %v547 = vld [vmem:[%s220 + $0x7a] sm:$0xff]
        %v548 = vld [vmem:[%s220 + $0x82] sm:$0xff]
        %v549 = vld [vmem:[%s220 + $0x8a] sm:$0xff]
        %v550 = vld [vmem:[%s220 + $0x92] sm:$0xff]
        %v551 = vld [vmem:[%s220 + $0x9a] sm:$0xff]
        %v552 = vld [vmem:[%s220 + $0xa2] sm:$0xff]
        %v553 = vld [vmem:[%s220 + $0xaa] sm:$0xff]
        %v554 = vld [vmem:[%s220 + $0xb2] sm:$0xff]
        %v555 = vld [vmem:[%s220 + $0xba] sm:$0xff]
        %v556 = vld [vmem:[%s220 + $0xc2] sm:$0xff]
        %v557 = vld [vmem:[%s220 + $0xca] sm:$0xff]
        %v558 = vld [vmem:[%s220 + $0xd2] sm:$0xff]
        %v559 = vld [vmem:[%s220 + $0xda] sm:$0xff]
        %v560 = vld [vmem:[%s220 + $0xe2] sm:$0xff]
        %v561 = vld [vmem:[%s220 + $0xea] sm:$0xff]
        %v562 = vld [vmem:[%s220 + $0xf2] sm:$0xff]
        %v563 = vld [vmem:[%s220 + $0xfa] sm:$0xff]
        %v564 = vld [vmem:[%s220 + $0x102] sm:$0xff]
        %v565 = vld [vmem:[%s220 + $0x10a] sm:$0xff]
        %v566 = vld [vmem:[%s220 + $0x112] sm:$0xff]
        %v567 = vld [vmem:[%s220 + $0x11a] sm:$0xff]
        %604 = vrot.lane.b32.xlu0 %v532, 8
        %v605 = vpop.permute.xlu0 %604
        %606 = vrot.lane.b32.xlu0 %v533, 8
        %v607 = vpop.permute.xlu0 %606
        %608 = vrot.lane.b32.xlu0 %v534, 8
        %v609 = vpop.permute.xlu0 %608
        %610 = vrot.lane.b32.xlu0 %v535, 8
        %v611 = vpop.permute.xlu0 %610
        %612 = vrot.lane.b32.xlu0 %v536, 8
        %v613 = vpop.permute.xlu0 %612
        %614 = vrot.lane.b32.xlu0 %v537, 8
        %v615 = vpop.permute.xlu0 %614
        %616 = vrot.lane.b32.xlu0 %v538, 8
        %v617 = vpop.permute.xlu0 %616
        %618 = vrot.lane.b32.xlu0 %v539, 8
        %v619 = vpop.permute.xlu0 %618
        %620 = vrot.lane.b32.xlu0 %v540, 8
        %v621 = vpop.permute.xlu0 %620
        %622 = vrot.lane.b32.xlu0 %v541, 8
        %v623 = vpop.permute.xlu0 %622
        %624 = vrot.lane.b32.xlu0 %v542, 8
        %v625 = vpop.permute.xlu0 %624
        %626 = vrot.lane.b32.xlu0 %v543, 8
        %v627 = vpop.permute.xlu0 %626
        %628 = vrot.lane.b32.xlu0 %v544, 8
        %v629 = vpop.permute.xlu0 %628
        %630 = vrot.lane.b32.xlu0 %v545, 8
        %v631 = vpop.permute.xlu0 %630
        %632 = vrot.lane.b32.xlu0 %v546, 8
        %v633 = vpop.permute.xlu0 %632
        %634 = vrot.lane.b32.xlu0 %v547, 8
        %v635 = vpop.permute.xlu0 %634
        %636 = vrot.lane.b32.xlu0 %v548, 8
        %v637 = vpop.permute.xlu0 %636
        %638 = vrot.lane.b32.xlu0 %v549, 8
        %v639 = vpop.permute.xlu0 %638
        %640 = vrot.lane.b32.xlu0 %v550, 8
        %v641 = vpop.permute.xlu0 %640
        %642 = vrot.lane.b32.xlu0 %v551, 8
        %v643 = vpop.permute.xlu0 %642
        %644 = vrot.lane.b32.xlu0 %v552, 8
        %v645 = vpop.permute.xlu0 %644
        %646 = vrot.lane.b32.xlu0 %v553, 8
        %v647 = vpop.permute.xlu0 %646
        %648 = vrot.lane.b32.xlu0 %v554, 8
        %v649 = vpop.permute.xlu0 %648
        %650 = vrot.lane.b32.xlu0 %v555, 8
        %v651 = vpop.permute.xlu0 %650
        %652 = vrot.lane.b32.xlu0 %v556, 8
        %v653 = vpop.permute.xlu0 %652
        %654 = vrot.lane.b32.xlu0 %v557, 8
        %v655 = vpop.permute.xlu0 %654
        %656 = vrot.lane.b32.xlu0 %v558, 8
        %v657 = vpop.permute.xlu0 %656
        %658 = vrot.lane.b32.xlu0 %v559, 8
        %v659 = vpop.permute.xlu0 %658
        %660 = vrot.lane.b32.xlu0 %v560, 8
        %v661 = vpop.permute.xlu0 %660
        %662 = vrot.lane.b32.xlu0 %v561, 8
        %v663 = vpop.permute.xlu0 %662
        %664 = vrot.lane.b32.xlu0 %v562, 8
        %v665 = vpop.permute.xlu0 %664
        %666 = vrot.lane.b32.xlu0 %v563, 8
        %v667 = vpop.permute.xlu0 %666
        %668 = vrot.lane.b32.xlu0 %v564, 8
        %v669 = vpop.permute.xlu0 %668
        %670 = vrot.lane.b32.xlu0 %v565, 8
        %v671 = vpop.permute.xlu0 %670
        %672 = vrot.lane.b32.xlu0 %v566, 8
        %v673 = vpop.permute.xlu0 %672
        %674 = vrot.lane.b32.xlu0 %v567, 8
        %v675 = vpop.permute.xlu0 %674
        %vm712 = vcmask 97344
        %713 = vst.msk [vmem:[#allocation3] sm:$0xff] %vm712, %v605
        %714 = vst.msk [vmem:[#allocation3 + $0x8] sm:$0xff] %vm712, %v607
        %715 = vst.msk [vmem:[#allocation3 + $0x10] sm:$0xff] %vm712, %v609
        %716 = vst.msk [vmem:[#allocation3 + $0x18] sm:$0xff] %vm712, %v611
        %717 = vst.msk [vmem:[#allocation3 + $0x20] sm:$0xff] %vm712, %v613
        %718 = vst.msk [vmem:[#allocation3 + $0x28] sm:$0xff] %vm712, %v615
        %719 = vst.msk [vmem:[#allocation3 + $0x30] sm:$0xff] %vm712, %v617
        %720 = vst.msk [vmem:[#allocation3 + $0x38] sm:$0xff] %vm712, %v619
        %721 = vst.msk [vmem:[#allocation3 + $0x40] sm:$0xff] %vm712, %v621
        %722 = vst.msk [vmem:[#allocation3 + $0x48] sm:$0xff] %vm712, %v623
        %723 = vst.msk [vmem:[#allocation3 + $0x50] sm:$0xff] %vm712, %v625
        %724 = vst.msk [vmem:[#allocation3 + $0x58] sm:$0xff] %vm712, %v627
        %725 = vst.msk [vmem:[#allocation3 + $0x60] sm:$0xff] %vm712, %v629
        %726 = vst.msk [vmem:[#allocation3 + $0x68] sm:$0xff] %vm712, %v631
        %727 = vst.msk [vmem:[#allocation3 + $0x70] sm:$0xff] %vm712, %v633
        %728 = vst.msk [vmem:[#allocation3 + $0x78] sm:$0xff] %vm712, %v635
        %729 = vst.msk [vmem:[#allocation3 + $0x80] sm:$0xff] %vm712, %v637
        %730 = vst.msk [vmem:[#allocation3 + $0x88] sm:$0xff] %vm712, %v639
        %731 = vst.msk [vmem:[#allocation3 + $0x90] sm:$0xff] %vm712, %v641
        %732 = vst.msk [vmem:[#allocation3 + $0x98] sm:$0xff] %vm712, %v643
        %733 = vst.msk [vmem:[#allocation3 + $0xa0] sm:$0xff] %vm712, %v645
        %734 = vst.msk [vmem:[#allocation3 + $0xa8] sm:$0xff] %vm712, %v647
        %735 = vst.msk [vmem:[#allocation3 + $0xb0] sm:$0xff] %vm712, %v649
        %736 = vst.msk [vmem:[#allocation3 + $0xb8] sm:$0xff] %vm712, %v651
        %737 = vst.msk [vmem:[#allocation3 + $0xc0] sm:$0xff] %vm712, %v653
        %738 = vst.msk [vmem:[#allocation3 + $0xc8] sm:$0xff] %vm712, %v655
        %739 = vst.msk [vmem:[#allocation3 + $0xd0] sm:$0xff] %vm712, %v657
        %740 = vst.msk [vmem:[#allocation3 + $0xd8] sm:$0xff] %vm712, %v659
        %741 = vst.msk [vmem:[#allocation3 + $0xe0] sm:$0xff] %vm712, %v661
        %742 = vst.msk [vmem:[#allocation3 + $0xe8] sm:$0xff] %vm712, %v663
        %743 = vst.msk [vmem:[#allocation3 + $0xf0] sm:$0xff] %vm712, %v665
        %744 = vst.msk [vmem:[#allocation3 + $0xf8] sm:$0xff] %vm712, %v667
        %745 = vst.msk [vmem:[#allocation3 + $0x100] sm:$0xff] %vm712, %v669
        %746 = vst.msk [vmem:[#allocation3 + $0x108] sm:$0xff] %vm712, %v671
        %747 = vst.msk [vmem:[#allocation3 + $0x110] sm:$0xff] %vm712, %v673
        %748 = vst.msk [vmem:[#allocation3 + $0x118] sm:$0xff] %vm712, %v675
        %v749 = vld [vmem:[%s220 + $0x12] sm:$0xff]
        %v750 = vld [vmem:[%s220 + $0x1a] sm:$0xff]
        %v751 = vld [vmem:[%s220 + $0x22] sm:$0xff]
        %v752 = vld [vmem:[%s220 + $0x2a] sm:$0xff]
        %v753 = vld [vmem:[%s220 + $0x32] sm:$0xff]
        %v754 = vld [vmem:[%s220 + $0x3a] sm:$0xff]
        %v755 = vld [vmem:[%s220 + $0x42] sm:$0xff]
        %v756 = vld [vmem:[%s220 + $0x4a] sm:$0xff]
        %v757 = vld [vmem:[%s220 + $0x52] sm:$0xff]
        %v758 = vld [vmem:[%s220 + $0x5a] sm:$0xff]
        %v759 = vld [vmem:[%s220 + $0x62] sm:$0xff]
        %v760 = vld [vmem:[%s220 + $0x6a] sm:$0xff]
        %v761 = vld [vmem:[%s220 + $0x72] sm:$0xff]
        %v762 = vld [vmem:[%s220 + $0x7a] sm:$0xff]
        %v763 = vld [vmem:[%s220 + $0x82] sm:$0xff]
        %v764 = vld [vmem:[%s220 + $0x8a] sm:$0xff]
        %v765 = vld [vmem:[%s220 + $0x92] sm:$0xff]
        %v766 = vld [vmem:[%s220 + $0x9a] sm:$0xff]
        %v767 = vld [vmem:[%s220 + $0xa2] sm:$0xff]
        %v768 = vld [vmem:[%s220 + $0xaa] sm:$0xff]
        %v769 = vld [vmem:[%s220 + $0xb2] sm:$0xff]
        %v770 = vld [vmem:[%s220 + $0xba] sm:$0xff]
        %v771 = vld [vmem:[%s220 + $0xc2] sm:$0xff]
        %v772 = vld [vmem:[%s220 + $0xca] sm:$0xff]
        %v773 = vld [vmem:[%s220 + $0xd2] sm:$0xff]
        %v774 = vld [vmem:[%s220 + $0xda] sm:$0xff]
        %v775 = vld [vmem:[%s220 + $0xe2] sm:$0xff]
        %v776 = vld [vmem:[%s220 + $0xea] sm:$0xff]
        %v777 = vld [vmem:[%s220 + $0xf2] sm:$0xff]
        %v778 = vld [vmem:[%s220 + $0xfa] sm:$0xff]
        %v779 = vld [vmem:[%s220 + $0x102] sm:$0xff]
        %v780 = vld [vmem:[%s220 + $0x10a] sm:$0xff]
        %v781 = vld [vmem:[%s220 + $0x112] sm:$0xff]
        %v782 = vld [vmem:[%s220 + $0x11a] sm:$0xff]
        %v783 = vld [vmem:[%s220 + $0x122] sm:$0xff]
        %v784 = vld [vmem:[%s220 + $0x12a] sm:$0xff]
        %821 = vrot.lane.b32.xlu0 %v749, 12
        %v822 = vpop.permute.xlu0 %821
        %823 = vrot.lane.b32.xlu0 %v750, 12
        %v824 = vpop.permute.xlu0 %823
        %825 = vrot.lane.b32.xlu0 %v751, 12
        %v826 = vpop.permute.xlu0 %825
        %827 = vrot.lane.b32.xlu0 %v752, 12
        %v828 = vpop.permute.xlu0 %827
        %829 = vrot.lane.b32.xlu0 %v753, 12
        %v830 = vpop.permute.xlu0 %829
        %831 = vrot.lane.b32.xlu0 %v754, 12
        %v832 = vpop.permute.xlu0 %831
        %833 = vrot.lane.b32.xlu0 %v755, 12
        %v834 = vpop.permute.xlu0 %833
        %835 = vrot.lane.b32.xlu0 %v756, 12
        %v836 = vpop.permute.xlu0 %835
        %837 = vrot.lane.b32.xlu0 %v757, 12
        %v838 = vpop.permute.xlu0 %837
        %839 = vrot.lane.b32.xlu0 %v758, 12
        %v840 = vpop.permute.xlu0 %839
        %841 = vrot.lane.b32.xlu0 %v759, 12
        %v842 = vpop.permute.xlu0 %841
        %843 = vrot.lane.b32.xlu0 %v760, 12
        %v844 = vpop.permute.xlu0 %843
        %845 = vrot.lane.b32.xlu0 %v761, 12
        %v846 = vpop.permute.xlu0 %845
        %847 = vrot.lane.b32.xlu0 %v762, 12
        %v848 = vpop.permute.xlu0 %847
        %849 = vrot.lane.b32.xlu0 %v763, 12
        %v850 = vpop.permute.xlu0 %849
        %851 = vrot.lane.b32.xlu0 %v764, 12
        %v852 = vpop.permute.xlu0 %851
        %853 = vrot.lane.b32.xlu0 %v765, 12
        %v854 = vpop.permute.xlu0 %853
        %855 = vrot.lane.b32.xlu0 %v766, 12
        %v856 = vpop.permute.xlu0 %855
        %857 = vrot.lane.b32.xlu0 %v767, 12
        %v858 = vpop.permute.xlu0 %857
        %859 = vrot.lane.b32.xlu0 %v768, 12
        %v860 = vpop.permute.xlu0 %859
        %861 = vrot.lane.b32.xlu0 %v769, 12
        %v862 = vpop.permute.xlu0 %861
        %863 = vrot.lane.b32.xlu0 %v770, 12
        %v864 = vpop.permute.xlu0 %863
        %865 = vrot.lane.b32.xlu0 %v771, 12
        %v866 = vpop.permute.xlu0 %865
        %867 = vrot.lane.b32.xlu0 %v772, 12
        %v868 = vpop.permute.xlu0 %867
        %869 = vrot.lane.b32.xlu0 %v773, 12
        %v870 = vpop.permute.xlu0 %869
        %871 = vrot.lane.b32.xlu0 %v774, 12
        %v872 = vpop.permute.xlu0 %871
        %873 = vrot.lane.b32.xlu0 %v775, 12
        %v874 = vpop.permute.xlu0 %873
        %875 = vrot.lane.b32.xlu0 %v776, 12
        %v876 = vpop.permute.xlu0 %875
        %877 = vrot.lane.b32.xlu0 %v777, 12
        %v878 = vpop.permute.xlu0 %877
        %879 = vrot.lane.b32.xlu0 %v778, 12
        %v880 = vpop.permute.xlu0 %879
        %881 = vrot.lane.b32.xlu0 %v779, 12
        %v882 = vpop.permute.xlu0 %881
        %883 = vrot.lane.b32.xlu0 %v780, 12
        %v884 = vpop.permute.xlu0 %883
        %885 = vrot.lane.b32.xlu0 %v781, 12
        %v886 = vpop.permute.xlu0 %885
        %887 = vrot.lane.b32.xlu0 %v782, 12
        %v888 = vpop.permute.xlu0 %887
        %889 = vrot.lane.b32.xlu0 %v783, 12
        %v890 = vpop.permute.xlu0 %889
        %891 = vrot.lane.b32.xlu0 %v784, 12
        %v892 = vpop.permute.xlu0 %891
        %vm929 = vcmask 130144
        %930 = vst.msk [vmem:[#allocation3] sm:$0xff] %vm929, %v822
        %931 = vst.msk [vmem:[#allocation3 + $0x8] sm:$0xff] %vm929, %v824
        %932 = vst.msk [vmem:[#allocation3 + $0x10] sm:$0xff] %vm929, %v826
        %933 = vst.msk [vmem:[#allocation3 + $0x18] sm:$0xff] %vm929, %v828
        %934 = vst.msk [vmem:[#allocation3 + $0x20] sm:$0xff] %vm929, %v830
        %935 = vst.msk [vmem:[#allocation3 + $0x28] sm:$0xff] %vm929, %v832
        %936 = vst.msk [vmem:[#allocation3 + $0x30] sm:$0xff] %vm929, %v834
        %937 = vst.msk [vmem:[#allocation3 + $0x38] sm:$0xff] %vm929, %v836
        %938 = vst.msk [vmem:[#allocation3 + $0x40] sm:$0xff] %vm929, %v838
        %939 = vst.msk [vmem:[#allocation3 + $0x48] sm:$0xff] %vm929, %v840
        %940 = vst.msk [vmem:[#allocation3 + $0x50] sm:$0xff] %vm929, %v842
        %941 = vst.msk [vmem:[#allocation3 + $0x58] sm:$0xff] %vm929, %v844
        %942 = vst.msk [vmem:[#allocation3 + $0x60] sm:$0xff] %vm929, %v846
        %943 = vst.msk [vmem:[#allocation3 + $0x68] sm:$0xff] %vm929, %v848
        %944 = vst.msk [vmem:[#allocation3 + $0x70] sm:$0xff] %vm929, %v850
        %945 = vst.msk [vmem:[#allocation3 + $0x78] sm:$0xff] %vm929, %v852
        %946 = vst.msk [vmem:[#allocation3 + $0x80] sm:$0xff] %vm929, %v854
        %947 = vst.msk [vmem:[#allocation3 + $0x88] sm:$0xff] %vm929, %v856
        %948 = vst.msk [vmem:[#allocation3 + $0x90] sm:$0xff] %vm929, %v858
        %949 = vst.msk [vmem:[#allocation3 + $0x98] sm:$0xff] %vm929, %v860
        %950 = vst.msk [vmem:[#allocation3 + $0xa0] sm:$0xff] %vm929, %v862
        %951 = vst.msk [vmem:[#allocation3 + $0xa8] sm:$0xff] %vm929, %v864
        %952 = vst.msk [vmem:[#allocation3 + $0xb0] sm:$0xff] %vm929, %v866
        %953 = vst.msk [vmem:[#allocation3 + $0xb8] sm:$0xff] %vm929, %v868
        %954 = vst.msk [vmem:[#allocation3 + $0xc0] sm:$0xff] %vm929, %v870
        %955 = vst.msk [vmem:[#allocation3 + $0xc8] sm:$0xff] %vm929, %v872
        %956 = vst.msk [vmem:[#allocation3 + $0xd0] sm:$0xff] %vm929, %v874
        %957 = vst.msk [vmem:[#allocation3 + $0xd8] sm:$0xff] %vm929, %v876
        %958 = vst.msk [vmem:[#allocation3 + $0xe0] sm:$0xff] %vm929, %v878
        %959 = vst.msk [vmem:[#allocation3 + $0xe8] sm:$0xff] %vm929, %v880
        %960 = vst.msk [vmem:[#allocation3 + $0xf0] sm:$0xff] %vm929, %v882
        %961 = vst.msk [vmem:[#allocation3 + $0xf8] sm:$0xff] %vm929, %v884
        %962 = vst.msk [vmem:[#allocation3 + $0x100] sm:$0xff] %vm929, %v886
        %963 = vst.msk [vmem:[#allocation3 + $0x108] sm:$0xff] %vm929, %v888
        %964 = vst.msk [vmem:[#allocation3 + $0x110] sm:$0xff] %vm929, %v890
        %965 = vst.msk [vmem:[#allocation3 + $0x118] sm:$0xff] %vm929, %v892
        %v966 = vld [vmem:[%s220 + $0x13] sm:$0xff]
        %v967 = vld [vmem:[%s220 + $0x1b] sm:$0xff]
        %v968 = vld [vmem:[%s220 + $0x23] sm:$0xff]
        %v969 = vld [vmem:[%s220 + $0x2b] sm:$0xff]
        %v970 = vld [vmem:[%s220 + $0x33] sm:$0xff]
        %v971 = vld [vmem:[%s220 + $0x3b] sm:$0xff]
        %v972 = vld [vmem:[%s220 + $0x43] sm:$0xff]
        %v973 = vld [vmem:[%s220 + $0x4b] sm:$0xff]
        %v974 = vld [vmem:[%s220 + $0x53] sm:$0xff]
        %v975 = vld [vmem:[%s220 + $0x5b] sm:$0xff]
        %v976 = vld [vmem:[%s220 + $0x63] sm:$0xff]
        %v977 = vld [vmem:[%s220 + $0x6b] sm:$0xff]
        %v978 = vld [vmem:[%s220 + $0x73] sm:$0xff]
        %v979 = vld [vmem:[%s220 + $0x7b] sm:$0xff]
        %v980 = vld [vmem:[%s220 + $0x83] sm:$0xff]
        %v981 = vld [vmem:[%s220 + $0x8b] sm:$0xff]
        %v982 = vld [vmem:[%s220 + $0x93] sm:$0xff]
        %v983 = vld [vmem:[%s220 + $0x9b] sm:$0xff]
        %v984 = vld [vmem:[%s220 + $0xa3] sm:$0xff]
        %v985 = vld [vmem:[%s220 + $0xab] sm:$0xff]
        %v986 = vld [vmem:[%s220 + $0xb3] sm:$0xff]
        %v987 = vld [vmem:[%s220 + $0xbb] sm:$0xff]
        %v988 = vld [vmem:[%s220 + $0xc3] sm:$0xff]
        %v989 = vld [vmem:[%s220 + $0xcb] sm:$0xff]
        %v990 = vld [vmem:[%s220 + $0xd3] sm:$0xff]
        %v991 = vld [vmem:[%s220 + $0xdb] sm:$0xff]
        %v992 = vld [vmem:[%s220 + $0xe3] sm:$0xff]
        %v993 = vld [vmem:[%s220 + $0xeb] sm:$0xff]
        %v994 = vld [vmem:[%s220 + $0xf3] sm:$0xff]
        %v995 = vld [vmem:[%s220 + $0xfb] sm:$0xff]
        %v996 = vld [vmem:[%s220 + $0x103] sm:$0xff]
        %v997 = vld [vmem:[%s220 + $0x10b] sm:$0xff]
        %v998 = vld [vmem:[%s220 + $0x113] sm:$0xff]
        %v999 = vld [vmem:[%s220 + $0x11b] sm:$0xff]
        %v1000 = vld [vmem:[%s220 + $0x123] sm:$0xff]
        %v1001 = vld [vmem:[%s220 + $0x12b] sm:$0xff]
        %1038 = vrot.lane.b32.xlu0 %v966, 16
        %v1039 = vpop.permute.xlu0 %1038
        %1040 = vrot.lane.b32.xlu0 %v967, 16
        %v1041 = vpop.permute.xlu0 %1040
        %1042 = vrot.lane.b32.xlu0 %v968, 16
        %v1043 = vpop.permute.xlu0 %1042
        %1044 = vrot.lane.b32.xlu0 %v969, 16
        %v1045 = vpop.permute.xlu0 %1044
        %1046 = vrot.lane.b32.xlu0 %v970, 16
        %v1047 = vpop.permute.xlu0 %1046
        %1048 = vrot.lane.b32.xlu0 %v971, 16
        %v1049 = vpop.permute.xlu0 %1048
        %1050 = vrot.lane.b32.xlu0 %v972, 16
        %v1051 = vpop.permute.xlu0 %1050
        %1052 = vrot.lane.b32.xlu0 %v973, 16
        %v1053 = vpop.permute.xlu0 %1052
        %1054 = vrot.lane.b32.xlu0 %v974, 16
        %v1055 = vpop.permute.xlu0 %1054
        %1056 = vrot.lane.b32.xlu0 %v975, 16
        %v1057 = vpop.permute.xlu0 %1056
        %1058 = vrot.lane.b32.xlu0 %v976, 16
        %v1059 = vpop.permute.xlu0 %1058
        %1060 = vrot.lane.b32.xlu0 %v977, 16
        %v1061 = vpop.permute.xlu0 %1060
        %1062 = vrot.lane.b32.xlu0 %v978, 16
        %v1063 = vpop.permute.xlu0 %1062
        %1064 = vrot.lane.b32.xlu0 %v979, 16
        %v1065 = vpop.permute.xlu0 %1064
        %1066 = vrot.lane.b32.xlu0 %v980, 16
        %v1067 = vpop.permute.xlu0 %1066
        %1068 = vrot.lane.b32.xlu0 %v981, 16
        %v1069 = vpop.permute.xlu0 %1068
        %1070 = vrot.lane.b32.xlu0 %v982, 16
        %v1071 = vpop.permute.xlu0 %1070
        %1072 = vrot.lane.b32.xlu0 %v983, 16
        %v1073 = vpop.permute.xlu0 %1072
        %1074 = vrot.lane.b32.xlu0 %v984, 16
        %v1075 = vpop.permute.xlu0 %1074
        %1076 = vrot.lane.b32.xlu0 %v985, 16
        %v1077 = vpop.permute.xlu0 %1076
        %1078 = vrot.lane.b32.xlu0 %v986, 16
        %v1079 = vpop.permute.xlu0 %1078
        %1080 = vrot.lane.b32.xlu0 %v987, 16
        %v1081 = vpop.permute.xlu0 %1080
        %1082 = vrot.lane.b32.xlu0 %v988, 16
        %v1083 = vpop.permute.xlu0 %1082
        %1084 = vrot.lane.b32.xlu0 %v989, 16
        %v1085 = vpop.permute.xlu0 %1084
        %1086 = vrot.lane.b32.xlu0 %v990, 16
        %v1087 = vpop.permute.xlu0 %1086
        %1088 = vrot.lane.b32.xlu0 %v991, 16
        %v1089 = vpop.permute.xlu0 %1088
        %1090 = vrot.lane.b32.xlu0 %v992, 16
        %v1091 = vpop.permute.xlu0 %1090
        %1092 = vrot.lane.b32.xlu0 %v993, 16
        %v1093 = vpop.permute.xlu0 %1092
        %1094 = vrot.lane.b32.xlu0 %v994, 16
        %v1095 = vpop.permute.xlu0 %1094
        %1096 = vrot.lane.b32.xlu0 %v995, 16
        %v1097 = vpop.permute.xlu0 %1096
        %1098 = vrot.lane.b32.xlu0 %v996, 16
        %v1099 = vpop.permute.xlu0 %1098
        %1100 = vrot.lane.b32.xlu0 %v997, 16
        %v1101 = vpop.permute.xlu0 %1100
        %1102 = vrot.lane.b32.xlu0 %v998, 16
        %v1103 = vpop.permute.xlu0 %1102
        %1104 = vrot.lane.b32.xlu0 %v999, 16
        %v1105 = vpop.permute.xlu0 %1104
        %1106 = vrot.lane.b32.xlu0 %v1000, 16
        %v1107 = vpop.permute.xlu0 %1106
        %1108 = vrot.lane.b32.xlu0 %v1001, 16
        %v1109 = vpop.permute.xlu0 %1108
        %vm1146 = vcmask 162944
        %1147 = vst.msk [vmem:[#allocation3] sm:$0xff] %vm1146, %v1039
        %1148 = vst.msk [vmem:[#allocation3 + $0x8] sm:$0xff] %vm1146, %v1041
        %1149 = vst.msk [vmem:[#allocation3 + $0x10] sm:$0xff] %vm1146, %v1043
        %1150 = vst.msk [vmem:[#allocation3 + $0x18] sm:$0xff] %vm1146, %v1045
        %1151 = vst.msk [vmem:[#allocation3 + $0x20] sm:$0xff] %vm1146, %v1047
        %1152 = vst.msk [vmem:[#allocation3 + $0x28] sm:$0xff] %vm1146, %v1049
        %1153 = vst.msk [vmem:[#allocation3 + $0x30] sm:$0xff] %vm1146, %v1051
        %1154 = vst.msk [vmem:[#allocation3 + $0x38] sm:$0xff] %vm1146, %v1053
        %1155 = vst.msk [vmem:[#allocation3 + $0x40] sm:$0xff] %vm1146, %v1055
        %1156 = vst.msk [vmem:[#allocation3 + $0x48] sm:$0xff] %vm1146, %v1057
        %1157 = vst.msk [vmem:[#allocation3 + $0x50] sm:$0xff] %vm1146, %v1059
        %1158 = vst.msk [vmem:[#allocation3 + $0x58] sm:$0xff] %vm1146, %v1061
        %1159 = vst.msk [vmem:[#allocation3 + $0x60] sm:$0xff] %vm1146, %v1063
        %1160 = vst.msk [vmem:[#allocation3 + $0x68] sm:$0xff] %vm1146, %v1065
        %1161 = vst.msk [vmem:[#allocation3 + $0x70] sm:$0xff] %vm1146, %v1067
        %1162 = vst.msk [vmem:[#allocation3 + $0x78] sm:$0xff] %vm1146, %v1069
        %1163 = vst.msk [vmem:[#allocation3 + $0x80] sm:$0xff] %vm1146, %v1071
        %1164 = vst.msk [vmem:[#allocation3 + $0x88] sm:$0xff] %vm1146, %v1073
        %1165 = vst.msk [vmem:[#allocation3 + $0x90] sm:$0xff] %vm1146, %v1075
        %1166 = vst.msk [vmem:[#allocation3 + $0x98] sm:$0xff] %vm1146, %v1077
        %1167 = vst.msk [vmem:[#allocation3 + $0xa0] sm:$0xff] %vm1146, %v1079
        %1168 = vst.msk [vmem:[#allocation3 + $0xa8] sm:$0xff] %vm1146, %v1081
        %1169 = vst.msk [vmem:[#allocation3 + $0xb0] sm:$0xff] %vm1146, %v1083
        %1170 = vst.msk [vmem:[#allocation3 + $0xb8] sm:$0xff] %vm1146, %v1085
        %1171 = vst.msk [vmem:[#allocation3 + $0xc0] sm:$0xff] %vm1146, %v1087
        %1172 = vst.msk [vmem:[#allocation3 + $0xc8] sm:$0xff] %vm1146, %v1089
        %1173 = vst.msk [vmem:[#allocation3 + $0xd0] sm:$0xff] %vm1146, %v1091
        %1174 = vst.msk [vmem:[#allocation3 + $0xd8] sm:$0xff] %vm1146, %v1093
        %1175 = vst.msk [vmem:[#allocation3 + $0xe0] sm:$0xff] %vm1146, %v1095
        %1176 = vst.msk [vmem:[#allocation3 + $0xe8] sm:$0xff] %vm1146, %v1097
        %1177 = vst.msk [vmem:[#allocation3 + $0xf0] sm:$0xff] %vm1146, %v1099
        %1178 = vst.msk [vmem:[#allocation3 + $0xf8] sm:$0xff] %vm1146, %v1101
        %1179 = vst.msk [vmem:[#allocation3 + $0x100] sm:$0xff] %vm1146, %v1103
        %1180 = vst.msk [vmem:[#allocation3 + $0x108] sm:$0xff] %vm1146, %v1105
        %1181 = vst.msk [vmem:[#allocation3 + $0x110] sm:$0xff] %vm1146, %v1107
        %1182 = vst.msk [vmem:[#allocation3 + $0x118] sm:$0xff] %vm1146, %v1109
        %v1183 = vld [vmem:[%s220 + $0x14] sm:$0xff]
        %v1184 = vld [vmem:[%s220 + $0x1c] sm:$0xff]
        %v1185 = vld [vmem:[%s220 + $0x24] sm:$0xff]
        %v1186 = vld [vmem:[%s220 + $0x2c] sm:$0xff]
        %v1187 = vld [vmem:[%s220 + $0x34] sm:$0xff]
        %v1188 = vld [vmem:[%s220 + $0x3c] sm:$0xff]
        %v1189 = vld [vmem:[%s220 + $0x44] sm:$0xff]
        %v1190 = vld [vmem:[%s220 + $0x4c] sm:$0xff]
        %v1191 = vld [vmem:[%s220 + $0x54] sm:$0xff]
        %v1192 = vld [vmem:[%s220 + $0x5c] sm:$0xff]
        %v1193 = vld [vmem:[%s220 + $0x64] sm:$0xff]
        %v1194 = vld [vmem:[%s220 + $0x6c] sm:$0xff]
        %v1195 = vld [vmem:[%s220 + $0x74] sm:$0xff]
        %v1196 = vld [vmem:[%s220 + $0x7c] sm:$0xff]
        %v1197 = vld [vmem:[%s220 + $0x84] sm:$0xff]
        %v1198 = vld [vmem:[%s220 + $0x8c] sm:$0xff]
        %v1199 = vld [vmem:[%s220 + $0x94] sm:$0xff]
        %v1200 = vld [vmem:[%s220 + $0x9c] sm:$0xff]
        %v1201 = vld [vmem:[%s220 + $0xa4] sm:$0xff]
        %v1202 = vld [vmem:[%s220 + $0xac] sm:$0xff]
        %v1203 = vld [vmem:[%s220 + $0xb4] sm:$0xff]
        %v1204 = vld [vmem:[%s220 + $0xbc] sm:$0xff]
        %v1205 = vld [vmem:[%s220 + $0xc4] sm:$0xff]
        %v1206 = vld [vmem:[%s220 + $0xcc] sm:$0xff]
        %v1207 = vld [vmem:[%s220 + $0xd4] sm:$0xff]
        %v1208 = vld [vmem:[%s220 + $0xdc] sm:$0xff]
        %v1209 = vld [vmem:[%s220 + $0xe4] sm:$0xff]
        %v1210 = vld [vmem:[%s220 + $0xec] sm:$0xff]
        %v1211 = vld [vmem:[%s220 + $0xf4] sm:$0xff]
        %v1212 = vld [vmem:[%s220 + $0xfc] sm:$0xff]
        %v1213 = vld [vmem:[%s220 + $0x104] sm:$0xff]
        %v1214 = vld [vmem:[%s220 + $0x10c] sm:$0xff]
        %v1215 = vld [vmem:[%s220 + $0x114] sm:$0xff]
        %v1216 = vld [vmem:[%s220 + $0x11c] sm:$0xff]
        %v1217 = vld [vmem:[%s220 + $0x124] sm:$0xff]
        %v1218 = vld [vmem:[%s220 + $0x12c] sm:$0xff]
        %1255 = vrot.lane.b32.xlu0 %v1183, 20
        %v1256 = vpop.permute.xlu0 %1255
        %1257 = vrot.lane.b32.xlu0 %v1184, 20
        %v1258 = vpop.permute.xlu0 %1257
        %1259 = vrot.lane.b32.xlu0 %v1185, 20
        %v1260 = vpop.permute.xlu0 %1259
        %1261 = vrot.lane.b32.xlu0 %v1186, 20
        %v1262 = vpop.permute.xlu0 %1261
        %1263 = vrot.lane.b32.xlu0 %v1187, 20
        %v1264 = vpop.permute.xlu0 %1263
        %1265 = vrot.lane.b32.xlu0 %v1188, 20
        %v1266 = vpop.permute.xlu0 %1265
        %1267 = vrot.lane.b32.xlu0 %v1189, 20
        %v1268 = vpop.permute.xlu0 %1267
        %1269 = vrot.lane.b32.xlu0 %v1190, 20
        %v1270 = vpop.permute.xlu0 %1269
        %1271 = vrot.lane.b32.xlu0 %v1191, 20
        %v1272 = vpop.permute.xlu0 %1271
        %1273 = vrot.lane.b32.xlu0 %v1192, 20
        %v1274 = vpop.permute.xlu0 %1273
        %1275 = vrot.lane.b32.xlu0 %v1193, 20
        %v1276 = vpop.permute.xlu0 %1275
        %1277 = vrot.lane.b32.xlu0 %v1194, 20
        %v1278 = vpop.permute.xlu0 %1277
        %1279 = vrot.lane.b32.xlu0 %v1195, 20
        %v1280 = vpop.permute.xlu0 %1279
        %1281 = vrot.lane.b32.xlu0 %v1196, 20
        %v1282 = vpop.permute.xlu0 %1281
        %1283 = vrot.lane.b32.xlu0 %v1197, 20
        %v1284 = vpop.permute.xlu0 %1283
        %1285 = vrot.lane.b32.xlu0 %v1198, 20
        %v1286 = vpop.permute.xlu0 %1285
        %1287 = vrot.lane.b32.xlu0 %v1199, 20
        %v1288 = vpop.permute.xlu0 %1287
        %1289 = vrot.lane.b32.xlu0 %v1200, 20
        %v1290 = vpop.permute.xlu0 %1289
        %1291 = vrot.lane.b32.xlu0 %v1201, 20
        %v1292 = vpop.permute.xlu0 %1291
        %1293 = vrot.lane.b32.xlu0 %v1202, 20
        %v1294 = vpop.permute.xlu0 %1293
        %1295 = vrot.lane.b32.xlu0 %v1203, 20
        %v1296 = vpop.permute.xlu0 %1295
        %1297 = vrot.lane.b32.xlu0 %v1204, 20
        %v1298 = vpop.permute.xlu0 %1297
        %1299 = vrot.lane.b32.xlu0 %v1205, 20
        %v1300 = vpop.permute.xlu0 %1299
        %1301 = vrot.lane.b32.xlu0 %v1206, 20
        %v1302 = vpop.permute.xlu0 %1301
        %1303 = vrot.lane.b32.xlu0 %v1207, 20
        %v1304 = vpop.permute.xlu0 %1303
        %1305 = vrot.lane.b32.xlu0 %v1208, 20
        %v1306 = vpop.permute.xlu0 %1305
        %1307 = vrot.lane.b32.xlu0 %v1209, 20
        %v1308 = vpop.permute.xlu0 %1307
        %1309 = vrot.lane.b32.xlu0 %v1210, 20
        %v1310 = vpop.permute.xlu0 %1309
        %1311 = vrot.lane.b32.xlu0 %v1211, 20
        %v1312 = vpop.permute.xlu0 %1311
        %1313 = vrot.lane.b32.xlu0 %v1212, 20
        %v1314 = vpop.permute.xlu0 %1313
        %1315 = vrot.lane.b32.xlu0 %v1213, 20
        %v1316 = vpop.permute.xlu0 %1315
        %1317 = vrot.lane.b32.xlu0 %v1214, 20
        %v1318 = vpop.permute.xlu0 %1317
        %1319 = vrot.lane.b32.xlu0 %v1215, 20
        %v1320 = vpop.permute.xlu0 %1319
        %1321 = vrot.lane.b32.xlu0 %v1216, 20
        %v1322 = vpop.permute.xlu0 %1321
        %1323 = vrot.lane.b32.xlu0 %v1217, 20
        %v1324 = vpop.permute.xlu0 %1323
        %1325 = vrot.lane.b32.xlu0 %v1218, 20
        %v1326 = vpop.permute.xlu0 %1325
        %vm1363 = vcmask 195744
        %1364 = vst.msk [vmem:[#allocation3] sm:$0xff] %vm1363, %v1256
        %1365 = vst.msk [vmem:[#allocation3 + $0x8] sm:$0xff] %vm1363, %v1258
        %1366 = vst.msk [vmem:[#allocation3 + $0x10] sm:$0xff] %vm1363, %v1260
        %1367 = vst.msk [vmem:[#allocation3 + $0x18] sm:$0xff] %vm1363, %v1262
        %1368 = vst.msk [vmem:[#allocation3 + $0x20] sm:$0xff] %vm1363, %v1264
        %1369 = vst.msk [vmem:[#allocation3 + $0x28] sm:$0xff] %vm1363, %v1266
        %1370 = vst.msk [vmem:[#allocation3 + $0x30] sm:$0xff] %vm1363, %v1268
        %1371 = vst.msk [vmem:[#allocation3 + $0x38] sm:$0xff] %vm1363, %v1270
        %1372 = vst.msk [vmem:[#allocation3 + $0x40] sm:$0xff] %vm1363, %v1272
        %1373 = vst.msk [vmem:[#allocation3 + $0x48] sm:$0xff] %vm1363, %v1274
        %1374 = vst.msk [vmem:[#allocation3 + $0x50] sm:$0xff] %vm1363, %v1276
        %1375 = vst.msk [vmem:[#allocation3 + $0x58] sm:$0xff] %vm1363, %v1278
        %1376 = vst.msk [vmem:[#allocation3 + $0x60] sm:$0xff] %vm1363, %v1280
        %1377 = vst.msk [vmem:[#allocation3 + $0x68] sm:$0xff] %vm1363, %v1282
        %1378 = vst.msk [vmem:[#allocation3 + $0x70] sm:$0xff] %vm1363, %v1284
        %1379 = vst.msk [vmem:[#allocation3 + $0x78] sm:$0xff] %vm1363, %v1286
        %1380 = vst.msk [vmem:[#allocation3 + $0x80] sm:$0xff] %vm1363, %v1288
        %1381 = vst.msk [vmem:[#allocation3 + $0x88] sm:$0xff] %vm1363, %v1290
        %1382 = vst.msk [vmem:[#allocation3 + $0x90] sm:$0xff] %vm1363, %v1292
        %1383 = vst.msk [vmem:[#allocation3 + $0x98] sm:$0xff] %vm1363, %v1294
        %1384 = vst.msk [vmem:[#allocation3 + $0xa0] sm:$0xff] %vm1363, %v1296
        %1385 = vst.msk [vmem:[#allocation3 + $0xa8] sm:$0xff] %vm1363, %v1298
        %1386 = vst.msk [vmem:[#allocation3 + $0xb0] sm:$0xff] %vm1363, %v1300
        %1387 = vst.msk [vmem:[#allocation3 + $0xb8] sm:$0xff] %vm1363, %v1302
        %1388 = vst.msk [vmem:[#allocation3 + $0xc0] sm:$0xff] %vm1363, %v1304
        %1389 = vst.msk [vmem:[#allocation3 + $0xc8] sm:$0xff] %vm1363, %v1306
        %1390 = vst.msk [vmem:[#allocation3 + $0xd0] sm:$0xff] %vm1363, %v1308
        %1391 = vst.msk [vmem:[#allocation3 + $0xd8] sm:$0xff] %vm1363, %v1310
        %1392 = vst.msk [vmem:[#allocation3 + $0xe0] sm:$0xff] %vm1363, %v1312
        %1393 = vst.msk [vmem:[#allocation3 + $0xe8] sm:$0xff] %vm1363, %v1314
        %1394 = vst.msk [vmem:[#allocation3 + $0xf0] sm:$0xff] %vm1363, %v1316
        %1395 = vst.msk [vmem:[#allocation3 + $0xf8] sm:$0xff] %vm1363, %v1318
        %1396 = vst.msk [vmem:[#allocation3 + $0x100] sm:$0xff] %vm1363, %v1320
        %1397 = vst.msk [vmem:[#allocation3 + $0x108] sm:$0xff] %vm1363, %v1322
        %1398 = vst.msk [vmem:[#allocation3 + $0x110] sm:$0xff] %vm1363, %v1324
        %1399 = vst.msk [vmem:[#allocation3 + $0x118] sm:$0xff] %vm1363, %v1326
        %v1400 = vld [vmem:[%s220 + $0x24] sm:$0xff]
        %v1401 = vld [vmem:[%s220 + $0x2c] sm:$0xff]
        %v1402 = vld [vmem:[%s220 + $0x34] sm:$0xff]
        %v1403 = vld [vmem:[%s220 + $0x3c] sm:$0xff]
        %v1404 = vld [vmem:[%s220 + $0x44] sm:$0xff]
        %v1405 = vld [vmem:[%s220 + $0x4c] sm:$0xff]
        %v1406 = vld [vmem:[%s220 + $0x54] sm:$0xff]
        %v1407 = vld [vmem:[%s220 + $0x5c] sm:$0xff]
        %v1408 = vld [vmem:[%s220 + $0x64] sm:$0xff]
        %v1409 = vld [vmem:[%s220 + $0x6c] sm:$0xff]
        %v1410 = vld [vmem:[%s220 + $0x74] sm:$0xff]
        %v1411 = vld [vmem:[%s220 + $0x7c] sm:$0xff]
        %v1412 = vld [vmem:[%s220 + $0x84] sm:$0xff]
        %v1413 = vld [vmem:[%s220 + $0x8c] sm:$0xff]
        %v1414 = vld [vmem:[%s220 + $0x94] sm:$0xff]
        %v1415 = vld [vmem:[%s220 + $0x9c] sm:$0xff]
        %v1416 = vld [vmem:[%s220 + $0xa4] sm:$0xff]
        %v1417 = vld [vmem:[%s220 + $0xac] sm:$0xff]
        %v1418 = vld [vmem:[%s220 + $0xb4] sm:$0xff]
        %v1419 = vld [vmem:[%s220 + $0xbc] sm:$0xff]
        %v1420 = vld [vmem:[%s220 + $0xc4] sm:$0xff]
        %v1421 = vld [vmem:[%s220 + $0xcc] sm:$0xff]
        %v1422 = vld [vmem:[%s220 + $0xd4] sm:$0xff]
        %v1423 = vld [vmem:[%s220 + $0xdc] sm:$0xff]
        %v1424 = vld [vmem:[%s220 + $0xe4] sm:$0xff]
        %v1425 = vld [vmem:[%s220 + $0xec] sm:$0xff]
        %v1426 = vld [vmem:[%s220 + $0xf4] sm:$0xff]
        %v1427 = vld [vmem:[%s220 + $0xfc] sm:$0xff]
        %v1428 = vld [vmem:[%s220 + $0x104] sm:$0xff]
        %v1429 = vld [vmem:[%s220 + $0x10c] sm:$0xff]
        %v1430 = vld [vmem:[%s220 + $0x114] sm:$0xff]
        %v1431 = vld [vmem:[%s220 + $0x11c] sm:$0xff]
        %v1432 = vld [vmem:[%s220 + $0x124] sm:$0xff]
        %v1433 = vld [vmem:[%s220 + $0x12c] sm:$0xff]
        %v1434 = vld [vmem:[%s220 + $0x134] sm:$0xff]
        %v1435 = vld [vmem:[%s220 + $0x13c] sm:$0xff]
        %1472 = vrot.lane.b32.xlu0 %v1400, 24
        %v1473 = vpop.permute.xlu0 %1472
        %1474 = vrot.lane.b32.xlu0 %v1401, 24
        %v1475 = vpop.permute.xlu0 %1474
        %1476 = vrot.lane.b32.xlu0 %v1402, 24
        %v1477 = vpop.permute.xlu0 %1476
        %1478 = vrot.lane.b32.xlu0 %v1403, 24
        %v1479 = vpop.permute.xlu0 %1478
        %1480 = vrot.lane.b32.xlu0 %v1404, 24
        %v1481 = vpop.permute.xlu0 %1480
        %1482 = vrot.lane.b32.xlu0 %v1405, 24
        %v1483 = vpop.permute.xlu0 %1482
        %1484 = vrot.lane.b32.xlu0 %v1406, 24
        %v1485 = vpop.permute.xlu0 %1484
        %1486 = vrot.lane.b32.xlu0 %v1407, 24
        %v1487 = vpop.permute.xlu0 %1486
        %1488 = vrot.lane.b32.xlu0 %v1408, 24
        %v1489 = vpop.permute.xlu0 %1488
        %1490 = vrot.lane.b32.xlu0 %v1409, 24
        %v1491 = vpop.permute.xlu0 %1490
        %1492 = vrot.lane.b32.xlu0 %v1410, 24
        %v1493 = vpop.permute.xlu0 %1492
        %1494 = vrot.lane.b32.xlu0 %v1411, 24
        %v1495 = vpop.permute.xlu0 %1494
        %1496 = vrot.lane.b32.xlu0 %v1412, 24
        %v1497 = vpop.permute.xlu0 %1496
        %1498 = vrot.lane.b32.xlu0 %v1413, 24
        %v1499 = vpop.permute.xlu0 %1498
        %1500 = vrot.lane.b32.xlu0 %v1414, 24
        %v1501 = vpop.permute.xlu0 %1500
        %1502 = vrot.lane.b32.xlu0 %v1415, 24
        %v1503 = vpop.permute.xlu0 %1502
        %1504 = vrot.lane.b32.xlu0 %v1416, 24
        %v1505 = vpop.permute.xlu0 %1504
        %1506 = vrot.lane.b32.xlu0 %v1417, 24
        %v1507 = vpop.permute.xlu0 %1506
        %1508 = vrot.lane.b32.xlu0 %v1418, 24
        %v1509 = vpop.permute.xlu0 %1508
        %1510 = vrot.lane.b32.xlu0 %v1419, 24
        %v1511 = vpop.permute.xlu0 %1510
        %1512 = vrot.lane.b32.xlu0 %v1420, 24
        %v1513 = vpop.permute.xlu0 %1512
        %1514 = vrot.lane.b32.xlu0 %v1421, 24
        %v1515 = vpop.permute.xlu0 %1514
        %1516 = vrot.lane.b32.xlu0 %v1422, 24
        %v1517 = vpop.permute.xlu0 %1516
        %1518 = vrot.lane.b32.xlu0 %v1423, 24
        %v1519 = vpop.permute.xlu0 %1518
        %1520 = vrot.lane.b32.xlu0 %v1424, 24
        %v1521 = vpop.permute.xlu0 %1520
        %1522 = vrot.lane.b32.xlu0 %v1425, 24
        %v1523 = vpop.permute.xlu0 %1522
        %1524 = vrot.lane.b32.xlu0 %v1426, 24
        %v1525 = vpop.permute.xlu0 %1524
        %1526 = vrot.lane.b32.xlu0 %v1427, 24
        %v1527 = vpop.permute.xlu0 %1526
        %1528 = vrot.lane.b32.xlu0 %v1428, 24
        %v1529 = vpop.permute.xlu0 %1528
        %1530 = vrot.lane.b32.xlu0 %v1429, 24
        %v1531 = vpop.permute.xlu0 %1530
        %1532 = vrot.lane.b32.xlu0 %v1430, 24
        %v1533 = vpop.permute.xlu0 %1532
        %1534 = vrot.lane.b32.xlu0 %v1431, 24
        %v1535 = vpop.permute.xlu0 %1534
        %1536 = vrot.lane.b32.xlu0 %v1432, 24
        %v1537 = vpop.permute.xlu0 %1536
        %1538 = vrot.lane.b32.xlu0 %v1433, 24
        %v1539 = vpop.permute.xlu0 %1538
        %1540 = vrot.lane.b32.xlu0 %v1434, 24
        %v1541 = vpop.permute.xlu0 %1540
        %1542 = vrot.lane.b32.xlu0 %v1435, 24
        %v1543 = vpop.permute.xlu0 %1542
        %vm1580 = vcmask 228544
        %1581 = vst.msk [vmem:[#allocation3] sm:$0xff] %vm1580, %v1473
        %1582 = vst.msk [vmem:[#allocation3 + $0x8] sm:$0xff] %vm1580, %v1475
        %1583 = vst.msk [vmem:[#allocation3 + $0x10] sm:$0xff] %vm1580, %v1477
        %1584 = vst.msk [vmem:[#allocation3 + $0x18] sm:$0xff] %vm1580, %v1479
        %1585 = vst.msk [vmem:[#allocation3 + $0x20] sm:$0xff] %vm1580, %v1481
        %1586 = vst.msk [vmem:[#allocation3 + $0x28] sm:$0xff] %vm1580, %v1483
        %1587 = vst.msk [vmem:[#allocation3 + $0x30] sm:$0xff] %vm1580, %v1485
        %1588 = vst.msk [vmem:[#allocation3 + $0x38] sm:$0xff] %vm1580, %v1487
        %1589 = vst.msk [vmem:[#allocation3 + $0x40] sm:$0xff] %vm1580, %v1489
        %1590 = vst.msk [vmem:[#allocation3 + $0x48] sm:$0xff] %vm1580, %v1491
        %1591 = vst.msk [vmem:[#allocation3 + $0x50] sm:$0xff] %vm1580, %v1493
        %1592 = vst.msk [vmem:[#allocation3 + $0x58] sm:$0xff] %vm1580, %v1495
        %1593 = vst.msk [vmem:[#allocation3 + $0x60] sm:$0xff] %vm1580, %v1497
        %1594 = vst.msk [vmem:[#allocation3 + $0x68] sm:$0xff] %vm1580, %v1499
        %1595 = vst.msk [vmem:[#allocation3 + $0x70] sm:$0xff] %vm1580, %v1501
        %1596 = vst.msk [vmem:[#allocation3 + $0x78] sm:$0xff] %vm1580, %v1503
        %1597 = vst.msk [vmem:[#allocation3 + $0x80] sm:$0xff] %vm1580, %v1505
        %1598 = vst.msk [vmem:[#allocation3 + $0x88] sm:$0xff] %vm1580, %v1507
        %1599 = vst.msk [vmem:[#allocation3 + $0x90] sm:$0xff] %vm1580, %v1509
        %1600 = vst.msk [vmem:[#allocation3 + $0x98] sm:$0xff] %vm1580, %v1511
        %1601 = vst.msk [vmem:[#allocation3 + $0xa0] sm:$0xff] %vm1580, %v1513
        %1602 = vst.msk [vmem:[#allocation3 + $0xa8] sm:$0xff] %vm1580, %v1515
        %1603 = vst.msk [vmem:[#allocation3 + $0xb0] sm:$0xff] %vm1580, %v1517
        %1604 = vst.msk [vmem:[#allocation3 + $0xb8] sm:$0xff] %vm1580, %v1519
        %1605 = vst.msk [vmem:[#allocation3 + $0xc0] sm:$0xff] %vm1580, %v1521
        %1606 = vst.msk [vmem:[#allocation3 + $0xc8] sm:$0xff] %vm1580, %v1523
        %1607 = vst.msk [vmem:[#allocation3 + $0xd0] sm:$0xff] %vm1580, %v1525
        %1608 = vst.msk [vmem:[#allocation3 + $0xd8] sm:$0xff] %vm1580, %v1527
        %1609 = vst.msk [vmem:[#allocation3 + $0xe0] sm:$0xff] %vm1580, %v1529
        %1610 = vst.msk [vmem:[#allocation3 + $0xe8] sm:$0xff] %vm1580, %v1531
        %1611 = vst.msk [vmem:[#allocation3 + $0xf0] sm:$0xff] %vm1580, %v1533
        %1612 = vst.msk [vmem:[#allocation3 + $0xf8] sm:$0xff] %vm1580, %v1535
        %1613 = vst.msk [vmem:[#allocation3 + $0x100] sm:$0xff] %vm1580, %v1537
        %1614 = vst.msk [vmem:[#allocation3 + $0x108] sm:$0xff] %vm1580, %v1539
        %1615 = vst.msk [vmem:[#allocation3 + $0x110] sm:$0xff] %vm1580, %v1541
        %1616 = vst.msk [vmem:[#allocation3 + $0x118] sm:$0xff] %vm1580, %v1543
        %v1617 = vld [vmem:[%s220 + $0x25] sm:$0xff]
        %v1618 = vld [vmem:[%s220 + $0x2d] sm:$0xff]
        %v1619 = vld [vmem:[%s220 + $0x35] sm:$0xff]
        %v1620 = vld [vmem:[%s220 + $0x3d] sm:$0xff]
        %v1621 = vld [vmem:[%s220 + $0x45] sm:$0xff]
        %v1622 = vld [vmem:[%s220 + $0x4d] sm:$0xff]
        %v1623 = vld [vmem:[%s220 + $0x55] sm:$0xff]
        %v1624 = vld [vmem:[%s220 + $0x5d] sm:$0xff]
        %v1625 = vld [vmem:[%s220 + $0x65] sm:$0xff]
        %v1626 = vld [vmem:[%s220 + $0x6d] sm:$0xff]
        %v1627 = vld [vmem:[%s220 + $0x75] sm:$0xff]
        %v1628 = vld [vmem:[%s220 + $0x7d] sm:$0xff]
        %v1629 = vld [vmem:[%s220 + $0x85] sm:$0xff]
        %v1630 = vld [vmem:[%s220 + $0x8d] sm:$0xff]
        %v1631 = vld [vmem:[%s220 + $0x95] sm:$0xff]
        %v1632 = vld [vmem:[%s220 + $0x9d] sm:$0xff]
        %v1633 = vld [vmem:[%s220 + $0xa5] sm:$0xff]
        %v1634 = vld [vmem:[%s220 + $0xad] sm:$0xff]
        %v1635 = vld [vmem:[%s220 + $0xb5] sm:$0xff]
        %v1636 = vld [vmem:[%s220 + $0xbd] sm:$0xff]
        %v1637 = vld [vmem:[%s220 + $0xc5] sm:$0xff]
        %v1638 = vld [vmem:[%s220 + $0xcd] sm:$0xff]
        %v1639 = vld [vmem:[%s220 + $0xd5] sm:$0xff]
        %v1640 = vld [vmem:[%s220 + $0xdd] sm:$0xff]
        %v1641 = vld [vmem:[%s220 + $0xe5] sm:$0xff]
        %v1642 = vld [vmem:[%s220 + $0xed] sm:$0xff]
        %v1643 = vld [vmem:[%s220 + $0xf5] sm:$0xff]
        %v1644 = vld [vmem:[%s220 + $0xfd] sm:$0xff]
        %v1645 = vld [vmem:[%s220 + $0x105] sm:$0xff]
        %v1646 = vld [vmem:[%s220 + $0x10d] sm:$0xff]
        %v1647 = vld [vmem:[%s220 + $0x115] sm:$0xff]
        %v1648 = vld [vmem:[%s220 + $0x11d] sm:$0xff]
        %v1649 = vld [vmem:[%s220 + $0x125] sm:$0xff]
        %v1650 = vld [vmem:[%s220 + $0x12d] sm:$0xff]
        %v1651 = vld [vmem:[%s220 + $0x135] sm:$0xff]
        %v1652 = vld [vmem:[%s220 + $0x13d] sm:$0xff]
        %1689 = vrot.lane.b32.xlu0 %v1617, 28
        %v1690 = vpop.permute.xlu0 %1689
        %1691 = vrot.lane.b32.xlu0 %v1618, 28
        %v1692 = vpop.permute.xlu0 %1691
        %1693 = vrot.lane.b32.xlu0 %v1619, 28
        %v1694 = vpop.permute.xlu0 %1693
        %1695 = vrot.lane.b32.xlu0 %v1620, 28
        %v1696 = vpop.permute.xlu0 %1695
        %1697 = vrot.lane.b32.xlu0 %v1621, 28
        %v1698 = vpop.permute.xlu0 %1697
        %1699 = vrot.lane.b32.xlu0 %v1622, 28
        %v1700 = vpop.permute.xlu0 %1699
        %1701 = vrot.lane.b32.xlu0 %v1623, 28
        %v1702 = vpop.permute.xlu0 %1701
        %1703 = vrot.lane.b32.xlu0 %v1624, 28
        %v1704 = vpop.permute.xlu0 %1703
        %1705 = vrot.lane.b32.xlu0 %v1625, 28
        %v1706 = vpop.permute.xlu0 %1705
        %1707 = vrot.lane.b32.xlu0 %v1626, 28
        %v1708 = vpop.permute.xlu0 %1707
        %1709 = vrot.lane.b32.xlu0 %v1627, 28
        %v1710 = vpop.permute.xlu0 %1709
        %1711 = vrot.lane.b32.xlu0 %v1628, 28
        %v1712 = vpop.permute.xlu0 %1711
        %1713 = vrot.lane.b32.xlu0 %v1629, 28
        %v1714 = vpop.permute.xlu0 %1713
        %1715 = vrot.lane.b32.xlu0 %v1630, 28
        %v1716 = vpop.permute.xlu0 %1715
        %1717 = vrot.lane.b32.xlu0 %v1631, 28
        %v1718 = vpop.permute.xlu0 %1717
        %1719 = vrot.lane.b32.xlu0 %v1632, 28
        %v1720 = vpop.permute.xlu0 %1719
        %1721 = vrot.lane.b32.xlu0 %v1633, 28
        %v1722 = vpop.permute.xlu0 %1721
        %1723 = vrot.lane.b32.xlu0 %v1634, 28
        %v1724 = vpop.permute.xlu0 %1723
        %1725 = vrot.lane.b32.xlu0 %v1635, 28
        %v1726 = vpop.permute.xlu0 %1725
        %1727 = vrot.lane.b32.xlu0 %v1636, 28
        %v1728 = vpop.permute.xlu0 %1727
        %1729 = vrot.lane.b32.xlu0 %v1637, 28
        %v1730 = vpop.permute.xlu0 %1729
        %1731 = vrot.lane.b32.xlu0 %v1638, 28
        %v1732 = vpop.permute.xlu0 %1731
        %1733 = vrot.lane.b32.xlu0 %v1639, 28
        %v1734 = vpop.permute.xlu0 %1733
        %1735 = vrot.lane.b32.xlu0 %v1640, 28
        %v1736 = vpop.permute.xlu0 %1735
        %1737 = vrot.lane.b32.xlu0 %v1641, 28
        %v1738 = vpop.permute.xlu0 %1737
        %1739 = vrot.lane.b32.xlu0 %v1642, 28
        %v1740 = vpop.permute.xlu0 %1739
        %1741 = vrot.lane.b32.xlu0 %v1643, 28
        %v1742 = vpop.permute.xlu0 %1741
        %1743 = vrot.lane.b32.xlu0 %v1644, 28
        %v1744 = vpop.permute.xlu0 %1743
        %1745 = vrot.lane.b32.xlu0 %v1645, 28
        %v1746 = vpop.permute.xlu0 %1745
        %1747 = vrot.lane.b32.xlu0 %v1646, 28
        %v1748 = vpop.permute.xlu0 %1747
        %1749 = vrot.lane.b32.xlu0 %v1647, 28
        %v1750 = vpop.permute.xlu0 %1749
        %1751 = vrot.lane.b32.xlu0 %v1648, 28
        %v1752 = vpop.permute.xlu0 %1751
        %1753 = vrot.lane.b32.xlu0 %v1649, 28
        %v1754 = vpop.permute.xlu0 %1753
        %1755 = vrot.lane.b32.xlu0 %v1650, 28
        %v1756 = vpop.permute.xlu0 %1755
        %1757 = vrot.lane.b32.xlu0 %v1651, 28
        %v1758 = vpop.permute.xlu0 %1757
        %1759 = vrot.lane.b32.xlu0 %v1652, 28
        %v1760 = vpop.permute.xlu0 %1759
        %vm1797 = vcmask 261344
        %1798 = vst.msk [vmem:[#allocation3] sm:$0xff] %vm1797, %v1690
        %1799 = vst.msk [vmem:[#allocation3 + $0x8] sm:$0xff] %vm1797, %v1692
        %1800 = vst.msk [vmem:[#allocation3 + $0x10] sm:$0xff] %vm1797, %v1694
        %1801 = vst.msk [vmem:[#allocation3 + $0x18] sm:$0xff] %vm1797, %v1696
        %1802 = vst.msk [vmem:[#allocation3 + $0x20] sm:$0xff] %vm1797, %v1698
        %1803 = vst.msk [vmem:[#allocation3 + $0x28] sm:$0xff] %vm1797, %v1700
        %1804 = vst.msk [vmem:[#allocation3 + $0x30] sm:$0xff] %vm1797, %v1702
        %1805 = vst.msk [vmem:[#allocation3 + $0x38] sm:$0xff] %vm1797, %v1704
        %1806 = vst.msk [vmem:[#allocation3 + $0x40] sm:$0xff] %vm1797, %v1706
        %1807 = vst.msk [vmem:[#allocation3 + $0x48] sm:$0xff] %vm1797, %v1708
        %1808 = vst.msk [vmem:[#allocation3 + $0x50] sm:$0xff] %vm1797, %v1710
        %1809 = vst.msk [vmem:[#allocation3 + $0x58] sm:$0xff] %vm1797, %v1712
        %1810 = vst.msk [vmem:[#allocation3 + $0x60] sm:$0xff] %vm1797, %v1714
        %1811 = vst.msk [vmem:[#allocation3 + $0x68] sm:$0xff] %vm1797, %v1716
        %1812 = vst.msk [vmem:[#allocation3 + $0x70] sm:$0xff] %vm1797, %v1718
        %1813 = vst.msk [vmem:[#allocation3 + $0x78] sm:$0xff] %vm1797, %v1720
        %1814 = vst.msk [vmem:[#allocation3 + $0x80] sm:$0xff] %vm1797, %v1722
        %1815 = vst.msk [vmem:[#allocation3 + $0x88] sm:$0xff] %vm1797, %v1724
        %1816 = vst.msk [vmem:[#allocation3 + $0x90] sm:$0xff] %vm1797, %v1726
        %1817 = vst.msk [vmem:[#allocation3 + $0x98] sm:$0xff] %vm1797, %v1728
        %1818 = vst.msk [vmem:[#allocation3 + $0xa0] sm:$0xff] %vm1797, %v1730
        %1819 = vst.msk [vmem:[#allocation3 + $0xa8] sm:$0xff] %vm1797, %v1732
        %1820 = vst.msk [vmem:[#allocation3 + $0xb0] sm:$0xff] %vm1797, %v1734
        %1821 = vst.msk [vmem:[#allocation3 + $0xb8] sm:$0xff] %vm1797, %v1736
        %1822 = vst.msk [vmem:[#allocation3 + $0xc0] sm:$0xff] %vm1797, %v1738
        %1823 = vst.msk [vmem:[#allocation3 + $0xc8] sm:$0xff] %vm1797, %v1740
        %1824 = vst.msk [vmem:[#allocation3 + $0xd0] sm:$0xff] %vm1797, %v1742
        %1825 = vst.msk [vmem:[#allocation3 + $0xd8] sm:$0xff] %vm1797, %v1744
        %1826 = vst.msk [vmem:[#allocation3 + $0xe0] sm:$0xff] %vm1797, %v1746
        %1827 = vst.msk [vmem:[#allocation3 + $0xe8] sm:$0xff] %vm1797, %v1748
        %1828 = vst.msk [vmem:[#allocation3 + $0xf0] sm:$0xff] %vm1797, %v1750
        %1829 = vst.msk [vmem:[#allocation3 + $0xf8] sm:$0xff] %vm1797, %v1752
        %1830 = vst.msk [vmem:[#allocation3 + $0x100] sm:$0xff] %vm1797, %v1754
        %1831 = vst.msk [vmem:[#allocation3 + $0x108] sm:$0xff] %vm1797, %v1756
        %1832 = vst.msk [vmem:[#allocation3 + $0x110] sm:$0xff] %vm1797, %v1758
        %1833 = vst.msk [vmem:[#allocation3 + $0x118] sm:$0xff] %vm1797, %v1760
        %v1834 = vld [vmem:[%s220 + $0x26] sm:$0xff]
        %v1835 = vld [vmem:[%s220 + $0x2e] sm:$0xff]
        %v1836 = vld [vmem:[%s220 + $0x36] sm:$0xff]
        %v1837 = vld [vmem:[%s220 + $0x3e] sm:$0xff]
        %v1838 = vld [vmem:[%s220 + $0x46] sm:$0xff]
        %v1839 = vld [vmem:[%s220 + $0x4e] sm:$0xff]
        %v1840 = vld [vmem:[%s220 + $0x56] sm:$0xff]
        %v1841 = vld [vmem:[%s220 + $0x5e] sm:$0xff]
        %v1842 = vld [vmem:[%s220 + $0x66] sm:$0xff]
        %v1843 = vld [vmem:[%s220 + $0x6e] sm:$0xff]
        %v1844 = vld [vmem:[%s220 + $0x76] sm:$0xff]
        %v1845 = vld [vmem:[%s220 + $0x7e] sm:$0xff]
        %v1846 = vld [vmem:[%s220 + $0x86] sm:$0xff]
        %v1847 = vld [vmem:[%s220 + $0x8e] sm:$0xff]
        %v1848 = vld [vmem:[%s220 + $0x96] sm:$0xff]
        %v1849 = vld [vmem:[%s220 + $0x9e] sm:$0xff]
        %v1850 = vld [vmem:[%s220 + $0xa6] sm:$0xff]
        %v1851 = vld [vmem:[%s220 + $0xae] sm:$0xff]
        %v1852 = vld [vmem:[%s220 + $0xb6] sm:$0xff]
        %v1853 = vld [vmem:[%s220 + $0xbe] sm:$0xff]
        %v1854 = vld [vmem:[%s220 + $0xc6] sm:$0xff]
        %v1855 = vld [vmem:[%s220 + $0xce] sm:$0xff]
        %v1856 = vld [vmem:[%s220 + $0xd6] sm:$0xff]
        %v1857 = vld [vmem:[%s220 + $0xde] sm:$0xff]
        %v1858 = vld [vmem:[%s220 + $0xe6] sm:$0xff]
        %v1859 = vld [vmem:[%s220 + $0xee] sm:$0xff]
        %v1860 = vld [vmem:[%s220 + $0xf6] sm:$0xff]
        %v1861 = vld [vmem:[%s220 + $0xfe] sm:$0xff]
        %v1862 = vld [vmem:[%s220 + $0x106] sm:$0xff]
        %v1863 = vld [vmem:[%s220 + $0x10e] sm:$0xff]
        %v1864 = vld [vmem:[%s220 + $0x116] sm:$0xff]
        %v1865 = vld [vmem:[%s220 + $0x11e] sm:$0xff]
        %v1866 = vld [vmem:[%s220 + $0x126] sm:$0xff]
        %v1867 = vld [vmem:[%s220 + $0x12e] sm:$0xff]
        %v1868 = vld [vmem:[%s220 + $0x136] sm:$0xff]
        %v1869 = vld [vmem:[%s220 + $0x13e] sm:$0xff]
        %1906 = vrot.lane.b32.xlu0 %v1834, 32
        %v1907 = vpop.permute.xlu0 %1906
        %1908 = vrot.lane.b32.xlu0 %v1835, 32
        %v1909 = vpop.permute.xlu0 %1908
        %1910 = vrot.lane.b32.xlu0 %v1836, 32
        %v1911 = vpop.permute.xlu0 %1910
        %1912 = vrot.lane.b32.xlu0 %v1837, 32
        %v1913 = vpop.permute.xlu0 %1912
        %1914 = vrot.lane.b32.xlu0 %v1838, 32
        %v1915 = vpop.permute.xlu0 %1914
        %1916 = vrot.lane.b32.xlu0 %v1839, 32
        %v1917 = vpop.permute.xlu0 %1916
        %1918 = vrot.lane.b32.xlu0 %v1840, 32
        %v1919 = vpop.permute.xlu0 %1918
        %1920 = vrot.lane.b32.xlu0 %v1841, 32
        %v1921 = vpop.permute.xlu0 %1920
        %1922 = vrot.lane.b32.xlu0 %v1842, 32
        %v1923 = vpop.permute.xlu0 %1922
        %1924 = vrot.lane.b32.xlu0 %v1843, 32
        %v1925 = vpop.permute.xlu0 %1924
        %1926 = vrot.lane.b32.xlu0 %v1844, 32
        %v1927 = vpop.permute.xlu0 %1926
        %1928 = vrot.lane.b32.xlu0 %v1845, 32
        %v1929 = vpop.permute.xlu0 %1928
        %1930 = vrot.lane.b32.xlu0 %v1846, 32
        %v1931 = vpop.permute.xlu0 %1930
        %1932 = vrot.lane.b32.xlu0 %v1847, 32
        %v1933 = vpop.permute.xlu0 %1932
        %1934 = vrot.lane.b32.xlu0 %v1848, 32
        %v1935 = vpop.permute.xlu0 %1934
        %1936 = vrot.lane.b32.xlu0 %v1849, 32
        %v1937 = vpop.permute.xlu0 %1936
        %1938 = vrot.lane.b32.xlu0 %v1850, 32
        %v1939 = vpop.permute.xlu0 %1938
        %1940 = vrot.lane.b32.xlu0 %v1851, 32
        %v1941 = vpop.permute.xlu0 %1940
        %1942 = vrot.lane.b32.xlu0 %v1852, 32
        %v1943 = vpop.permute.xlu0 %1942
        %1944 = vrot.lane.b32.xlu0 %v1853, 32
        %v1945 = vpop.permute.xlu0 %1944
        %1946 = vrot.lane.b32.xlu0 %v1854, 32
        %v1947 = vpop.permute.xlu0 %1946
        %1948 = vrot.lane.b32.xlu0 %v1855, 32
        %v1949 = vpop.permute.xlu0 %1948
        %1950 = vrot.lane.b32.xlu0 %v1856, 32
        %v1951 = vpop.permute.xlu0 %1950
        %1952 = vrot.lane.b32.xlu0 %v1857, 32
        %v1953 = vpop.permute.xlu0 %1952
        %1954 = vrot.lane.b32.xlu0 %v1858, 32
        %v1955 = vpop.permute.xlu0 %1954
        %1956 = vrot.lane.b32.xlu0 %v1859, 32
        %v1957 = vpop.permute.xlu0 %1956
        %1958 = vrot.lane.b32.xlu0 %v1860, 32
        %v1959 = vpop.permute.xlu0 %1958
        %1960 = vrot.lane.b32.xlu0 %v1861, 32
        %v1961 = vpop.permute.xlu0 %1960
        %1962 = vrot.lane.b32.xlu0 %v1862, 32
        %v1963 = vpop.permute.xlu0 %1962
        %1964 = vrot.lane.b32.xlu0 %v1863, 32
        %v1965 = vpop.permute.xlu0 %1964
        %1966 = vrot.lane.b32.xlu0 %v1864, 32
        %v1967 = vpop.permute.xlu0 %1966
        %1968 = vrot.lane.b32.xlu0 %v1865, 32
        %v1969 = vpop.permute.xlu0 %1968
        %1970 = vrot.lane.b32.xlu0 %v1866, 32
        %v1971 = vpop.permute.xlu0 %1970
        %1972 = vrot.lane.b32.xlu0 %v1867, 32
        %v1973 = vpop.permute.xlu0 %1972
        %1974 = vrot.lane.b32.xlu0 %v1868, 32
        %v1975 = vpop.permute.xlu0 %1974
        %1976 = vrot.lane.b32.xlu0 %v1869, 32
        %v1977 = vpop.permute.xlu0 %1976
        %vm2014 = vcmask 294144
        %2015 = vst.msk [vmem:[#allocation3] sm:$0xff] %vm2014, %v1907
        %2016 = vst.msk [vmem:[#allocation3 + $0x8] sm:$0xff] %vm2014, %v1909
        %2017 = vst.msk [vmem:[#allocation3 + $0x10] sm:$0xff] %vm2014, %v1911
        %2018 = vst.msk [vmem:[#allocation3 + $0x18] sm:$0xff] %vm2014, %v1913
        %2019 = vst.msk [vmem:[#allocation3 + $0x20] sm:$0xff] %vm2014, %v1915
        %2020 = vst.msk [vmem:[#allocation3 + $0x28] sm:$0xff] %vm2014, %v1917
        %2021 = vst.msk [vmem:[#allocation3 + $0x30] sm:$0xff] %vm2014, %v1919
        %2022 = vst.msk [vmem:[#allocation3 + $0x38] sm:$0xff] %vm2014, %v1921
        %2023 = vst.msk [vmem:[#allocation3 + $0x40] sm:$0xff] %vm2014, %v1923
        %2024 = vst.msk [vmem:[#allocation3 + $0x48] sm:$0xff] %vm2014, %v1925
        %2025 = vst.msk [vmem:[#allocation3 + $0x50] sm:$0xff] %vm2014, %v1927
        %2026 = vst.msk [vmem:[#allocation3 + $0x58] sm:$0xff] %vm2014, %v1929
        %2027 = vst.msk [vmem:[#allocation3 + $0x60] sm:$0xff] %vm2014, %v1931
        %2028 = vst.msk [vmem:[#allocation3 + $0x68] sm:$0xff] %vm2014, %v1933
        %2029 = vst.msk [vmem:[#allocation3 + $0x70] sm:$0xff] %vm2014, %v1935
        %2030 = vst.msk [vmem:[#allocation3 + $0x78] sm:$0xff] %vm2014, %v1937
        %2031 = vst.msk [vmem:[#allocation3 + $0x80] sm:$0xff] %vm2014, %v1939
        %2032 = vst.msk [vmem:[#allocation3 + $0x88] sm:$0xff] %vm2014, %v1941
        %2033 = vst.msk [vmem:[#allocation3 + $0x90] sm:$0xff] %vm2014, %v1943
        %2034 = vst.msk [vmem:[#allocation3 + $0x98] sm:$0xff] %vm2014, %v1945
        %2035 = vst.msk [vmem:[#allocation3 + $0xa0] sm:$0xff] %vm2014, %v1947
        %2036 = vst.msk [vmem:[#allocation3 + $0xa8] sm:$0xff] %vm2014, %v1949
        %2037 = vst.msk [vmem:[#allocation3 + $0xb0] sm:$0xff] %vm2014, %v1951
        %2038 = vst.msk [vmem:[#allocation3 + $0xb8] sm:$0xff] %vm2014, %v1953
        %2039 = vst.msk [vmem:[#allocation3 + $0xc0] sm:$0xff] %vm2014, %v1955
        %2040 = vst.msk [vmem:[#allocation3 + $0xc8] sm:$0xff] %vm2014, %v1957
        %2041 = vst.msk [vmem:[#allocation3 + $0xd0] sm:$0xff] %vm2014, %v1959
        %2042 = vst.msk [vmem:[#allocation3 + $0xd8] sm:$0xff] %vm2014, %v1961
        %2043 = vst.msk [vmem:[#allocation3 + $0xe0] sm:$0xff] %vm2014, %v1963
        %2044 = vst.msk [vmem:[#allocation3 + $0xe8] sm:$0xff] %vm2014, %v1965
        %2045 = vst.msk [vmem:[#allocation3 + $0xf0] sm:$0xff] %vm2014, %v1967
        %2046 = vst.msk [vmem:[#allocation3 + $0xf8] sm:$0xff] %vm2014, %v1969
        %2047 = vst.msk [vmem:[#allocation3 + $0x100] sm:$0xff] %vm2014, %v1971
        %2048 = vst.msk [vmem:[#allocation3 + $0x108] sm:$0xff] %vm2014, %v1973
        %2049 = vst.msk [vmem:[#allocation3 + $0x110] sm:$0xff] %vm2014, %v1975
        %2050 = vst.msk [vmem:[#allocation3 + $0x118] sm:$0xff] %vm2014, %v1977
        %v2051 = vld [vmem:[#allocation3] sm:$0xff]
        %v2052 = vld [vmem:[#allocation3 + $0x8] sm:$0xff]
        %v2053 = vld [vmem:[#allocation3 + $0x10] sm:$0xff]
        %v2054 = vld [vmem:[#allocation3 + $0x18] sm:$0xff]
        %v2055 = vld [vmem:[#allocation3 + $0x20] sm:$0xff]
        %v2056 = vld [vmem:[#allocation3 + $0x28] sm:$0xff]
        %v2057 = vld [vmem:[#allocation3 + $0x30] sm:$0xff]
        %v2058 = vld [vmem:[#allocation3 + $0x38] sm:$0xff]
        %v2059 = vld [vmem:[#allocation3 + $0x40] sm:$0xff]
        %v2060 = vld [vmem:[#allocation3 + $0x48] sm:$0xff]
        %v2061 = vld [vmem:[#allocation3 + $0x50] sm:$0xff]
        %v2062 = vld [vmem:[#allocation3 + $0x58] sm:$0xff]
        %v2063 = vld [vmem:[#allocation3 + $0x60] sm:$0xff]
        %v2064 = vld [vmem:[#allocation3 + $0x68] sm:$0xff]
        %v2065 = vld [vmem:[#allocation3 + $0x70] sm:$0xff]
        %v2066 = vld [vmem:[#allocation3 + $0x78] sm:$0xff]
        %v2067 = vld [vmem:[#allocation3 + $0x80] sm:$0xff]
        %v2068 = vld [vmem:[#allocation3 + $0x88] sm:$0xff]
        %v2069 = vld [vmem:[#allocation3 + $0x90] sm:$0xff]
        %v2070 = vld [vmem:[#allocation3 + $0x98] sm:$0xff]
        %v2071 = vld [vmem:[#allocation3 + $0xa0] sm:$0xff]
        %v2072 = vld [vmem:[#allocation3 + $0xa8] sm:$0xff]
        %v2073 = vld [vmem:[#allocation3 + $0xb0] sm:$0xff]
        %v2074 = vld [vmem:[#allocation3 + $0xb8] sm:$0xff]
        %v2075 = vld [vmem:[#allocation3 + $0xc0] sm:$0xff]
        %v2076 = vld [vmem:[#allocation3 + $0xc8] sm:$0xff]
        %v2077 = vld [vmem:[#allocation3 + $0xd0] sm:$0xff]
        %v2078 = vld [vmem:[#allocation3 + $0xd8] sm:$0xff]
        %v2079 = vld [vmem:[#allocation3 + $0xe0] sm:$0xff]
        %v2080 = vld [vmem:[#allocation3 + $0xe8] sm:$0xff]
        %v2081 = vld [vmem:[#allocation3 + $0xf0] sm:$0xff]
        %v2082 = vld [vmem:[#allocation3 + $0xf8] sm:$0xff]
        %v2083 = vld [vmem:[#allocation3 + $0x100] sm:$0xff]
        %v2084 = vld [vmem:[#allocation3 + $0x108] sm:$0xff]
        %v2085 = vld [vmem:[#allocation3 + $0x110] sm:$0xff]
        %v2086 = vld [vmem:[#allocation3 + $0x118] sm:$0xff]
        %v2087 = vld [vmem:[%s1] sm:$0xff]
        %v2088 = vld [vmem:[%s1 + $0x8] sm:$0xff]
        %v2089 = vld [vmem:[%s1 + $0x10] sm:$0xff]
        %v2090 = vld [vmem:[%s1 + $0x18] sm:$0xff]
        %v2091 = vld [vmem:[%s1 + $0x20] sm:$0xf]
        %vm2092 = vcmask 293888
        %v2094 = vsel %vm2092, %v2051, 0
        %v2097 = vsel %vm2092, %v2052, 0
        %v2100 = vsel %vm2092, %v2053, 0
        %v2103 = vsel %vm2092, %v2054, 0
        %v2106 = vsel %vm2092, %v2055, 0
        %v2109 = vsel %vm2092, %v2056, 0
        %v2112 = vsel %vm2092, %v2057, 0
        %v2115 = vsel %vm2092, %v2058, 0
        %v2118 = vsel %vm2092, %v2059, 0
        %v2121 = vsel %vm2092, %v2060, 0
        %v2124 = vsel %vm2092, %v2061, 0
        %v2127 = vsel %vm2092, %v2062, 0
        %v2130 = vsel %vm2092, %v2063, 0
        %v2133 = vsel %vm2092, %v2064, 0
        %v2136 = vsel %vm2092, %v2065, 0
        %v2139 = vsel %vm2092, %v2066, 0
        %v2142 = vsel %vm2092, %v2067, 0
        %v2145 = vsel %vm2092, %v2068, 0
        %v2148 = vsel %vm2092, %v2069, 0
        %v2151 = vsel %vm2092, %v2070, 0
        %v2154 = vsel %vm2092, %v2071, 0
        %v2157 = vsel %vm2092, %v2072, 0
        %v2160 = vsel %vm2092, %v2073, 0
        %v2163 = vsel %vm2092, %v2074, 0
        %v2166 = vsel %vm2092, %v2075, 0
        %v2169 = vsel %vm2092, %v2076, 0
        %v2172 = vsel %vm2092, %v2077, 0
        %v2175 = vsel %vm2092, %v2078, 0
        %v2178 = vsel %vm2092, %v2079, 0
        %v2181 = vsel %vm2092, %v2080, 0
        %v2184 = vsel %vm2092, %v2081, 0
        %v2187 = vsel %vm2092, %v2082, 0
        %v2190 = vsel %vm2092, %v2083, 0
        %v2193 = vsel %vm2092, %v2084, 0
        %v2196 = vsel %vm2092, %v2085, 0
        %v2199 = vsel %vm2092, %v2086, 0
        %vm2201 = vcmask 1043456
        %v2203 = vsel %vm2201, %v2091, 0
        %2205 = vmatprep.subr.mxu0 0.0
        %2206 = vmatpush1.msra.mxu0 %v2087
        %2207 = vmatprep.subr.mxu0 0.0
        %2208 = vmatpush1.msra.mxu0 %v2088
        %2209 = vmatprep.subr.mxu0 0.0
        %2210 = vmatpush1.msra.mxu0 %v2089
        %2211 = vmatprep.subr.mxu0 0.0
        %2212 = vmatpush1.msra.mxu0 %v2090
        %2213 = vmatprep.subr.mxu0 0.0
        %2214 = vmatpush1.msra.mxu0 %v2203
        %2215 = vmatprep.subr.mxu0 0.0
        %2216 = vmatpush1.msra.mxu0 0.0
        %2217 = vmatprep.subr.mxu0 0.0
        %2218 = vmatpush1.msra.mxu0 0.0
        %2219 = vmatprep.subr.mxu0 0.0
        %2220 = vmatpush1.msra.mxu0 0.0
        %2221 = vmatprep.subr.mxu0 0.0
        %2222 = vmatpush1.msra.mxu0 0.0
        %2223 = vmatprep.subr.mxu0 0.0
        %2224 = vmatpush1.msra.mxu0 0.0
        %2225 = vmatprep.subr.mxu0 0.0
        %2226 = vmatpush1.msra.mxu0 0.0
        %2227 = vmatprep.subr.mxu0 0.0
        %2228 = vmatpush1.msra.mxu0 0.0
        %2229 = vmatprep.subr.mxu0 0.0
        %2230 = vmatpush1.msra.mxu0 0.0
        %2231 = vmatprep.subr.mxu0 0.0
        %2232 = vmatpush1.msra.mxu0 0.0
        %2233 = vmatprep.subr.mxu0 0.0
        %2234 = vmatpush1.msra.mxu0 0.0
        %2235 = vmatprep.subr.mxu0 0.0
        %2236 = vmatpush1.msra.mxu0 0.0
        %2237 = vmatprep.subr.mxu0 0.0
        %2238 = vmatpush1.msra.mxu0 0.0
        %2239 = vmatprep.subr.mxu0 0.0
        %2240 = vmatpush1.msra.mxu0 0.0
        %2241 = vmatprep.subr.mxu0 0.0
        %2242 = vmatpush1.msra.mxu0 0.0
        %2243 = vmatprep.subr.mxu0 0.0
        %2244 = vmatpush1.msra.mxu0 0.0
        %2245 = vmatprep.subr.mxu0 0.0
        %2246 = vmatpush1.msra.mxu0 0.0
        %2247 = vmatprep.subr.mxu0 0.0
        %2248 = vmatpush1.msra.mxu0 0.0
        %2249 = vmatprep.subr.mxu0 0.0
        %2250 = vmatpush1.msra.mxu0 0.0
        %2251 = vmatprep.subr.mxu0 0.0
        %2252 = vmatpush1.msra.mxu0 0.0
        %2253 = vmatprep.subr.mxu0 0.0
        %2254 = vmatpush1.msra.mxu0 0.0
        %2255 = vmatprep.subr.mxu0 0.0
        %2256 = vmatpush1.msra.mxu0 0.0
        %2257 = vmatprep.subr.mxu0 0.0
        %2258 = vmatpush1.msra.mxu0 0.0
        %2259 = vmatprep.subr.mxu0 0.0
        %2260 = vmatpush1.msra.mxu0 0.0
        %2261 = vmatprep.subr.mxu0 0.0
        %2262 = vmatpush1.msra.mxu0 0.0
        %2263 = vmatprep.subr.mxu0 0.0
        %2264 = vmatpush1.msra.mxu0 0.0
        %2265 = vmatprep.subr.mxu0 0.0
        %2266 = vmatpush1.msra.mxu0 0.0
        %2267 = vmatprep.subr.mxu0 0.0
        %2268 = vmatpush1.msra.mxu0 0.0
        %2269 = vmatprep.mubr.f32.mxu0 0.0
        %2270 = vmatmul.mubr.f32.gmra.mrb[0].mxu0 %v2094
        %v2271 = vpop.f32.mrb[0].mxu0
        %v2272 = vadd.f32 0.0, %v2271
        %v2273 = vpop.f32.mrb[0].mxu0
        %2274 = vmatprep.mubr.f32.mxu0 0.0
        %2275 = vmatmul.mubr.f32.gmra.mrb[0].mxu0 %v2097
        %v2276 = vpop.f32.mrb[0].mxu0
        %v2277 = vadd.f32 0.0, %v2276
        %v2278 = vpop.f32.mrb[0].mxu0
        %2279 = vmatprep.mubr.f32.mxu0 0.0
        %2280 = vmatmul.mubr.f32.gmra.mrb[0].mxu0 %v2100
        %v2281 = vpop.f32.mrb[0].mxu0
        %v2282 = vadd.f32 0.0, %v2281
        %v2283 = vpop.f32.mrb[0].mxu0
        %2284 = vmatprep.mubr.f32.mxu0 0.0
        %2285 = vmatmul.mubr.f32.gmra.mrb[0].mxu0 %v2103
        %v2286 = vpop.f32.mrb[0].mxu0
        %v2287 = vadd.f32 0.0, %v2286
        %v2288 = vpop.f32.mrb[0].mxu0
        %2289 = vmatprep.mubr.f32.mxu0 0.0
        %2290 = vmatmul.mubr.f32.gmra.mrb[0].mxu0 %v2106
        %v2291 = vpop.f32.mrb[0].mxu0
        %v2292 = vadd.f32 0.0, %v2291
        %v2293 = vpop.f32.mrb[0].mxu0
        %2294 = vmatprep.mubr.f32.mxu0 0.0
        %2295 = vmatmul.mubr.f32.gmra.mrb[0].mxu0 %v2109
        %v2296 = vpop.f32.mrb[0].mxu0
        %v2297 = vadd.f32 0.0, %v2296
        %v2298 = vpop.f32.mrb[0].mxu0
        %2299 = vmatprep.mubr.f32.mxu0 0.0
        %2300 = vmatmul.mubr.f32.gmra.mrb[0].mxu0 %v2112
        %v2301 = vpop.f32.mrb[0].mxu0
        %v2302 = vadd.f32 0.0, %v2301
        %v2303 = vpop.f32.mrb[0].mxu0
        %2304 = vmatprep.mubr.f32.mxu0 0.0
        %2305 = vmatmul.mubr.f32.gmra.mrb[0].mxu0 %v2115
        %v2306 = vpop.f32.mrb[0].mxu0
        %v2307 = vadd.f32 0.0, %v2306
        %v2308 = vpop.f32.mrb[0].mxu0
        %2309 = vmatprep.mubr.f32.mxu0 0.0
        %2310 = vmatmul.mubr.f32.gmra.mrb[0].mxu0 %v2118
        %v2311 = vpop.f32.mrb[0].mxu0
        %v2312 = vadd.f32 0.0, %v2311
        %v2313 = vpop.f32.mrb[0].mxu0
        %2314 = vmatprep.mubr.f32.mxu0 0.0
        %2315 = vmatmul.mubr.f32.gmra.mrb[0].mxu0 %v2121
        %v2316 = vpop.f32.mrb[0].mxu0
        %v2317 = vadd.f32 0.0, %v2316
        %v2318 = vpop.f32.mrb[0].mxu0
        %2319 = vmatprep.mubr.f32.mxu0 0.0
        %2320 = vmatmul.mubr.f32.gmra.mrb[0].mxu0 %v2124
        %v2321 = vpop.f32.mrb[0].mxu0
        %v2322 = vadd.f32 0.0, %v2321
        %v2323 = vpop.f32.mrb[0].mxu0
        %2324 = vmatprep.mubr.f32.mxu0 0.0
        %2325 = vmatmul.mubr.f32.gmra.mrb[0].mxu0 %v2127
        %v2326 = vpop.f32.mrb[0].mxu0
        %v2327 = vadd.f32 0.0, %v2326
        %v2328 = vpop.f32.mrb[0].mxu0
        %2329 = vmatprep.mubr.f32.mxu0 0.0
        %2330 = vmatmul.mubr.f32.gmra.mrb[0].mxu0 %v2130
        %v2331 = vpop.f32.mrb[0].mxu0
        %v2332 = vadd.f32 0.0, %v2331
        %v2333 = vpop.f32.mrb[0].mxu0
        %2334 = vmatprep.mubr.f32.mxu0 0.0
        %2335 = vmatmul.mubr.f32.gmra.mrb[0].mxu0 %v2133
        %v2336 = vpop.f32.mrb[0].mxu0
        %v2337 = vadd.f32 0.0, %v2336
        %v2338 = vpop.f32.mrb[0].mxu0
        %2339 = vmatprep.mubr.f32.mxu0 0.0
        %2340 = vmatmul.mubr.f32.gmra.mrb[0].mxu0 %v2136
        %v2341 = vpop.f32.mrb[0].mxu0
        %v2342 = vadd.f32 0.0, %v2341
        %v2343 = vpop.f32.mrb[0].mxu0
        %2344 = vmatprep.mubr.f32.mxu0 0.0
        %2345 = vmatmul.mubr.f32.gmra.mrb[0].mxu0 %v2139
        %v2346 = vpop.f32.mrb[0].mxu0
        %v2347 = vadd.f32 0.0, %v2346
        %v2348 = vpop.f32.mrb[0].mxu0
        %2349 = vmatprep.mubr.f32.mxu0 0.0
        %2350 = vmatmul.mubr.f32.gmra.mrb[0].mxu0 %v2142
        %v2351 = vpop.f32.mrb[0].mxu0
        %v2352 = vadd.f32 0.0, %v2351
        %v2353 = vpop.f32.mrb[0].mxu0
        %2354 = vmatprep.mubr.f32.mxu0 0.0
        %2355 = vmatmul.mubr.f32.gmra.mrb[0].mxu0 %v2145
        %v2356 = vpop.f32.mrb[0].mxu0
        %v2357 = vadd.f32 0.0, %v2356
        %v2358 = vpop.f32.mrb[0].mxu0
        %2359 = vmatprep.mubr.f32.mxu0 0.0
        %2360 = vmatmul.mubr.f32.gmra.mrb[0].mxu0 %v2148
        %v2361 = vpop.f32.mrb[0].mxu0
        %v2362 = vadd.f32 0.0, %v2361
        %v2363 = vpop.f32.mrb[0].mxu0
        %2364 = vmatprep.mubr.f32.mxu0 0.0
        %2365 = vmatmul.mubr.f32.gmra.mrb[0].mxu0 %v2151
        %v2366 = vpop.f32.mrb[0].mxu0
        %v2367 = vadd.f32 0.0, %v2366
        %v2368 = vpop.f32.mrb[0].mxu0
        %2369 = vmatprep.mubr.f32.mxu0 0.0
        %2370 = vmatmul.mubr.f32.gmra.mrb[0].mxu0 %v2154
        %v2371 = vpop.f32.mrb[0].mxu0
        %v2372 = vadd.f32 0.0, %v2371
        %v2373 = vpop.f32.mrb[0].mxu0
        %2374 = vmatprep.mubr.f32.mxu0 0.0
        %2375 = vmatmul.mubr.f32.gmra.mrb[0].mxu0 %v2157
        %v2376 = vpop.f32.mrb[0].mxu0
        %v2377 = vadd.f32 0.0, %v2376
        %v2378 = vpop.f32.mrb[0].mxu0
        %2379 = vmatprep.mubr.f32.mxu0 0.0
        %2380 = vmatmul.mubr.f32.gmra.mrb[0].mxu0 %v2160
        %v2381 = vpop.f32.mrb[0].mxu0
        %v2382 = vadd.f32 0.0, %v2381
        %v2383 = vpop.f32.mrb[0].mxu0
        %2384 = vmatprep.mubr.f32.mxu0 0.0
        %2385 = vmatmul.mubr.f32.gmra.mrb[0].mxu0 %v2163
        %v2386 = vpop.f32.mrb[0].mxu0
        %v2387 = vadd.f32 0.0, %v2386
        %v2388 = vpop.f32.mrb[0].mxu0
        %2389 = vmatprep.mubr.f32.mxu0 0.0
        %2390 = vmatmul.mubr.f32.gmra.mrb[0].mxu0 %v2166
        %v2391 = vpop.f32.mrb[0].mxu0
        %v2392 = vadd.f32 0.0, %v2391
        %v2393 = vpop.f32.mrb[0].mxu0
        %2394 = vmatprep.mubr.f32.mxu0 0.0
        %2395 = vmatmul.mubr.f32.gmra.mrb[0].mxu0 %v2169
        %v2396 = vpop.f32.mrb[0].mxu0
        %v2397 = vadd.f32 0.0, %v2396
        %v2398 = vpop.f32.mrb[0].mxu0
        %2399 = vmatprep.mubr.f32.mxu0 0.0
        %2400 = vmatmul.mubr.f32.gmra.mrb[0].mxu0 %v2172
        %v2401 = vpop.f32.mrb[0].mxu0
        %v2402 = vadd.f32 0.0, %v2401
        %v2403 = vpop.f32.mrb[0].mxu0
        %2404 = vmatprep.mubr.f32.mxu0 0.0
        %2405 = vmatmul.mubr.f32.gmra.mrb[0].mxu0 %v2175
        %v2406 = vpop.f32.mrb[0].mxu0
        %v2407 = vadd.f32 0.0, %v2406
        %v2408 = vpop.f32.mrb[0].mxu0
        %2409 = vmatprep.mubr.f32.mxu0 0.0
        %2410 = vmatmul.mubr.f32.gmra.mrb[0].mxu0 %v2178
        %v2411 = vpop.f32.mrb[0].mxu0
        %v2412 = vadd.f32 0.0, %v2411
        %v2413 = vpop.f32.mrb[0].mxu0
        %2414 = vmatprep.mubr.f32.mxu0 0.0
        %2415 = vmatmul.mubr.f32.gmra.mrb[0].mxu0 %v2181
        %v2416 = vpop.f32.mrb[0].mxu0
        %v2417 = vadd.f32 0.0, %v2416
        %v2418 = vpop.f32.mrb[0].mxu0
        %2419 = vmatprep.mubr.f32.mxu0 0.0
        %2420 = vmatmul.mubr.f32.gmra.mrb[0].mxu0 %v2184
        %v2421 = vpop.f32.mrb[0].mxu0
        %v2422 = vadd.f32 0.0, %v2421
        %v2423 = vpop.f32.mrb[0].mxu0
        %2424 = vmatprep.mubr.f32.mxu0 0.0
        %2425 = vmatmul.mubr.f32.gmra.mrb[0].mxu0 %v2187
        %v2426 = vpop.f32.mrb[0].mxu0
        %v2427 = vadd.f32 0.0, %v2426
        %v2428 = vpop.f32.mrb[0].mxu0
        %2429 = vmatprep.mubr.f32.mxu0 0.0
        %2430 = vmatmul.mubr.f32.gmra.mrb[0].mxu0 %v2190
        %v2431 = vpop.f32.mrb[0].mxu0
        %v2432 = vadd.f32 0.0, %v2431
        %v2433 = vpop.f32.mrb[0].mxu0
        %2434 = vmatprep.mubr.f32.mxu0 0.0
        %2435 = vmatmul.mubr.f32.gmra.mrb[0].mxu0 %v2193
        %v2436 = vpop.f32.mrb[0].mxu0
        %v2437 = vadd.f32 0.0, %v2436
        %v2438 = vpop.f32.mrb[0].mxu0
        %2439 = vmatprep.mubr.f32.mxu0 0.0
        %2440 = vmatmul.mubr.f32.gmra.mrb[0].mxu0 %v2196
        %v2441 = vpop.f32.mrb[0].mxu0
        %v2442 = vadd.f32 0.0, %v2441
        %v2443 = vpop.f32.mrb[0].mxu0
        %2444 = vmatprep.mubr.f32.mxu0 0.0
        %2445 = vmatmul.mubr.f32.gmra.mrb[0].mxu0 %v2199
        %v2446 = vpop.f32.mrb[0].mxu0
        %v2447 = vadd.f32 0.0, %v2446
        %v2448 = vpop.f32.mrb[0].mxu0
        %2449 = vdwg.mxu0
        %v2450 = vlaneseq
        %v2451 = vshrl.u32 %v2450, 7
        %v2452 = vadd.s32 %v2451, 8
        %v2453 = vadd.s32 %v2451, 16
        %v2454 = vadd.s32 %v2451, 24
        %v2455 = vadd.s32 %v2451, 32
        %v2456 = vadd.s32 %v2451, 40
        %v2457 = vadd.s32 %v2451, 48
        %v2458 = vadd.s32 %v2451, 56
        %v2459 = vadd.s32 %v2451, 64
        %v2460 = vadd.s32 %v2451, 72
        %v2461 = vadd.s32 %v2451, 80
        %v2462 = vadd.s32 %v2451, 88
        %v2463 = vadd.s32 %v2451, 96
        %v2464 = vadd.s32 %v2451, 104
        %v2465 = vadd.s32 %v2451, 112
        %v2466 = vadd.s32 %v2451, 120
        %v2467 = vadd.s32 %v2451, 128
        %v2468 = vadd.s32 %v2451, 136
        %v2469 = vadd.s32 %v2451, 144
        %v2470 = vadd.s32 %v2451, 152
        %v2471 = vadd.s32 %v2451, 160
        %v2472 = vadd.s32 %v2451, 168
        %v2473 = vadd.s32 %v2451, 176
        %v2474 = vadd.s32 %v2451, 184
        %v2475 = vadd.s32 %v2451, 192
        %v2476 = vadd.s32 %v2451, 200
        %v2477 = vadd.s32 %v2451, 208
        %v2478 = vadd.s32 %v2451, 216
        %v2479 = vadd.s32 %v2451, 224
        %v2480 = vadd.s32 %v2451, 232
        %v2481 = vadd.s32 %v2451, 240
        %v2482 = vadd.s32 %v2451, 248
        %v2483 = vadd.s32 %v2451, 256
        %v2484 = vadd.s32 %v2451, 264
        %v2485 = vadd.s32 %v2451, 272
        %v2486 = vadd.s32 %v2451, 280
        %vm2487 = vcmp.lt.s32.totalorder %v2451, 0
        %v2488 = vsub.s32 0, %v2451
        %v2489 = vsel %vm2487, %v2488, %v2451
        %v2490 = vmul.u32.u64.compose %v2489, 3817748708
        %v2491 = vextract.low.u32 %v2490
        %v2492 = vextract.high.u32 %v2490
        %v2493 = vshrl.u32 %v2492, 4
        %v2494 = vmul.u32 %v2493, 18
        %v2495 = vsub.s32 %v2489, %v2494
        %v2496 = vsub.s32 0, %v2495
        %v2497 = vsel %vm2487, %v2496, %v2495
        %vm2498 = vcmp.lt.s32.totalorder %v2452, 0
        %v2499 = vsub.s32 0, %v2452
        %v2500 = vsel %vm2498, %v2499, %v2452
        %v2501 = vmul.u32.u64.compose %v2500, 3817748708
        %v2502 = vextract.low.u32 %v2501
        %v2503 = vextract.high.u32 %v2501
        %v2504 = vshrl.u32 %v2503, 4
        %v2505 = vmul.u32 %v2504, 18
        %v2506 = vsub.s32 %v2500, %v2505
        %v2507 = vsub.s32 0, %v2506
        %v2508 = vsel %vm2498, %v2507, %v2506
        %vm2509 = vcmp.lt.s32.totalorder %v2453, 0
        %v2510 = vsub.s32 0, %v2453
        %v2511 = vsel %vm2509, %v2510, %v2453
        %v2512 = vmul.u32.u64.compose %v2511, 3817748708
        %v2513 = vextract.low.u32 %v2512
        %v2514 = vextract.high.u32 %v2512
        %v2515 = vshrl.u32 %v2514, 4
        %v2516 = vmul.u32 %v2515, 18
        %v2517 = vsub.s32 %v2511, %v2516
        %v2518 = vsub.s32 0, %v2517
        %v2519 = vsel %vm2509, %v2518, %v2517
        %vm2520 = vcmp.lt.s32.totalorder %v2454, 0
        %v2521 = vsub.s32 0, %v2454
        %v2522 = vsel %vm2520, %v2521, %v2454
        %v2523 = vmul.u32.u64.compose %v2522, 3817748708
        %v2524 = vextract.low.u32 %v2523
        %v2525 = vextract.high.u32 %v2523
        %v2526 = vshrl.u32 %v2525, 4
        %v2527 = vmul.u32 %v2526, 18
        %v2528 = vsub.s32 %v2522, %v2527
        %v2529 = vsub.s32 0, %v2528
        %v2530 = vsel %vm2520, %v2529, %v2528
        %vm2531 = vcmp.lt.s32.totalorder %v2455, 0
        %v2532 = vsub.s32 0, %v2455
        %v2533 = vsel %vm2531, %v2532, %v2455
        %v2534 = vmul.u32.u64.compose %v2533, 3817748708
        %v2535 = vextract.low.u32 %v2534
        %v2536 = vextract.high.u32 %v2534
        %v2537 = vshrl.u32 %v2536, 4
        %v2538 = vmul.u32 %v2537, 18
        %v2539 = vsub.s32 %v2533, %v2538
        %v2540 = vsub.s32 0, %v2539
        %v2541 = vsel %vm2531, %v2540, %v2539
        %vm2542 = vcmp.lt.s32.totalorder %v2456, 0
        %v2543 = vsub.s32 0, %v2456
        %v2544 = vsel %vm2542, %v2543, %v2456
        %v2545 = vmul.u32.u64.compose %v2544, 3817748708
        %v2546 = vextract.low.u32 %v2545
        %v2547 = vextract.high.u32 %v2545
        %v2548 = vshrl.u32 %v2547, 4
        %v2549 = vmul.u32 %v2548, 18
        %v2550 = vsub.s32 %v2544, %v2549
        %v2551 = vsub.s32 0, %v2550
        %v2552 = vsel %vm2542, %v2551, %v2550
        %vm2553 = vcmp.lt.s32.totalorder %v2457, 0
        %v2554 = vsub.s32 0, %v2457
        %v2555 = vsel %vm2553, %v2554, %v2457
        %v2556 = vmul.u32.u64.compose %v2555, 3817748708
        %v2557 = vextract.low.u32 %v2556
        %v2558 = vextract.high.u32 %v2556
        %v2559 = vshrl.u32 %v2558, 4
        %v2560 = vmul.u32 %v2559, 18
        %v2561 = vsub.s32 %v2555, %v2560
        %v2562 = vsub.s32 0, %v2561
        %v2563 = vsel %vm2553, %v2562, %v2561
        %vm2564 = vcmp.lt.s32.totalorder %v2458, 0
        %v2565 = vsub.s32 0, %v2458
        %v2566 = vsel %vm2564, %v2565, %v2458
        %v2567 = vmul.u32.u64.compose %v2566, 3817748708
        %v2568 = vextract.low.u32 %v2567
        %v2569 = vextract.high.u32 %v2567
        %v2570 = vshrl.u32 %v2569, 4
        %v2571 = vmul.u32 %v2570, 18
        %v2572 = vsub.s32 %v2566, %v2571
        %v2573 = vsub.s32 0, %v2572
        %v2574 = vsel %vm2564, %v2573, %v2572
        %vm2575 = vcmp.lt.s32.totalorder %v2459, 0
        %v2576 = vsub.s32 0, %v2459
        %v2577 = vsel %vm2575, %v2576, %v2459
        %v2578 = vmul.u32.u64.compose %v2577, 3817748708
        %v2579 = vextract.low.u32 %v2578
        %v2580 = vextract.high.u32 %v2578
        %v2581 = vshrl.u32 %v2580, 4
        %v2582 = vmul.u32 %v2581, 18
        %v2583 = vsub.s32 %v2577, %v2582
        %v2584 = vsub.s32 0, %v2583
        %v2585 = vsel %vm2575, %v2584, %v2583
        %vm2586 = vcmp.lt.s32.totalorder %v2460, 0
        %v2587 = vsub.s32 0, %v2460
        %v2588 = vsel %vm2586, %v2587, %v2460
        %v2589 = vmul.u32.u64.compose %v2588, 3817748708
        %v2590 = vextract.low.u32 %v2589
        %v2591 = vextract.high.u32 %v2589
        %v2592 = vshrl.u32 %v2591, 4
        %v2593 = vmul.u32 %v2592, 18
        %v2594 = vsub.s32 %v2588, %v2593
        %v2595 = vsub.s32 0, %v2594
        %v2596 = vsel %vm2586, %v2595, %v2594
        %vm2597 = vcmp.lt.s32.totalorder %v2461, 0
        %v2598 = vsub.s32 0, %v2461
        %v2599 = vsel %vm2597, %v2598, %v2461
        %v2600 = vmul.u32.u64.compose %v2599, 3817748708
        %v2601 = vextract.low.u32 %v2600
        %v2602 = vextract.high.u32 %v2600
        %v2603 = vshrl.u32 %v2602, 4
        %v2604 = vmul.u32 %v2603, 18
        %v2605 = vsub.s32 %v2599, %v2604
        %v2606 = vsub.s32 0, %v2605
        %v2607 = vsel %vm2597, %v2606, %v2605
        %vm2608 = vcmp.lt.s32.totalorder %v2462, 0
        %v2609 = vsub.s32 0, %v2462
        %v2610 = vsel %vm2608, %v2609, %v2462
        %v2611 = vmul.u32.u64.compose %v2610, 3817748708
        %v2612 = vextract.low.u32 %v2611
        %v2613 = vextract.high.u32 %v2611
        %v2614 = vshrl.u32 %v2613, 4
        %v2615 = vmul.u32 %v2614, 18
        %v2616 = vsub.s32 %v2610, %v2615
        %v2617 = vsub.s32 0, %v2616
        %v2618 = vsel %vm2608, %v2617, %v2616
        %vm2619 = vcmp.lt.s32.totalorder %v2463, 0
        %v2620 = vsub.s32 0, %v2463
        %v2621 = vsel %vm2619, %v2620, %v2463
        %v2622 = vmul.u32.u64.compose %v2621, 3817748708
        %v2623 = vextract.low.u32 %v2622
        %v2624 = vextract.high.u32 %v2622
        %v2625 = vshrl.u32 %v2624, 4
        %v2626 = vmul.u32 %v2625, 18
        %v2627 = vsub.s32 %v2621, %v2626
        %v2628 = vsub.s32 0, %v2627
        %v2629 = vsel %vm2619, %v2628, %v2627
        %vm2630 = vcmp.lt.s32.totalorder %v2464, 0
        %v2631 = vsub.s32 0, %v2464
        %v2632 = vsel %vm2630, %v2631, %v2464
        %v2633 = vmul.u32.u64.compose %v2632, 3817748708
        %v2634 = vextract.low.u32 %v2633
        %v2635 = vextract.high.u32 %v2633
        %v2636 = vshrl.u32 %v2635, 4
        %v2637 = vmul.u32 %v2636, 18
        %v2638 = vsub.s32 %v2632, %v2637
        %v2639 = vsub.s32 0, %v2638
        %v2640 = vsel %vm2630, %v2639, %v2638
        %vm2641 = vcmp.lt.s32.totalorder %v2465, 0
        %v2642 = vsub.s32 0, %v2465
        %v2643 = vsel %vm2641, %v2642, %v2465
        %v2644 = vmul.u32.u64.compose %v2643, 3817748708
        %v2645 = vextract.low.u32 %v2644
        %v2646 = vextract.high.u32 %v2644
        %v2647 = vshrl.u32 %v2646, 4
        %v2648 = vmul.u32 %v2647, 18
        %v2649 = vsub.s32 %v2643, %v2648
        %v2650 = vsub.s32 0, %v2649
        %v2651 = vsel %vm2641, %v2650, %v2649
        %vm2652 = vcmp.lt.s32.totalorder %v2466, 0
        %v2653 = vsub.s32 0, %v2466
        %v2654 = vsel %vm2652, %v2653, %v2466
        %v2655 = vmul.u32.u64.compose %v2654, 3817748708
        %v2656 = vextract.low.u32 %v2655
        %v2657 = vextract.high.u32 %v2655
        %v2658 = vshrl.u32 %v2657, 4
        %v2659 = vmul.u32 %v2658, 18
        %v2660 = vsub.s32 %v2654, %v2659
        %v2661 = vsub.s32 0, %v2660
        %v2662 = vsel %vm2652, %v2661, %v2660
        %vm2663 = vcmp.lt.s32.totalorder %v2467, 0
        %v2664 = vsub.s32 0, %v2467
        %v2665 = vsel %vm2663, %v2664, %v2467
        %v2666 = vmul.u32.u64.compose %v2665, 3817748708
        %v2667 = vextract.low.u32 %v2666
        %v2668 = vextract.high.u32 %v2666
        %v2669 = vshrl.u32 %v2668, 4
        %v2670 = vmul.u32 %v2669, 18
        %v2671 = vsub.s32 %v2665, %v2670
        %v2672 = vsub.s32 0, %v2671
        %v2673 = vsel %vm2663, %v2672, %v2671
        %vm2674 = vcmp.lt.s32.totalorder %v2468, 0
        %v2675 = vsub.s32 0, %v2468
        %v2676 = vsel %vm2674, %v2675, %v2468
        %v2677 = vmul.u32.u64.compose %v2676, 3817748708
        %v2678 = vextract.low.u32 %v2677
        %v2679 = vextract.high.u32 %v2677
        %v2680 = vshrl.u32 %v2679, 4
        %v2681 = vmul.u32 %v2680, 18
        %v2682 = vsub.s32 %v2676, %v2681
        %v2683 = vsub.s32 0, %v2682
        %v2684 = vsel %vm2674, %v2683, %v2682
        %vm2685 = vcmp.lt.s32.totalorder %v2469, 0
        %v2686 = vsub.s32 0, %v2469
        %v2687 = vsel %vm2685, %v2686, %v2469
        %v2688 = vmul.u32.u64.compose %v2687, 3817748708
        %v2689 = vextract.low.u32 %v2688
        %v2690 = vextract.high.u32 %v2688
        %v2691 = vshrl.u32 %v2690, 4
        %v2692 = vmul.u32 %v2691, 18
        %v2693 = vsub.s32 %v2687, %v2692
        %v2694 = vsub.s32 0, %v2693
        %v2695 = vsel %vm2685, %v2694, %v2693
        %vm2696 = vcmp.lt.s32.totalorder %v2470, 0
        %v2697 = vsub.s32 0, %v2470
        %v2698 = vsel %vm2696, %v2697, %v2470
        %v2699 = vmul.u32.u64.compose %v2698, 3817748708
        %v2700 = vextract.low.u32 %v2699
        %v2701 = vextract.high.u32 %v2699
        %v2702 = vshrl.u32 %v2701, 4
        %v2703 = vmul.u32 %v2702, 18
        %v2704 = vsub.s32 %v2698, %v2703
        %v2705 = vsub.s32 0, %v2704
        %v2706 = vsel %vm2696, %v2705, %v2704
        %vm2707 = vcmp.lt.s32.totalorder %v2471, 0
        %v2708 = vsub.s32 0, %v2471
        %v2709 = vsel %vm2707, %v2708, %v2471
        %v2710 = vmul.u32.u64.compose %v2709, 3817748708
        %v2711 = vextract.low.u32 %v2710
        %v2712 = vextract.high.u32 %v2710
        %v2713 = vshrl.u32 %v2712, 4
        %v2714 = vmul.u32 %v2713, 18
        %v2715 = vsub.s32 %v2709, %v2714
        %v2716 = vsub.s32 0, %v2715
        %v2717 = vsel %vm2707, %v2716, %v2715
        %vm2718 = vcmp.lt.s32.totalorder %v2472, 0
        %v2719 = vsub.s32 0, %v2472
        %v2720 = vsel %vm2718, %v2719, %v2472
        %v2721 = vmul.u32.u64.compose %v2720, 3817748708
        %v2722 = vextract.low.u32 %v2721
        %v2723 = vextract.high.u32 %v2721
        %v2724 = vshrl.u32 %v2723, 4
        %v2725 = vmul.u32 %v2724, 18
        %v2726 = vsub.s32 %v2720, %v2725
        %v2727 = vsub.s32 0, %v2726
        %v2728 = vsel %vm2718, %v2727, %v2726
        %vm2729 = vcmp.lt.s32.totalorder %v2473, 0
        %v2730 = vsub.s32 0, %v2473
        %v2731 = vsel %vm2729, %v2730, %v2473
        %v2732 = vmul.u32.u64.compose %v2731, 3817748708
        %v2733 = vextract.low.u32 %v2732
        %v2734 = vextract.high.u32 %v2732
        %v2735 = vshrl.u32 %v2734, 4
        %v2736 = vmul.u32 %v2735, 18
        %v2737 = vsub.s32 %v2731, %v2736
        %v2738 = vsub.s32 0, %v2737
        %v2739 = vsel %vm2729, %v2738, %v2737
        %vm2740 = vcmp.lt.s32.totalorder %v2474, 0
        %v2741 = vsub.s32 0, %v2474
        %v2742 = vsel %vm2740, %v2741, %v2474
        %v2743 = vmul.u32.u64.compose %v2742, 3817748708
        %v2744 = vextract.low.u32 %v2743
        %v2745 = vextract.high.u32 %v2743
        %v2746 = vshrl.u32 %v2745, 4
        %v2747 = vmul.u32 %v2746, 18
        %v2748 = vsub.s32 %v2742, %v2747
        %v2749 = vsub.s32 0, %v2748
        %v2750 = vsel %vm2740, %v2749, %v2748
        %vm2751 = vcmp.lt.s32.totalorder %v2475, 0
        %v2752 = vsub.s32 0, %v2475
        %v2753 = vsel %vm2751, %v2752, %v2475
        %v2754 = vmul.u32.u64.compose %v2753, 3817748708
        %v2755 = vextract.low.u32 %v2754
        %v2756 = vextract.high.u32 %v2754
        %v2757 = vshrl.u32 %v2756, 4
        %v2758 = vmul.u32 %v2757, 18
        %v2759 = vsub.s32 %v2753, %v2758
        %v2760 = vsub.s32 0, %v2759
        %v2761 = vsel %vm2751, %v2760, %v2759
        %vm2762 = vcmp.lt.s32.totalorder %v2476, 0
        %v2763 = vsub.s32 0, %v2476
        %v2764 = vsel %vm2762, %v2763, %v2476
        %v2765 = vmul.u32.u64.compose %v2764, 3817748708
        %v2766 = vextract.low.u32 %v2765
        %v2767 = vextract.high.u32 %v2765
        %v2768 = vshrl.u32 %v2767, 4
        %v2769 = vmul.u32 %v2768, 18
        %v2770 = vsub.s32 %v2764, %v2769
        %v2771 = vsub.s32 0, %v2770
        %v2772 = vsel %vm2762, %v2771, %v2770
        %vm2773 = vcmp.lt.s32.totalorder %v2477, 0
        %v2774 = vsub.s32 0, %v2477
        %v2775 = vsel %vm2773, %v2774, %v2477
        %v2776 = vmul.u32.u64.compose %v2775, 3817748708
        %v2777 = vextract.low.u32 %v2776
        %v2778 = vextract.high.u32 %v2776
        %v2779 = vshrl.u32 %v2778, 4
        %v2780 = vmul.u32 %v2779, 18
        %v2781 = vsub.s32 %v2775, %v2780
        %v2782 = vsub.s32 0, %v2781
        %v2783 = vsel %vm2773, %v2782, %v2781
        %vm2784 = vcmp.lt.s32.totalorder %v2478, 0
        %v2785 = vsub.s32 0, %v2478
        %v2786 = vsel %vm2784, %v2785, %v2478
        %v2787 = vmul.u32.u64.compose %v2786, 3817748708
        %v2788 = vextract.low.u32 %v2787
        %v2789 = vextract.high.u32 %v2787
        %v2790 = vshrl.u32 %v2789, 4
        %v2791 = vmul.u32 %v2790, 18
        %v2792 = vsub.s32 %v2786, %v2791
        %v2793 = vsub.s32 0, %v2792
        %v2794 = vsel %vm2784, %v2793, %v2792
        %vm2795 = vcmp.lt.s32.totalorder %v2479, 0
        %v2796 = vsub.s32 0, %v2479
        %v2797 = vsel %vm2795, %v2796, %v2479
        %v2798 = vmul.u32.u64.compose %v2797, 3817748708
        %v2799 = vextract.low.u32 %v2798
        %v2800 = vextract.high.u32 %v2798
        %v2801 = vshrl.u32 %v2800, 4
        %v2802 = vmul.u32 %v2801, 18
        %v2803 = vsub.s32 %v2797, %v2802
        %v2804 = vsub.s32 0, %v2803
        %v2805 = vsel %vm2795, %v2804, %v2803
        %vm2806 = vcmp.lt.s32.totalorder %v2480, 0
        %v2807 = vsub.s32 0, %v2480
        %v2808 = vsel %vm2806, %v2807, %v2480
        %v2809 = vmul.u32.u64.compose %v2808, 3817748708
        %v2810 = vextract.low.u32 %v2809
        %v2811 = vextract.high.u32 %v2809
        %v2812 = vshrl.u32 %v2811, 4
        %v2813 = vmul.u32 %v2812, 18
        %v2814 = vsub.s32 %v2808, %v2813
        %v2815 = vsub.s32 0, %v2814
        %v2816 = vsel %vm2806, %v2815, %v2814
        %vm2817 = vcmp.lt.s32.totalorder %v2481, 0
        %v2818 = vsub.s32 0, %v2481
        %v2819 = vsel %vm2817, %v2818, %v2481
        %v2820 = vmul.u32.u64.compose %v2819, 3817748708
        %v2821 = vextract.low.u32 %v2820
        %v2822 = vextract.high.u32 %v2820
        %v2823 = vshrl.u32 %v2822, 4
        %v2824 = vmul.u32 %v2823, 18
        %v2825 = vsub.s32 %v2819, %v2824
        %v2826 = vsub.s32 0, %v2825
        %v2827 = vsel %vm2817, %v2826, %v2825
        %vm2828 = vcmp.lt.s32.totalorder %v2482, 0
        %v2829 = vsub.s32 0, %v2482
        %v2830 = vsel %vm2828, %v2829, %v2482
        %v2831 = vmul.u32.u64.compose %v2830, 3817748708
        %v2832 = vextract.low.u32 %v2831
        %v2833 = vextract.high.u32 %v2831
        %v2834 = vshrl.u32 %v2833, 4
        %v2835 = vmul.u32 %v2834, 18
        %v2836 = vsub.s32 %v2830, %v2835
        %v2837 = vsub.s32 0, %v2836
        %v2838 = vsel %vm2828, %v2837, %v2836
        %vm2839 = vcmp.lt.s32.totalorder %v2483, 0
        %v2840 = vsub.s32 0, %v2483
        %v2841 = vsel %vm2839, %v2840, %v2483
        %v2842 = vmul.u32.u64.compose %v2841, 3817748708
        %v2843 = vextract.low.u32 %v2842
        %v2844 = vextract.high.u32 %v2842
        %v2845 = vshrl.u32 %v2844, 4
        %v2846 = vmul.u32 %v2845, 18
        %v2847 = vsub.s32 %v2841, %v2846
        %v2848 = vsub.s32 0, %v2847
        %v2849 = vsel %vm2839, %v2848, %v2847
        %vm2850 = vcmp.lt.s32.totalorder %v2484, 0
        %v2851 = vsub.s32 0, %v2484
        %v2852 = vsel %vm2850, %v2851, %v2484
        %v2853 = vmul.u32.u64.compose %v2852, 3817748708
        %v2854 = vextract.low.u32 %v2853
        %v2855 = vextract.high.u32 %v2853
        %v2856 = vshrl.u32 %v2855, 4
        %v2857 = vmul.u32 %v2856, 18
        %v2858 = vsub.s32 %v2852, %v2857
        %v2859 = vsub.s32 0, %v2858
        %v2860 = vsel %vm2850, %v2859, %v2858
        %vm2861 = vcmp.lt.s32.totalorder %v2485, 0
        %v2862 = vsub.s32 0, %v2485
        %v2863 = vsel %vm2861, %v2862, %v2485
        %v2864 = vmul.u32.u64.compose %v2863, 3817748708
        %v2865 = vextract.low.u32 %v2864
        %v2866 = vextract.high.u32 %v2864
        %v2867 = vshrl.u32 %v2866, 4
        %v2868 = vmul.u32 %v2867, 18
        %v2869 = vsub.s32 %v2863, %v2868
        %v2870 = vsub.s32 0, %v2869
        %v2871 = vsel %vm2861, %v2870, %v2869
        %vm2872 = vcmp.lt.s32.totalorder %v2486, 0
        %v2873 = vsub.s32 0, %v2486
        %v2874 = vsel %vm2872, %v2873, %v2486
        %v2875 = vmul.u32.u64.compose %v2874, 3817748708
        %v2876 = vextract.low.u32 %v2875
        %v2877 = vextract.high.u32 %v2875
        %v2878 = vshrl.u32 %v2877, 4
        %v2879 = vmul.u32 %v2878, 18
        %v2880 = vsub.s32 %v2874, %v2879
        %v2881 = vsub.s32 0, %v2880
        %v2882 = vsel %vm2872, %v2881, %v2880
        %vm2883 = vcmp.ne.s32.totalorder %v2497, 0
        %vm2884 = vcmp.ne.s32.totalorder %v2508, 0
        %vm2885 = vcmp.ne.s32.totalorder %v2519, 0
        %vm2886 = vcmp.ne.s32.totalorder %v2530, 0
        %vm2887 = vcmp.ne.s32.totalorder %v2541, 0
        %vm2888 = vcmp.ne.s32.totalorder %v2552, 0
        %vm2889 = vcmp.ne.s32.totalorder %v2563, 0
        %vm2890 = vcmp.ne.s32.totalorder %v2574, 0
        %vm2891 = vcmp.ne.s32.totalorder %v2585, 0
        %vm2892 = vcmp.ne.s32.totalorder %v2596, 0
        %vm2893 = vcmp.ne.s32.totalorder %v2607, 0
        %vm2894 = vcmp.ne.s32.totalorder %v2618, 0
        %vm2895 = vcmp.ne.s32.totalorder %v2629, 0
        %vm2896 = vcmp.ne.s32.totalorder %v2640, 0
        %vm2897 = vcmp.ne.s32.totalorder %v2651, 0
        %vm2898 = vcmp.ne.s32.totalorder %v2662, 0
        %vm2899 = vcmp.ne.s32.totalorder %v2673, 0
        %vm2900 = vcmp.ne.s32.totalorder %v2684, 0
        %vm2901 = vcmp.ne.s32.totalorder %v2695, 0
        %vm2902 = vcmp.ne.s32.totalorder %v2706, 0
        %vm2903 = vcmp.ne.s32.totalorder %v2717, 0
        %vm2904 = vcmp.ne.s32.totalorder %v2728, 0
        %vm2905 = vcmp.ne.s32.totalorder %v2739, 0
        %vm2906 = vcmp.ne.s32.totalorder %v2750, 0
        %vm2907 = vcmp.ne.s32.totalorder %v2761, 0
        %vm2908 = vcmp.ne.s32.totalorder %v2772, 0
        %vm2909 = vcmp.ne.s32.totalorder %v2783, 0
        %vm2910 = vcmp.ne.s32.totalorder %v2794, 0
        %vm2911 = vcmp.ne.s32.totalorder %v2805, 0
        %vm2912 = vcmp.ne.s32.totalorder %v2816, 0
        %vm2913 = vcmp.ne.s32.totalorder %v2827, 0
        %vm2914 = vcmp.ne.s32.totalorder %v2838, 0
        %vm2915 = vcmp.ne.s32.totalorder %v2849, 0
        %vm2916 = vcmp.ne.s32.totalorder %v2860, 0
        %vm2917 = vcmp.ne.s32.totalorder %v2871, 0
        %vm2918 = vcmp.ne.s32.totalorder %v2882, 0
        %vm2919 = vcmp.lt.s32.totalorder %v2497, 0
        %vm2920 = vcmp.lt.s32.totalorder %v2508, 0
        %vm2921 = vcmp.lt.s32.totalorder %v2519, 0
        %vm2922 = vcmp.lt.s32.totalorder %v2530, 0
        %vm2923 = vcmp.lt.s32.totalorder %v2541, 0
        %vm2924 = vcmp.lt.s32.totalorder %v2552, 0
        %vm2925 = vcmp.lt.s32.totalorder %v2563, 0
        %vm2926 = vcmp.lt.s32.totalorder %v2574, 0
        %vm2927 = vcmp.lt.s32.totalorder %v2585, 0
        %vm2928 = vcmp.lt.s32.totalorder %v2596, 0
        %vm2929 = vcmp.lt.s32.totalorder %v2607, 0
        %vm2930 = vcmp.lt.s32.totalorder %v2618, 0
        %vm2931 = vcmp.lt.s32.totalorder %v2629, 0
        %vm2932 = vcmp.lt.s32.totalorder %v2640, 0
        %vm2933 = vcmp.lt.s32.totalorder %v2651, 0
        %vm2934 = vcmp.lt.s32.totalorder %v2662, 0
        %vm2935 = vcmp.lt.s32.totalorder %v2673, 0
        %vm2936 = vcmp.lt.s32.totalorder %v2684, 0
        %vm2937 = vcmp.lt.s32.totalorder %v2695, 0
        %vm2938 = vcmp.lt.s32.totalorder %v2706, 0
        %vm2939 = vcmp.lt.s32.totalorder %v2717, 0
        %vm2940 = vcmp.lt.s32.totalorder %v2728, 0
        %vm2941 = vcmp.lt.s32.totalorder %v2739, 0
        %vm2942 = vcmp.lt.s32.totalorder %v2750, 0
        %vm2943 = vcmp.lt.s32.totalorder %v2761, 0
        %vm2944 = vcmp.lt.s32.totalorder %v2772, 0
        %vm2945 = vcmp.lt.s32.totalorder %v2783, 0
        %vm2946 = vcmp.lt.s32.totalorder %v2794, 0
        %vm2947 = vcmp.lt.s32.totalorder %v2805, 0
        %vm2948 = vcmp.lt.s32.totalorder %v2816, 0
        %vm2949 = vcmp.lt.s32.totalorder %v2827, 0
        %vm2950 = vcmp.lt.s32.totalorder %v2838, 0
        %vm2951 = vcmp.lt.s32.totalorder %v2849, 0
        %vm2952 = vcmp.lt.s32.totalorder %v2860, 0
        %vm2953 = vcmp.lt.s32.totalorder %v2871, 0
        %vm2954 = vcmp.lt.s32.totalorder %v2882, 0
        %vm2955 = vmand %vm2919, %vm2883
        %vm2956 = vmand %vm2920, %vm2884
        %vm2957 = vmand %vm2921, %vm2885
        %vm2958 = vmand %vm2922, %vm2886
        %vm2959 = vmand %vm2923, %vm2887
        %vm2960 = vmand %vm2924, %vm2888
        %vm2961 = vmand %vm2925, %vm2889
        %vm2962 = vmand %vm2926, %vm2890
        %vm2963 = vmand %vm2927, %vm2891
        %vm2964 = vmand %vm2928, %vm2892
        %vm2965 = vmand %vm2929, %vm2893
        %vm2966 = vmand %vm2930, %vm2894
        %vm2967 = vmand %vm2931, %vm2895
        %vm2968 = vmand %vm2932, %vm2896
        %vm2969 = vmand %vm2933, %vm2897
        %vm2970 = vmand %vm2934, %vm2898
        %vm2971 = vmand %vm2935, %vm2899
        %vm2972 = vmand %vm2936, %vm2900
        %vm2973 = vmand %vm2937, %vm2901
        %vm2974 = vmand %vm2938, %vm2902
        %vm2975 = vmand %vm2939, %vm2903
        %vm2976 = vmand %vm2940, %vm2904
        %vm2977 = vmand %vm2941, %vm2905
        %vm2978 = vmand %vm2942, %vm2906
        %vm2979 = vmand %vm2943, %vm2907
        %vm2980 = vmand %vm2944, %vm2908
        %vm2981 = vmand %vm2945, %vm2909
        %vm2982 = vmand %vm2946, %vm2910
        %vm2983 = vmand %vm2947, %vm2911
        %vm2984 = vmand %vm2948, %vm2912
        %vm2985 = vmand %vm2949, %vm2913
        %vm2986 = vmand %vm2950, %vm2914
        %vm2987 = vmand %vm2951, %vm2915
        %vm2988 = vmand %vm2952, %vm2916
        %vm2989 = vmand %vm2953, %vm2917
        %vm2990 = vmand %vm2954, %vm2918
        %v2991 = vadd.s32 %v2497, 18
        %v2992 = vadd.s32 %v2508, 18
        %v2993 = vadd.s32 %v2519, 18
        %v2994 = vadd.s32 %v2530, 18
        %v2995 = vadd.s32 %v2541, 18
        %v2996 = vadd.s32 %v2552, 18
        %v2997 = vadd.s32 %v2563, 18
        %v2998 = vadd.s32 %v2574, 18
        %v2999 = vadd.s32 %v2585, 18
        %v3000 = vadd.s32 %v2596, 18
        %v3001 = vadd.s32 %v2607, 18
        %v3002 = vadd.s32 %v2618, 18
        %v3003 = vadd.s32 %v2629, 18
        %v3004 = vadd.s32 %v2640, 18
        %v3005 = vadd.s32 %v2651, 18
        %v3006 = vadd.s32 %v2662, 18
        %v3007 = vadd.s32 %v2673, 18
        %v3008 = vadd.s32 %v2684, 18
        %v3009 = vadd.s32 %v2695, 18
        %v3010 = vadd.s32 %v2706, 18
        %v3011 = vadd.s32 %v2717, 18
        %v3012 = vadd.s32 %v2728, 18
        %v3013 = vadd.s32 %v2739, 18
        %v3014 = vadd.s32 %v2750, 18
        %v3015 = vadd.s32 %v2761, 18
        %v3016 = vadd.s32 %v2772, 18
        %v3017 = vadd.s32 %v2783, 18
        %v3018 = vadd.s32 %v2794, 18
        %v3019 = vadd.s32 %v2805, 18
        %v3020 = vadd.s32 %v2816, 18
        %v3021 = vadd.s32 %v2827, 18
        %v3022 = vadd.s32 %v2838, 18
        %v3023 = vadd.s32 %v2849, 18
        %v3024 = vadd.s32 %v2860, 18
        %v3025 = vadd.s32 %v2871, 18
        %v3026 = vadd.s32 %v2882, 18
        %v3027 = vsel %vm2955, %v2991, %v2497
        %v3028 = vsel %vm2956, %v2992, %v2508
        %v3029 = vsel %vm2957, %v2993, %v2519
        %v3030 = vsel %vm2958, %v2994, %v2530
        %v3031 = vsel %vm2959, %v2995, %v2541
        %v3032 = vsel %vm2960, %v2996, %v2552
        %v3033 = vsel %vm2961, %v2997, %v2563
        %v3034 = vsel %vm2962, %v2998, %v2574
        %v3035 = vsel %vm2963, %v2999, %v2585
        %v3036 = vsel %vm2964, %v3000, %v2596
        %v3037 = vsel %vm2965, %v3001, %v2607
        %v3038 = vsel %vm2966, %v3002, %v2618
        %v3039 = vsel %vm2967, %v3003, %v2629
        %v3040 = vsel %vm2968, %v3004, %v2640
        %v3041 = vsel %vm2969, %v3005, %v2651
        %v3042 = vsel %vm2970, %v3006, %v2662
        %v3043 = vsel %vm2971, %v3007, %v2673
        %v3044 = vsel %vm2972, %v3008, %v2684
        %v3045 = vsel %vm2973, %v3009, %v2695
        %v3046 = vsel %vm2974, %v3010, %v2706
        %v3047 = vsel %vm2975, %v3011, %v2717
        %v3048 = vsel %vm2976, %v3012, %v2728
        %v3049 = vsel %vm2977, %v3013, %v2739
        %v3050 = vsel %vm2978, %v3014, %v2750
        %v3051 = vsel %vm2979, %v3015, %v2761
        %v3052 = vsel %vm2980, %v3016, %v2772
        %v3053 = vsel %vm2981, %v3017, %v2783
        %v3054 = vsel %vm2982, %v3018, %v2794
        %v3055 = vsel %vm2983, %v3019, %v2805
        %v3056 = vsel %vm2984, %v3020, %v2816
        %v3057 = vsel %vm2985, %v3021, %v2827
        %v3058 = vsel %vm2986, %v3022, %v2838
        %v3059 = vsel %vm2987, %v3023, %v2849
        %v3060 = vsel %vm2988, %v3024, %v2860
        %v3061 = vsel %vm2989, %v3025, %v2871
        %v3062 = vsel %vm2990, %v3026, %v2882
        %vm3063 = vcmp.lt.s32.totalorder %v3027, 16
        %vm3064 = vcmp.lt.s32.totalorder %v3028, 16
        %vm3065 = vcmp.lt.s32.totalorder %v3029, 16
        %vm3066 = vcmp.lt.s32.totalorder %v3030, 16
        %vm3067 = vcmp.lt.s32.totalorder %v3031, 16
        %vm3068 = vcmp.lt.s32.totalorder %v3032, 16
        %vm3069 = vcmp.lt.s32.totalorder %v3033, 16
        %vm3070 = vcmp.lt.s32.totalorder %v3034, 16
        %vm3071 = vcmp.lt.s32.totalorder %v3035, 16
        %vm3072 = vcmp.lt.s32.totalorder %v3036, 16
        %vm3073 = vcmp.lt.s32.totalorder %v3037, 16
        %vm3074 = vcmp.lt.s32.totalorder %v3038, 16
        %vm3075 = vcmp.lt.s32.totalorder %v3039, 16
        %vm3076 = vcmp.lt.s32.totalorder %v3040, 16
        %vm3077 = vcmp.lt.s32.totalorder %v3041, 16
        %vm3078 = vcmp.lt.s32.totalorder %v3042, 16
        %vm3079 = vcmp.lt.s32.totalorder %v3043, 16
        %vm3080 = vcmp.lt.s32.totalorder %v3044, 16
        %vm3081 = vcmp.lt.s32.totalorder %v3045, 16
        %vm3082 = vcmp.lt.s32.totalorder %v3046, 16
        %vm3083 = vcmp.lt.s32.totalorder %v3047, 16
        %vm3084 = vcmp.lt.s32.totalorder %v3048, 16
        %vm3085 = vcmp.lt.s32.totalorder %v3049, 16
        %vm3086 = vcmp.lt.s32.totalorder %v3050, 16
        %vm3087 = vcmp.lt.s32.totalorder %v3051, 16
        %vm3088 = vcmp.lt.s32.totalorder %v3052, 16
        %vm3089 = vcmp.lt.s32.totalorder %v3053, 16
        %vm3090 = vcmp.lt.s32.totalorder %v3054, 16
        %vm3091 = vcmp.lt.s32.totalorder %v3055, 16
        %vm3092 = vcmp.lt.s32.totalorder %v3056, 16
        %vm3093 = vcmp.lt.s32.totalorder %v3057, 16
        %vm3094 = vcmp.lt.s32.totalorder %v3058, 16
        %vm3095 = vcmp.lt.s32.totalorder %v3059, 16
        %vm3096 = vcmp.lt.s32.totalorder %v3060, 16
        %vm3097 = vcmp.lt.s32.totalorder %v3061, 16
        %vm3098 = vcmp.lt.s32.totalorder %v3062, 16
        %v3099 = vsel %vm3063, 1, 0
        %v3100 = vsel %vm3064, 1, 0
        %v3101 = vsel %vm3065, 1, 0
        %v3102 = vsel %vm3066, 1, 0
        %v3103 = vsel %vm3067, 1, 0
        %v3104 = vsel %vm3068, 1, 0
        %v3105 = vsel %vm3069, 1, 0
        %v3106 = vsel %vm3070, 1, 0
        %v3107 = vsel %vm3071, 1, 0
        %v3108 = vsel %vm3072, 1, 0
        %v3109 = vsel %vm3073, 1, 0
        %v3110 = vsel %vm3074, 1, 0
        %v3111 = vsel %vm3075, 1, 0
        %v3112 = vsel %vm3076, 1, 0
        %v3113 = vsel %vm3077, 1, 0
        %v3114 = vsel %vm3078, 1, 0
        %v3115 = vsel %vm3079, 1, 0
        %v3116 = vsel %vm3080, 1, 0
        %v3117 = vsel %vm3081, 1, 0
        %v3118 = vsel %vm3082, 1, 0
        %v3119 = vsel %vm3083, 1, 0
        %v3120 = vsel %vm3084, 1, 0
        %v3121 = vsel %vm3085, 1, 0
        %v3122 = vsel %vm3086, 1, 0
        %v3123 = vsel %vm3087, 1, 0
        %v3124 = vsel %vm3088, 1, 0
        %v3125 = vsel %vm3089, 1, 0
        %v3126 = vsel %vm3090, 1, 0
        %v3127 = vsel %vm3091, 1, 0
        %v3128 = vsel %vm3092, 1, 0
        %v3129 = vsel %vm3093, 1, 0
        %v3130 = vsel %vm3094, 1, 0
        %v3131 = vsel %vm3095, 1, 0
        %v3132 = vsel %vm3096, 1, 0
        %v3133 = vsel %vm3097, 1, 0
        %v3134 = vsel %vm3098, 1, 0
        %v3135 = vcvt.s32.f32 %v3099
        %v3136 = vcvt.s32.f32 %v3100
        %v3137 = vcvt.s32.f32 %v3101
        %v3138 = vcvt.s32.f32 %v3102
        %v3139 = vcvt.s32.f32 %v3103
        %v3140 = vcvt.s32.f32 %v3104
        %v3141 = vcvt.s32.f32 %v3105
        %v3142 = vcvt.s32.f32 %v3106
        %v3143 = vcvt.s32.f32 %v3107
        %v3144 = vcvt.s32.f32 %v3108
        %v3145 = vcvt.s32.f32 %v3109
        %v3146 = vcvt.s32.f32 %v3110
        %v3147 = vcvt.s32.f32 %v3111
        %v3148 = vcvt.s32.f32 %v3112
        %v3149 = vcvt.s32.f32 %v3113
        %v3150 = vcvt.s32.f32 %v3114
        %v3151 = vcvt.s32.f32 %v3115
        %v3152 = vcvt.s32.f32 %v3116
        %v3153 = vcvt.s32.f32 %v3117
        %v3154 = vcvt.s32.f32 %v3118
        %v3155 = vcvt.s32.f32 %v3119
        %v3156 = vcvt.s32.f32 %v3120
        %v3157 = vcvt.s32.f32 %v3121
        %v3158 = vcvt.s32.f32 %v3122
        %v3159 = vcvt.s32.f32 %v3123
        %v3160 = vcvt.s32.f32 %v3124
        %v3161 = vcvt.s32.f32 %v3125
        %v3162 = vcvt.s32.f32 %v3126
        %v3163 = vcvt.s32.f32 %v3127
        %v3164 = vcvt.s32.f32 %v3128
        %v3165 = vcvt.s32.f32 %v3129
        %v3166 = vcvt.s32.f32 %v3130
        %v3167 = vcvt.s32.f32 %v3131
        %v3168 = vcvt.s32.f32 %v3132
        %v3169 = vcvt.s32.f32 %v3133
        %v3170 = vcvt.s32.f32 %v3134
        %v3171 = vmul.f32 %v2272, %v3135
        %v3172 = vmul.f32 %v2277, %v3136
        %v3173 = vmul.f32 %v2282, %v3137
        %v3174 = vmul.f32 %v2287, %v3138
        %v3175 = vmul.f32 %v2292, %v3139
        %v3176 = vmul.f32 %v2297, %v3140
        %v3177 = vmul.f32 %v2302, %v3141
        %v3178 = vmul.f32 %v2307, %v3142
        %v3179 = vmul.f32 %v2312, %v3143
        %v3180 = vmul.f32 %v2317, %v3144
        %v3181 = vmul.f32 %v2322, %v3145
        %v3182 = vmul.f32 %v2327, %v3146
        %v3183 = vmul.f32 %v2332, %v3147
        %v3184 = vmul.f32 %v2337, %v3148
        %v3185 = vmul.f32 %v2342, %v3149
        %v3186 = vmul.f32 %v2347, %v3150
        %v3187 = vmul.f32 %v2352, %v3151
        %v3188 = vmul.f32 %v2357, %v3152
        %v3189 = vmul.f32 %v2362, %v3153
        %v3190 = vmul.f32 %v2367, %v3154
        %v3191 = vmul.f32 %v2372, %v3155
        %v3192 = vmul.f32 %v2377, %v3156
        %v3193 = vmul.f32 %v2382, %v3157
        %v3194 = vmul.f32 %v2387, %v3158
        %v3195 = vmul.f32 %v2392, %v3159
        %v3196 = vmul.f32 %v2397, %v3160
        %v3197 = vmul.f32 %v2402, %v3161
        %v3198 = vmul.f32 %v2407, %v3162
        %v3199 = vmul.f32 %v2412, %v3163
        %v3200 = vmul.f32 %v2417, %v3164
        %v3201 = vmul.f32 %v2422, %v3165
        %v3202 = vmul.f32 %v2427, %v3166
        %v3203 = vmul.f32 %v2432, %v3167
        %v3204 = vmul.f32 %v2437, %v3168
        %v3205 = vmul.f32 %v2442, %v3169
        %v3206 = vmul.f32 %v2447, %v3170
        %v3207 = vld [vmem:[#allocation4] sm:$0x1]
        %v3208 = vadd.f32 %v3171, %v3172
        %v3209 = vadd.f32 %v3208, %v3173
        %v3210 = vadd.f32 %v3209, %v3174
        %v3211 = vadd.f32 %v3210, %v3175
        %v3212 = vadd.f32 %v3211, %v3176
        %v3213 = vadd.f32 %v3212, %v3177
        %v3214 = vadd.f32 %v3213, %v3178
        %v3215 = vadd.f32 %v3214, %v3179
        %v3216 = vadd.f32 %v3215, %v3180
        %v3217 = vadd.f32 %v3216, %v3181
        %v3218 = vadd.f32 %v3217, %v3182
        %v3219 = vadd.f32 %v3218, %v3183
        %v3220 = vadd.f32 %v3219, %v3184
        %v3221 = vadd.f32 %v3220, %v3185
        %v3222 = vadd.f32 %v3221, %v3186
        %v3223 = vadd.f32 %v3222, %v3187
        %v3224 = vadd.f32 %v3223, %v3188
        %v3225 = vadd.f32 %v3224, %v3189
        %v3226 = vadd.f32 %v3225, %v3190
        %v3227 = vadd.f32 %v3226, %v3191
        %v3228 = vadd.f32 %v3227, %v3192
        %v3229 = vadd.f32 %v3228, %v3193
        %v3230 = vadd.f32 %v3229, %v3194
        %v3231 = vadd.f32 %v3230, %v3195
        %v3232 = vadd.f32 %v3231, %v3196
        %v3233 = vadd.f32 %v3232, %v3197
        %v3234 = vadd.f32 %v3233, %v3198
        %v3235 = vadd.f32 %v3234, %v3199
        %v3236 = vadd.f32 %v3235, %v3200
        %v3237 = vadd.f32 %v3236, %v3201
        %v3238 = vadd.f32 %v3237, %v3202
        %v3239 = vadd.f32 %v3238, %v3203
        %v3240 = vadd.f32 %v3239, %v3204
        %v3241 = vadd.f32 %v3240, %v3205
        %v3242 = vadd.f32 %v3241, %v3206
        %v3243 = vrot.slane %v3242, 4
        %v3244 = vadd.f32 %v3242, %v3243
        %v3245 = vrot.slane %v3244, 2
        %v3246 = vadd.f32 %v3244, %v3245
        %v3247 = vrot.slane %v3246, 1
        %v3248 = vadd.f32 %v3246, %v3247
        %v3249 = vadd.f32 %v3207, %v3248
        %3250 = vst [vmem:[#allocation4] sm:$0x1] %v3249
        %v3251 = vld [vmem:[#allocation5] sm:$0x1]
        %v3252 = vmul.f32 %v3171, %v2272
        %v3253 = vmul.f32 %v3172, %v2277
        %v3254 = vmul.f32 %v3173, %v2282
        %v3255 = vmul.f32 %v3174, %v2287
        %v3256 = vmul.f32 %v3175, %v2292
        %v3257 = vmul.f32 %v3176, %v2297
        %v3258 = vmul.f32 %v3177, %v2302
        %v3259 = vmul.f32 %v3178, %v2307
        %v3260 = vmul.f32 %v3179, %v2312
        %v3261 = vmul.f32 %v3180, %v2317
        %v3262 = vmul.f32 %v3181, %v2322
        %v3263 = vmul.f32 %v3182, %v2327
        %v3264 = vmul.f32 %v3183, %v2332
        %v3265 = vmul.f32 %v3184, %v2337
        %v3266 = vmul.f32 %v3185, %v2342
        %v3267 = vmul.f32 %v3186, %v2347
        %v3268 = vmul.f32 %v3187, %v2352
        %v3269 = vmul.f32 %v3188, %v2357
        %v3270 = vmul.f32 %v3189, %v2362
        %v3271 = vmul.f32 %v3190, %v2367
        %v3272 = vmul.f32 %v3191, %v2372
        %v3273 = vmul.f32 %v3192, %v2377
        %v3274 = vmul.f32 %v3193, %v2382
        %v3275 = vmul.f32 %v3194, %v2387
        %v3276 = vmul.f32 %v3195, %v2392
        %v3277 = vmul.f32 %v3196, %v2397
        %v3278 = vmul.f32 %v3197, %v2402
        %v3279 = vmul.f32 %v3198, %v2407
        %v3280 = vmul.f32 %v3199, %v2412
        %v3281 = vmul.f32 %v3200, %v2417
        %v3282 = vmul.f32 %v3201, %v2422
        %v3283 = vmul.f32 %v3202, %v2427
        %v3284 = vmul.f32 %v3203, %v2432
        %v3285 = vmul.f32 %v3204, %v2437
        %v3286 = vmul.f32 %v3205, %v2442
        %v3287 = vmul.f32 %v3206, %v2447
        %v3288 = vadd.f32 %v3252, %v3253
        %v3289 = vadd.f32 %v3288, %v3254
        %v3290 = vadd.f32 %v3289, %v3255
        %v3291 = vadd.f32 %v3290, %v3256
        %v3292 = vadd.f32 %v3291, %v3257
        %v3293 = vadd.f32 %v3292, %v3258
        %v3294 = vadd.f32 %v3293, %v3259
        %v3295 = vadd.f32 %v3294, %v3260
        %v3296 = vadd.f32 %v3295, %v3261
        %v3297 = vadd.f32 %v3296, %v3262
        %v3298 = vadd.f32 %v3297, %v3263
        %v3299 = vadd.f32 %v3298, %v3264
        %v3300 = vadd.f32 %v3299, %v3265
        %v3301 = vadd.f32 %v3300, %v3266
        %v3302 = vadd.f32 %v3301, %v3267
        %v3303 = vadd.f32 %v3302, %v3268
        %v3304 = vadd.f32 %v3303, %v3269
        %v3305 = vadd.f32 %v3304, %v3270
        %v3306 = vadd.f32 %v3305, %v3271
        %v3307 = vadd.f32 %v3306, %v3272
        %v3308 = vadd.f32 %v3307, %v3273
        %v3309 = vadd.f32 %v3308, %v3274
        %v3310 = vadd.f32 %v3309, %v3275
        %v3311 = vadd.f32 %v3310, %v3276
        %v3312 = vadd.f32 %v3311, %v3277
        %v3313 = vadd.f32 %v3312, %v3278
        %v3314 = vadd.f32 %v3313, %v3279
        %v3315 = vadd.f32 %v3314, %v3280
        %v3316 = vadd.f32 %v3315, %v3281
        %v3317 = vadd.f32 %v3316, %v3282
        %v3318 = vadd.f32 %v3317, %v3283
        %v3319 = vadd.f32 %v3318, %v3284
        %v3320 = vadd.f32 %v3319, %v3285
        %v3321 = vadd.f32 %v3320, %v3286
        %v3322 = vadd.f32 %v3321, %v3287
        %v3323 = vrot.slane %v3322, 4
        %v3324 = vadd.f32 %v3322, %v3323
        %v3325 = vrot.slane %v3324, 2
        %v3326 = vadd.f32 %v3324, %v3325
        %v3327 = vrot.slane %v3326, 1
        %v3328 = vadd.f32 %v3326, %v3327
        %v3329 = vadd.f32 %v3251, %v3328
        %3330 = vst [vmem:[#allocation5] sm:$0x1] %v3329
        %s3331 = smul.u32 %s20, 256
        %s3332 = scalar_lea.vmem [#allocation2], %s3331
        %3333 = vst [vmem:[%s3332] sm:$0xff] %v2272
        %3334 = vst [vmem:[%s3332 + $0x8] sm:$0xff] %v2277
        %3335 = vst [vmem:[%s3332 + $0xe] sm:$0xfc] %v2282
        %3336 = vst [vmem:[%s3332 + $0x16] sm:$0xff] %v2287
        %3337 = vst [vmem:[%s3332 + $0x1e] sm:$0x3] %v2292
        %3338 = vst [vmem:[%s3332 + $0x1c] sm:$0xf0] %v2292
        %3339 = vst [vmem:[%s3332 + $0x24] sm:$0xff] %v2297
        %3340 = vst [vmem:[%s3332 + $0x2c] sm:$0xf] %v2302
        %3341 = vst [vmem:[%s3332 + $0x2a] sm:$0xc0] %v2302
        %3342 = vst [vmem:[%s3332 + $0x32] sm:$0xff] %v2307
        %3343 = vst [vmem:[%s3332 + $0x3a] sm:$0x3f] %v2312
        %3344 = vst [vmem:[%s3332 + $0x40] sm:$0xff] %v2317
        %3345 = vst [vmem:[%s3332 + $0x48] sm:$0xff] %v2322
        %3346 = vst [vmem:[%s3332 + $0x4e] sm:$0xfc] %v2327
        %3347 = vst [vmem:[%s3332 + $0x56] sm:$0xff] %v2332
        %3348 = vst [vmem:[%s3332 + $0x5e] sm:$0x3] %v2337
        %3349 = vst [vmem:[%s3332 + $0x5c] sm:$0xf0] %v2337
        %3350 = vst [vmem:[%s3332 + $0x64] sm:$0xff] %v2342
        %3351 = vst [vmem:[%s3332 + $0x6c] sm:$0xf] %v2347
        %3352 = vst [vmem:[%s3332 + $0x6a] sm:$0xc0] %v2347
        %3353 = vst [vmem:[%s3332 + $0x72] sm:$0xff] %v2352
        %3354 = vst [vmem:[%s3332 + $0x7a] sm:$0x3f] %v2357
        %3355 = vst [vmem:[%s3332 + $0x80] sm:$0xff] %v2362
        %3356 = vst [vmem:[%s3332 + $0x88] sm:$0xff] %v2367
        %3357 = vst [vmem:[%s3332 + $0x8e] sm:$0xfc] %v2372
        %3358 = vst [vmem:[%s3332 + $0x96] sm:$0xff] %v2377
        %3359 = vst [vmem:[%s3332 + $0x9e] sm:$0x3] %v2382
        %3360 = vst [vmem:[%s3332 + $0x9c] sm:$0xf0] %v2382
        %3361 = vst [vmem:[%s3332 + $0xa4] sm:$0xff] %v2387
        %3362 = vst [vmem:[%s3332 + $0xac] sm:$0xf] %v2392
        %3363 = vst [vmem:[%s3332 + $0xaa] sm:$0xc0] %v2392
        %3364 = vst [vmem:[%s3332 + $0xb2] sm:$0xff] %v2397
        %3365 = vst [vmem:[%s3332 + $0xba] sm:$0x3f] %v2402
        %3366 = vst [vmem:[%s3332 + $0xc0] sm:$0xff] %v2407
        %3367 = vst [vmem:[%s3332 + $0xc8] sm:$0xff] %v2412
        %3368 = vst [vmem:[%s3332 + $0xce] sm:$0xfc] %v2417
        %3369 = vst [vmem:[%s3332 + $0xd6] sm:$0xff] %v2422
        %3370 = vst [vmem:[%s3332 + $0xde] sm:$0x3] %v2427
        %3371 = vst [vmem:[%s3332 + $0xdc] sm:$0xf0] %v2427
        %3372 = vst [vmem:[%s3332 + $0xe4] sm:$0xff] %v2432
        %3373 = vst [vmem:[%s3332 + $0xec] sm:$0xf] %v2437
        %3374 = vst [vmem:[%s3332 + $0xea] sm:$0xc0] %v2437
        %3375 = vst [vmem:[%s3332 + $0xf2] sm:$0xff] %v2442
        %3376 = vst [vmem:[%s3332 + $0xfa] sm:$0x3f] %v2447
      $region40: #{conv_bn_relu.1} parent=35 // pred_fallthru
        _
      %p3377 = scmp.eq.s32.totalorder %s19, 1
      // Predicated region
      $region45: #{conv_bn_relu.1} parent=35 // pred_check
        %p3378 = pneg %p3377
      $region46: #{conv_bn_relu.1} parent=35 // pred_check_branch
        %3380 = sbr.rel (%p3378) target = $region48
      $region47: #{conv_bn_relu.1} parent=35 // pred_region
        %p3381 = scmp.eq.s32.totalorder %s20, 0
        // Predicated region
        $region49: #{conv_bn_relu.1} parent=47 // pred_check
          %p3382 = pneg %p3381
        $region50: #{conv_bn_relu.1} parent=47 // pred_check_branch
          %3384 = sbr.rel (%p3382) target = $region52
        $region51: #{conv_bn_relu.1} parent=47 // pred_region
          %v3385 = vld [vmem:[#allocation4] sm:$0x1]
          %v3386 = vmul.f32 %v3385, 0.001953125
          %v3387 = vld [vmem:[#allocation5] sm:$0x1]
          %v3388 = vmul.f32 %v3387, 0.001953125
          %v3389 = vmul.f32 %v3386, %v3386
          %v3390 = vsub.f32 %v3388, %v3389
          %v3391 = vmax.f32 %v3390, 0.0
          %v3392 = vld [vmem:[%s2] sm:$0x1]
          %v3393 = vadd.f32 %v3391, 1e-05
          %v3394 = vrsqrt.pop %v3393
          %v3395 = vmul.f32 %v3392, %v3394
          %3396 = vst [vmem:[#allocation6] sm:$0x1] %v3395
          %v3397 = vld [vmem:[%s3] sm:$0x1]
          %v3398 = vmul.f32 %v3386, %v3395
          %v3399 = vsub.f32 %v3397, %v3398
          %3400 = vst [vmem:[#allocation7] sm:$0x1] %v3399
        $region52: #{conv_bn_relu.1} parent=47 // pred_fallthru
          _
        %s3401 = smul.u32 %s20, 256
        %s3402 = scalar_lea.vmem [#allocation2], %s3401
        %v3403 = vld [vmem:[%s3402] sm:$0xff]
        %v3404 = vld [vmem:[%s3402 + $0x8] sm:$0xff]
        %v3405 = vld [vmem:[%s3402 + $0x10] sm:$0xff]
        %v3406 = vld [vmem:[%s3402 + $0x18] sm:$0xff]
        %v3407 = vld [vmem:[%s3402 + $0x20] sm:$0xff]
        %v3408 = vld [vmem:[%s3402 + $0x28] sm:$0xff]
        %v3409 = vld [vmem:[%s3402 + $0x30] sm:$0xff]
        %v3410 = vld [vmem:[%s3402 + $0x38] sm:$0xff]
        %v3411 = vld [vmem:[%s3402 + $0x40] sm:$0xff]
        %v3412 = vld [vmem:[%s3402 + $0x48] sm:$0xff]
        %v3413 = vld [vmem:[%s3402 + $0x50] sm:$0xff]
        %v3414 = vld [vmem:[%s3402 + $0x58] sm:$0xff]
        %v3415 = vld [vmem:[%s3402 + $0x60] sm:$0xff]
        %v3416 = vld [vmem:[%s3402 + $0x68] sm:$0xff]
        %v3417 = vld [vmem:[%s3402 + $0x70] sm:$0xff]
        %v3418 = vld [vmem:[%s3402 + $0x78] sm:$0xff]
        %v3419 = vld [vmem:[%s3402 + $0x80] sm:$0xff]
        %v3420 = vld [vmem:[%s3402 + $0x88] sm:$0xff]
        %v3421 = vld [vmem:[%s3402 + $0x90] sm:$0xff]
        %v3422 = vld [vmem:[%s3402 + $0x98] sm:$0xff]
        %v3423 = vld [vmem:[%s3402 + $0xa0] sm:$0xff]
        %v3424 = vld [vmem:[%s3402 + $0xa8] sm:$0xff]
        %v3425 = vld [vmem:[%s3402 + $0xb0] sm:$0xff]
        %v3426 = vld [vmem:[%s3402 + $0xb8] sm:$0xff]
        %v3427 = vld [vmem:[%s3402 + $0xc0] sm:$0xff]
        %v3428 = vld [vmem:[%s3402 + $0xc8] sm:$0xff]
        %v3429 = vld [vmem:[%s3402 + $0xd0] sm:$0xff]
        %v3430 = vld [vmem:[%s3402 + $0xd8] sm:$0xff]
        %v3431 = vld [vmem:[%s3402 + $0xe0] sm:$0xff]
        %v3432 = vld [vmem:[%s3402 + $0xe8] sm:$0xff]
        %v3433 = vld [vmem:[%s3402 + $0xf0] sm:$0xff]
        %v3434 = vld [vmem:[%s3402 + $0xf8] sm:$0xff]
        %v3435 = vld [vmem:[#allocation6] sm:$0x1]
        %v3437 = vlaneseq
        %v3438 = vshrl.u32 %v3437, 7
        %v3439 = vsub.s32 0, %v3438
        %v3440 = vrot.slane %v3435, %v3439
        %v3442 = vmul.f32 %v3403, %v3440
        %v3443 = vmul.f32 %v3404, %v3440
        %v3444 = vmul.f32 %v3405, %v3440
        %v3445 = vmul.f32 %v3406, %v3440
        %v3446 = vmul.f32 %v3407, %v3440
        %v3447 = vmul.f32 %v3408, %v3440
        %v3448 = vmul.f32 %v3409, %v3440
        %v3449 = vmul.f32 %v3410, %v3440
        %v3450 = vmul.f32 %v3411, %v3440
        %v3451 = vmul.f32 %v3412, %v3440
        %v3452 = vmul.f32 %v3413, %v3440
        %v3453 = vmul.f32 %v3414, %v3440
        %v3454 = vmul.f32 %v3415, %v3440
        %v3455 = vmul.f32 %v3416, %v3440
        %v3456 = vmul.f32 %v3417, %v3440
        %v3457 = vmul.f32 %v3418, %v3440
        %v3458 = vmul.f32 %v3419, %v3440
        %v3459 = vmul.f32 %v3420, %v3440
        %v3460 = vmul.f32 %v3421, %v3440
        %v3461 = vmul.f32 %v3422, %v3440
        %v3462 = vmul.f32 %v3423, %v3440
        %v3463 = vmul.f32 %v3424, %v3440
        %v3464 = vmul.f32 %v3425, %v3440
        %v3465 = vmul.f32 %v3426, %v3440
        %v3466 = vmul.f32 %v3427, %v3440
        %v3467 = vmul.f32 %v3428, %v3440
        %v3468 = vmul.f32 %v3429, %v3440
        %v3469 = vmul.f32 %v3430, %v3440
        %v3470 = vmul.f32 %v3431, %v3440
        %v3471 = vmul.f32 %v3432, %v3440
        %v3472 = vmul.f32 %v3433, %v3440
        %v3473 = vmul.f32 %v3434, %v3440
        %v3474 = vld [vmem:[#allocation7] sm:$0x1]
        %v3476 = vlaneseq
        %v3477 = vshrl.u32 %v3476, 7
        %v3478 = vsub.s32 0, %v3477
        %v3479 = vrot.slane %v3474, %v3478
        %v3481 = vadd.f32 %v3442, %v3479
        %v3482 = vadd.f32 %v3443, %v3479
        %v3483 = vadd.f32 %v3444, %v3479
        %v3484 = vadd.f32 %v3445, %v3479
        %v3485 = vadd.f32 %v3446, %v3479
        %v3486 = vadd.f32 %v3447, %v3479
        %v3487 = vadd.f32 %v3448, %v3479
        %v3488 = vadd.f32 %v3449, %v3479
        %v3489 = vadd.f32 %v3450, %v3479
        %v3490 = vadd.f32 %v3451, %v3479
        %v3491 = vadd.f32 %v3452, %v3479
        %v3492 = vadd.f32 %v3453, %v3479
        %v3493 = vadd.f32 %v3454, %v3479
        %v3494 = vadd.f32 %v3455, %v3479
        %v3495 = vadd.f32 %v3456, %v3479
        %v3496 = vadd.f32 %v3457, %v3479
        %v3497 = vadd.f32 %v3458, %v3479
        %v3498 = vadd.f32 %v3459, %v3479
        %v3499 = vadd.f32 %v3460, %v3479
        %v3500 = vadd.f32 %v3461, %v3479
        %v3501 = vadd.f32 %v3462, %v3479
        %v3502 = vadd.f32 %v3463, %v3479
        %v3503 = vadd.f32 %v3464, %v3479
        %v3504 = vadd.f32 %v3465, %v3479
        %v3505 = vadd.f32 %v3466, %v3479
        %v3506 = vadd.f32 %v3467, %v3479
        %v3507 = vadd.f32 %v3468, %v3479
        %v3508 = vadd.f32 %v3469, %v3479
        %v3509 = vadd.f32 %v3470, %v3479
        %v3510 = vadd.f32 %v3471, %v3479
        %v3511 = vadd.f32 %v3472, %v3479
        %v3512 = vadd.f32 %v3473, %v3479
        %v3513 = vmax.f32 %v3481, 0.0
        %v3514 = vmax.f32 %v3482, 0.0
        %v3515 = vmax.f32 %v3483, 0.0
        %v3516 = vmax.f32 %v3484, 0.0
        %v3517 = vmax.f32 %v3485, 0.0
        %v3518 = vmax.f32 %v3486, 0.0
        %v3519 = vmax.f32 %v3487, 0.0
        %v3520 = vmax.f32 %v3488, 0.0
        %v3521 = vmax.f32 %v3489, 0.0
        %v3522 = vmax.f32 %v3490, 0.0
        %v3523 = vmax.f32 %v3491, 0.0
        %v3524 = vmax.f32 %v3492, 0.0
        %v3525 = vmax.f32 %v3493, 0.0
        %v3526 = vmax.f32 %v3494, 0.0
        %v3527 = vmax.f32 %v3495, 0.0
        %v3528 = vmax.f32 %v3496, 0.0
        %v3529 = vmax.f32 %v3497, 0.0
        %v3530 = vmax.f32 %v3498, 0.0
        %v3531 = vmax.f32 %v3499, 0.0
        %v3532 = vmax.f32 %v3500, 0.0
        %v3533 = vmax.f32 %v3501, 0.0
        %v3534 = vmax.f32 %v3502, 0.0
        %v3535 = vmax.f32 %v3503, 0.0
        %v3536 = vmax.f32 %v3504, 0.0
        %v3537 = vmax.f32 %v3505, 0.0
        %v3538 = vmax.f32 %v3506, 0.0
        %v3539 = vmax.f32 %v3507, 0.0
        %v3540 = vmax.f32 %v3508, 0.0
        %v3541 = vmax.f32 %v3509, 0.0
        %v3542 = vmax.f32 %v3510, 0.0
        %v3543 = vmax.f32 %v3511, 0.0
        %v3544 = vmax.f32 %v3512, 0.0
        %3545 = vst [vmem:[%s229] sm:$0xff] %v3513
        %3546 = vst [vmem:[%s229 + $0x8] sm:$0xff] %v3514
        %3547 = vst [vmem:[%s229 + $0x10] sm:$0xff] %v3515
        %3548 = vst [vmem:[%s229 + $0x18] sm:$0xff] %v3516
        %3549 = vst [vmem:[%s229 + $0x20] sm:$0xff] %v3517
        %3550 = vst [vmem:[%s229 + $0x28] sm:$0xff] %v3518
        %3551 = vst [vmem:[%s229 + $0x30] sm:$0xff] %v3519
        %3552 = vst [vmem:[%s229 + $0x38] sm:$0xff] %v3520
        %3553 = vst [vmem:[%s229 + $0x40] sm:$0xff] %v3521
        %3554 = vst [vmem:[%s229 + $0x48] sm:$0xff] %v3522
        %3555 = vst [vmem:[%s229 + $0x50] sm:$0xff] %v3523
        %3556 = vst [vmem:[%s229 + $0x58] sm:$0xff] %v3524
        %3557 = vst [vmem:[%s229 + $0x60] sm:$0xff] %v3525
        %3558 = vst [vmem:[%s229 + $0x68] sm:$0xff] %v3526
        %3559 = vst [vmem:[%s229 + $0x70] sm:$0xff] %v3527
        %3560 = vst [vmem:[%s229 + $0x78] sm:$0xff] %v3528
        %3561 = vst [vmem:[%s229 + $0x80] sm:$0xff] %v3529
        %3562 = vst [vmem:[%s229 + $0x88] sm:$0xff] %v3530
        %3563 = vst [vmem:[%s229 + $0x90] sm:$0xff] %v3531
        %3564 = vst [vmem:[%s229 + $0x98] sm:$0xff] %v3532
        %3565 = vst [vmem:[%s229 + $0xa0] sm:$0xff] %v3533
        %3566 = vst [vmem:[%s229 + $0xa8] sm:$0xff] %v3534
        %3567 = vst [vmem:[%s229 + $0xb0] sm:$0xff] %v3535
        %3568 = vst [vmem:[%s229 + $0xb8] sm:$0xff] %v3536
        %3569 = vst [vmem:[%s229 + $0xc0] sm:$0xff] %v3537
        %3570 = vst [vmem:[%s229 + $0xc8] sm:$0xff] %v3538
        %3571 = vst [vmem:[%s229 + $0xd0] sm:$0xff] %v3539
        %3572 = vst [vmem:[%s229 + $0xd8] sm:$0xff] %v3540
        %3573 = vst [vmem:[%s229 + $0xe0] sm:$0xff] %v3541
        %3574 = vst [vmem:[%s229 + $0xe8] sm:$0xff] %v3542
        %3575 = vst [vmem:[%s229 + $0xf0] sm:$0xff] %v3543
        %3576 = vst [vmem:[%s229 + $0xf8] sm:$0xff] %v3544
      $region48: #{conv_bn_relu.1} parent=35 // pred_fallthru
        _
      %s3577 = smul.u32 %s20, %s19
      %s3578 = smul.u32 32, %s3577
      %p3579 = scmp.lt.s32.totalorder %s3578, 63
      %s3580 = scalar_select %p3579, %s3578, 63
      %s3581 = smul.addr %s3580, 8
      %s3582 = scalar_lea.vmem %s4, %s3581
      // Predicated region
      $region53: #{conv_bn_relu.1} parent=35 // pred_check
        %p3583 = pneg %p140
      $region54: #{conv_bn_relu.1} parent=35 // pred_check_branch
        %3585 = sbr.rel (%p3583) target = $region56
      $region55: #{conv_bn_relu.1} parent=35 // pred_region
        %s3586 = smul.u32 %s20, %s19
        %s3587 = smul.u32 32, %s3586
      $region56: #{conv_bn_relu.1} parent=35 // pred_fallthru
        _
    $region36: #{conv_bn_relu.1} parent=5 // pred_fallthru
      _
    %p3588 = scmp.le.s32.totalorder 2, %s10
    // Predicated region
    $region57: #{conv_bn_relu.1} parent=5 // pred_check
      %p3589 = pneg %p3588
    $region58: #{conv_bn_relu.1} parent=5 // pred_check_branch
      %3591 = sbr.rel (%p3589) target = $region60
    $region59: #{conv_bn_relu.1} parent=5 // pred_region
      %s3592 = ssub.s32 %s10, 2
      // Predicated region
      $region61: #{conv_bn_relu.1} parent=59 // pred_check
        %p3593 = pneg %p146
      $region62: #{conv_bn_relu.1} parent=59 // pred_check_branch
        %3595 = sbr.rel (%p3593) target = $region64
      $region63: #{conv_bn_relu.1} parent=59 // pred_region
        %s3596 = smul.u32 %s22, %s21
        %s3597 = smul.u32 32, %s3596
        %p3598 = scmp.lt.s32.totalorder %s3597, 63
        %s3599 = scalar_select %p3598, %s3597, 63
        %s3600 = smul.addr %s3599, 8
        %s3601 = scalar_lea.vmem %s4, %s3600
      $region64: #{conv_bn_relu.1} parent=59 // pred_fallthru
        _
    $region60: #{conv_bn_relu.1} parent=5 // pred_fallthru
      _
  $region6: #{conv_bn_relu.1} parent=0 // loop_footer
    %s14 = sadd.s32 1, %s10
  $region7: #{conv_bn_relu.1} parent=0 // loop_footer_branch
    %9 = sbr.rel target = $region3
  $region8: #{conv_bn_relu.1} parent=0 // loop_exit
    _

</llo_original>
